<compile_context>
chip_gen: v7x
topology: tpu7x:2x2x1
jax: 0.10.0
libtpu: 0.0.40
codegen_flags: <defaults>
</compile_context>

<pallas_src>
import numpy as np
import jax
import jax.numpy as jnp
from jax import lax
from jax.experimental import pallas as pl
from jax.experimental.pallas import tpu as pltpu

EPS = 1e-5      # nn.BatchNorm2d default eps


def _sigmoid(x):
    # tanh-form sigmoid: uses the EUP tanh, avoids a VALU divide.
    return 0.5 * (jnp.tanh(0.5 * x) + 1.0)


# ------------------------------ fused kernel --------------------------------


def _cnn_lstm_kernel(x_ref, m1_ref, b1_ref, m2_ref, b2_ref, pool_ref,
                     wih_ref, whh_ref, bl_ref, mask_ref,
                     hw1_ref, hb1_ref, hw2_ref, hb2_ref, out_ref):
    N = x_ref.shape[0]              # B*T frames, time-major (n = t*B + b)
    H = x_ref.shape[1] - 2          # image height (2 zero pad rows per frame)
    Lin = x_ref.shape[2]            # Cin * W lanes
    L1 = m1_ref.shape[2]            # C1 * W lanes
    L2 = m2_ref.shape[2]            # C2 * (W/2) lanes
    B = out_ref.shape[0]
    T = N // B
    G = whh_ref.shape[1]            # 8 * Hd (fused gate lanes)
    Hd2 = whh_ref.shape[0]          # 2 * Hd (fused state lanes)
    NH = N * H

    x = x_ref[...]                                           # (N, H+2, Lin)

    # ---- Conv2d(Cin,16,3,p=1) [BN folded] + ReLU: 3 banded row-tap matmuls
    a1 = jnp.dot(x[:, 0:H, :].reshape(NH, Lin), m1_ref[0],
                 preferred_element_type=jnp.float32)
    a1 = a1 + jnp.dot(x[:, 1:H + 1, :].reshape(NH, Lin), m1_ref[1],
                      preferred_element_type=jnp.float32)
    a1 = a1 + jnp.dot(x[:, 2:H + 2, :].reshape(NH, Lin), m1_ref[2],
                      preferred_element_type=jnp.float32)
    a1 = jnp.maximum(a1 + b1_ref[...], 0.0)                  # (N*H, L1)

    # ---- MaxPool2d(2): roll+max on rows (y pairs) and lanes (x pairs).
    # Result is valid at even rows / even-x lanes; wrapped / cross-frame /
    # cross-channel entries land only at odd rows / odd-x lanes which are
    # never consumed downstream (conv2's band reads even-x lanes only, the
    # spatial sum masks odd rows).
    vmax = jnp.maximum(a1, pltpu.roll(a1, shift=NH - 1, axis=0))
    pmax = jnp.maximum(vmax, pltpu.roll(vmax, shift=L1 - 1, axis=1))
    pmax3 = pmax.reshape(N, H, L1)
    zrows = jnp.zeros((N, 2, L1), jnp.float32)
    pp = jnp.concatenate([zrows, pmax3, zrows], axis=1)      # (N, H+4, L1)

    # ---- Conv2d(16,32,3,p=1) [BN folded] + ReLU on un-compacted rows.
    # Pooled row y'' lives at full row 2*y''; vertical tap dy reads full rows
    # shifted by 2*dy, so the three slices below are at offsets 0 / 2 / 4.
    a2 = jnp.dot(pp[:, 0:H, :].reshape(NH, L1), m2_ref[0],
                 preferred_element_type=jnp.float32)
    a2 = a2 + jnp.dot(pp[:, 2:H + 2, :].reshape(NH, L1), m2_ref[1],
                      preferred_element_type=jnp.float32)
    a2 = a2 + jnp.dot(pp[:, 4:H + 4, :].reshape(NH, L1), m2_ref[2],
                      preferred_element_type=jnp.float32)
    a2 = jnp.maximum(a2 + b2_ref[...], 0.0).reshape(N, H, L2)

    # ---- AdaptiveAvgPool2d((1,1)): mask odd (garbage) rows, sum rows per
    # frame, then one lane-sum matmul (1/n2 scale folded into pool_ref).
    row_id = lax.broadcasted_iota(jnp.int32, (H, 1), 0)
    a2 = jnp.where((row_id % 2 == 0)[None], a2, 0.0)
    rsum = jnp.sum(a2, axis=1)                               # (N, L2)
    feat = jnp.dot(rsum, pool_ref[...],
                   preferred_element_type=jnp.float32)       # (N, D=32)

    # ---- Fused bidirectional LSTM (block-diag Whh, gate-interleaved lanes).
    xp = (jnp.dot(feat, wih_ref[...], preferred_element_type=jnp.float32)
          + bl_ref[...]).reshape(T, B, G)                    # hoisted x proj
    fwd = mask_ref[...] > 0.5                                # (1, G) fwd cols
    whh = whh_ref[...]                                       # (2Hd, 8Hd)

    h = jnp.zeros((B, Hd2), jnp.float32)                     # [h_f | h_b]
    c = jnp.zeros((B, Hd2), jnp.float32)
    for t in range(T):                                       # T static, tiny
        zx = jnp.where(fwd, xp[t], xp[T - 1 - t])
        z = zx + jnp.dot(h, whh, preferred_element_type=jnp.float32)
        i_g = _sigmoid(z[:, 0 * Hd2:1 * Hd2])
        f_g = _sigmoid(z[:, 1 * Hd2:2 * Hd2])
        g_g = jnp.tanh(z[:, 2 * Hd2:3 * Hd2])
        o_g = _sigmoid(z[:, 3 * Hd2:4 * Hd2])
        c = f_g * c + i_g * g_g
        h = o_g * jnp.tanh(c)

    # ---- Head: Linear(2Hd,32) -> ReLU -> Dropout(identity) -> Linear(32,1)
    hid = jnp.maximum(
        jnp.dot(h, hw1_ref[...], preferred_element_type=jnp.float32)
        + hb1_ref[...], 0.0)
    out_ref[...] = (jnp.dot(hid, hw2_ref[...],
                            preferred_element_type=jnp.float32) + hb2_ref[...])


# -------------------------------- wrapper ------------------------------------


def cnn_lstm_forward(x, kp):
    """x: (B, T, C, H, W) f32 (PyTorch layout) -> (B,) logits."""
    if x.shape[0] == 0:                       # mirrors `if x.size(0) == 0`
        return jnp.zeros((0,), jnp.float32)
    B, T, C, H, W = x.shape
    assert H % 2 == 0 and W % 2 == 0, "MaxPool2d(2) path requires even H, W"
    N = B * T
    # time-major frames, lane-dense rows: (N, H, C*W) with lane = c*W + x,
    # plus one zero row above / below each frame for the dy = +-1 conv taps.
    xr = jnp.transpose(x, (1, 0, 3, 2, 4)).reshape(N, H, C * W)
    x_pad = jnp.pad(xr, ((0, 0), (1, 1), (0, 0)))

    args = [x_pad, kp["m1"], kp["b1"], kp["m2"], kp["b2"], kp["pool"],
            kp["wih"], kp["whh"], kp["bl"], kp["fwd_mask"],
            kp["hw1"], kp["hb1"], kp["hw2"], kp["hb2"]]

    out = pl.pallas_call(
        _cnn_lstm_kernel,
        out_shape=jax.ShapeDtypeStruct((B, 1), jnp.float32),
        grid=(1,),
        in_specs=[pl.BlockSpec(a.shape, lambda i, _nd=a.ndim: (0,) * _nd)
                  for a in args],
        out_specs=pl.BlockSpec((B, 1), lambda i: (0, 0)),
        compiler_params=pltpu.CompilerParams(
            dimension_semantics=("arbitrary",),
            vmem_limit_bytes=32 * 1024 * 1024),
    )(*args)
    return out[:, 0]


# --------------------------- parameter construction -------------------------


def init_params(key, in_channels, hidden_dim):
    ks = iter(jax.random.split(key, 32))

    def nrm(shape, scale=0.1):
        return scale * jax.random.normal(next(ks), shape, dtype=jnp.float32)

    def uni(shape, lo, hi):
        return jax.random.uniform(next(ks), shape, jnp.float32, lo, hi)

    p = {}
    p["conv1_w"] = nrm((16, in_channels, 3, 3)); p["conv1_b"] = nrm((16,))
    p["bn1_gamma"] = 1.0 + nrm((16,)); p["bn1_beta"] = nrm((16,))
    p["bn1_mean"] = nrm((16,)); p["bn1_var"] = uni((16,), 0.5, 1.5)
    p["conv2_w"] = nrm((32, 16, 3, 3)); p["conv2_b"] = nrm((32,))
    p["bn2_gamma"] = 1.0 + nrm((32,)); p["bn2_beta"] = nrm((32,))
    p["bn2_mean"] = nrm((32,)); p["bn2_var"] = uni((32,), 0.5, 1.5)
    Hd = hidden_dim
    for d in ("f", "b"):
        p[f"wih_{d}"] = nrm((4 * Hd, 32)); p[f"whh_{d}"] = nrm((4 * Hd, Hd))
        p[f"bih_{d}"] = nrm((4 * Hd,)); p[f"bhh_{d}"] = nrm((4 * Hd,))
    p["head1_w"] = nrm((32, 2 * Hd)); p["head1_b"] = nrm((32,))
    p["head2_w"] = nrm((1, 32)); p["head2_b"] = nrm((1,))
    return p


def make_kernel_params(p, hidden_dim, H, W):
    """Fold BN, build banded conv matmul weights and fused LSTM weights."""
    Hd = hidden_dim
    H2, W2 = H // 2, W // 2

    def fold(w, b, gamma, beta, mean, var):
        w = np.asarray(w, np.float32); b = np.asarray(b, np.float32)
        gamma = np.asarray(gamma, np.float32); beta = np.asarray(beta, np.float32)
        mean = np.asarray(mean, np.float32); var = np.asarray(var, np.float32)
        s = gamma / np.sqrt(var + EPS)
        return w * s[:, None, None, None], b * s + (beta - mean * s)

    w1f, b1f = fold(p["conv1_w"], p["conv1_b"], p["bn1_gamma"], p["bn1_beta"],
                    p["bn1_mean"], p["bn1_var"])
    w2f, b2f = fold(p["conv2_w"], p["conv2_b"], p["bn2_gamma"], p["bn2_beta"],
                    p["bn2_mean"], p["bn2_var"])
    C1, Cin = w1f.shape[0], w1f.shape[1]
    C2 = w2f.shape[0]

    # conv1 band: lane_in = cin*W + x_in, lane_out = cout*W + x_out.
    m1 = np.zeros((3, Cin * W, C1 * W), np.float32)
    for ky in range(3):
        for kx in range(3):
            for x_out in range(W):
                x_in = x_out + kx - 1
                if 0 <= x_in < W:
                    for cout in range(C1):
                        for cin in range(Cin):
                            m1[ky, cin * W + x_in, cout * W + x_out] = \
                                w1f[cout, cin, ky, kx]
    b1_row = np.repeat(b1f, W)[None, :]

    # conv2 band: reads pooled lanes (c1*W + 2*x_pooled, i.e. even x only),
    # writes lane_out = cout*W2 + x_out.
    m2 = np.zeros((3, C1 * W, C2 * W2), np.float32)
    for ky in range(3):
        for kx in range(3):
            for x_out in range(W2):
                xp_in = x_out + kx - 1
                if 0 <= xp_in < W2:
                    for cout in range(C2):
                        for c1 in range(C1):
                            m2[ky, c1 * W + 2 * xp_in, cout * W2 + x_out] = \
                                w2f[cout, c1, ky, kx]
    b2_row = np.repeat(b2f, W2)[None, :]

    # adaptive-avg-pool lane sum (folds the 1/(H2*W2) scale).
    pool = np.kron(np.eye(C2, dtype=np.float32),
                   np.ones((W2, 1), np.float32)) / float(H2 * W2)

    # fused bidirectional LSTM, gate-interleaved lane layout
    # [i_f,i_b,f_f,f_b,g_f,g_b,o_f,o_b], each block Hd wide.
    D = np.asarray(p["wih_f"]).shape[1]
    G = 8 * Hd
    wih = np.zeros((D, G), np.float32)
    whh = np.zeros((2 * Hd, G), np.float32)
    bl = np.zeros((1, G), np.float32)
    fwd_mask = np.zeros((1, G), np.float32)
    wih_f = np.asarray(p["wih_f"], np.float32); wih_b = np.asarray(p["wih_b"], np.float32)
    whh_f = np.asarray(p["whh_f"], np.float32); whh_b = np.asarray(p["whh_b"], np.float32)
    bf = np.asarray(p["bih_f"], np.float32) + np.asarray(p["bhh_f"], np.float32)
    bb = np.asarray(p["bih_b"], np.float32) + np.asarray(p["bhh_b"], np.float32)
    for gi in range(4):
        cf = slice(gi * 2 * Hd, gi * 2 * Hd + Hd)
        cb = slice(gi * 2 * Hd + Hd, (gi + 1) * 2 * Hd)
        rf = slice(gi * Hd, (gi + 1) * Hd)
        wih[:, cf] = wih_f[rf, :].T
        wih[:, cb] = wih_b[rf, :].T
        whh[0:Hd, cf] = whh_f[rf, :].T
        whh[Hd:, cb] = whh_b[rf, :].T
        bl[0, cf] = bf[rf]
        bl[0, cb] = bb[rf]
        fwd_mask[0, cf] = 1.0

    out = dict(
        m1=m1, b1=b1_row, m2=m2, b2=b2_row, pool=pool,
        wih=wih, whh=whh, bl=bl, fwd_mask=fwd_mask,
        hw1=np.asarray(p["head1_w"], np.float32).T,
        hb1=np.asarray(p["head1_b"], np.float32)[None, :],
        hw2=np.asarray(p["head2_w"], np.float32).T,
        hb2=np.asarray(p["head2_b"], np.float32)[None, :])
    return {k: jnp.asarray(v) for k, v in out.items()}


# ------------------------ pure-JAX reference (checking) ---------------------


def reference_forward(x, p, hidden_dim):
    B, T, C, H, W = x.shape
    y = x.reshape(B * T, C, H, W)

    def conv_bn_relu(y, w, b, gamma, beta, mean, var):
        y = lax.conv_general_dilated(
            y, w, window_strides=(1, 1), padding=((1, 1), (1, 1)),
            dimension_numbers=("NCHW", "OIHW", "NCHW"))
        y = y + b[None, :, None, None]
        y = ((y - mean[None, :, None, None])
             / jnp.sqrt(var[None, :, None, None] + EPS)
             * gamma[None, :, None, None] + beta[None, :, None, None])
        return jnp.maximum(y, 0.0)

    y = conv_bn_relu(y, p["conv1_w"], p["conv1_b"], p["bn1_gamma"],
                     p["bn1_beta"], p["bn1_mean"], p["bn1_var"])
    N, C1 = y.shape[0], y.shape[1]
    y = y.reshape(N, C1, H // 2, 2, W // 2, 2).max(axis=(3, 5))
    y = conv_bn_relu(y, p["conv2_w"], p["conv2_b"], p["bn2_gamma"],
                     p["bn2_beta"], p["bn2_mean"], p["bn2_var"])
    feat = y.mean(axis=(2, 3)).reshape(B, T, -1)

    Hd = hidden_dim

    def cell(x_t, h, c, wih, whh, bih, bhh):
        z = x_t @ wih.T + h @ whh.T + bih + bhh
        zi, zf, zg, zo = jnp.split(z, 4, axis=1)
        i = 1.0 / (1.0 + jnp.exp(-zi))
        f = 1.0 / (1.0 + jnp.exp(-zf))
        o = 1.0 / (1.0 + jnp.exp(-zo))
        g = jnp.tanh(zg)
        c = f * c + i * g
        return o * jnp.tanh(c), c

    h_f = c_f = h_b = c_b = jnp.zeros((B, Hd), jnp.float32)
    for t in range(T):
        h_f, c_f = cell(feat[:, t], h_f, c_f, p["wih_f"], p["whh_f"],
                        p["bih_f"], p["bhh_f"])
        h_b, c_b = cell(feat[:, T - 1 - t], h_b, c_b, p["wih_b"], p["whh_b"],
                        p["bih_b"], p["bhh_b"])
    h_cat = jnp.concatenate([h_f, h_b], axis=1)
    hid = jnp.maximum(h_cat @ p["head1_w"].T + p["head1_b"], 0.0)
    return (hid @ p["head2_w"].T + p["head2_b"])[:, 0]


# ----------------------------------- main ------------------------------------


if __name__ == "__main__":
    B, T, C, H, W = 2, 8, 4, 16, 16
    HIDDEN = 32

    key = jax.random.PRNGKey(0)
    kx, kparam = jax.random.split(key)
    x = jax.random.normal(kx, (B, T, C, H, W), dtype=jnp.float32)

    params = init_params(kparam, C, HIDDEN)
    kp = make_kernel_params(params, HIDDEN, H, W)

    fwd = jax.jit(cnn_lstm_forward)
    out = jax.block_until_ready(fwd(x, kp))
    assert out.shape == (B,), out.shape

    ref = jax.block_until_ready(reference_forward(x, params, HIDDEN))
    if not np.allclose(np.asarray(out), np.asarray(ref), rtol=2e-3, atol=2e-3):
        max_err = float(np.max(np.abs(np.asarray(out) - np.asarray(ref))))
        raise AssertionError(f"Pallas kernel mismatch vs reference "
                             f"(max abs err {max_err:.3e})")
    print("KERNEL_OK")
</pallas_src>

<mosaic_0001>
module attributes {stable_mosaic.version = 11 : i64} {
  func.func @_cnn_lstm_kernel(%arg0: i32, %arg1: memref<16x18x64xf32, #tpu.memory_space<vmem>>, %arg2: memref<3x64x256xf32, #tpu.memory_space<vmem>>, %arg3: memref<1x256xf32, #tpu.memory_space<vmem>>, %arg4: memref<3x256x256xf32, #tpu.memory_space<vmem>>, %arg5: memref<1x256xf32, #tpu.memory_space<vmem>>, %arg6: memref<256x32xf32, #tpu.memory_space<vmem>>, %arg7: memref<32x256xf32, #tpu.memory_space<vmem>>, %arg8: memref<64x256xf32, #tpu.memory_space<vmem>>, %arg9: memref<1x256xf32, #tpu.memory_space<vmem>>, %arg10: memref<1x256xf32, #tpu.memory_space<vmem>>, %arg11: memref<64x32xf32, #tpu.memory_space<vmem>>, %arg12: memref<1x32xf32, #tpu.memory_space<vmem>>, %arg13: memref<32x1xf32, #tpu.memory_space<vmem>>, %arg14: memref<1x1xf32, #tpu.memory_space<vmem>>, %arg15: memref<2x1xf32, #tpu.memory_space<vmem>>) attributes {dimension_semantics = [#tpu.dimension_semantics<arbitrary>], iteration_bounds = array<i64: 1>, scalar_prefetch = 0 : i64, scratch_operands = 0 : i64, tpu.core_type = #tpu.core_type<tc>, window_params = [{pipeline_mode = #tpu.pipeline_mode<synchronous>, transform_indices = @transform_0, window_bounds = array<i64: 16, 18, 64>}, {pipeline_mode = #tpu.pipeline_mode<synchronous>, transform_indices = @transform_1, window_bounds = array<i64: 3, 64, 256>}, {pipeline_mode = #tpu.pipeline_mode<synchronous>, transform_indices = @transform_2, window_bounds = array<i64: 1, 256>}, {pipeline_mode = #tpu.pipeline_mode<synchronous>, transform_indices = @transform_3, window_bounds = array<i64: 3, 256, 256>}, {pipeline_mode = #tpu.pipeline_mode<synchronous>, transform_indices = @transform_4, window_bounds = array<i64: 1, 256>}, {pipeline_mode = #tpu.pipeline_mode<synchronous>, transform_indices = @transform_5, window_bounds = array<i64: 256, 32>}, {pipeline_mode = #tpu.pipeline_mode<synchronous>, transform_indices = @transform_6, window_bounds = array<i64: 32, 256>}, {pipeline_mode = #tpu.pipeline_mode<synchronous>, transform_indices = @transform_7, window_bounds = array<i64: 64, 256>}, {pipeline_mode = #tpu.pipeline_mode<synchronous>, transform_indices = @transform_8, window_bounds = array<i64: 1, 256>}, {pipeline_mode = #tpu.pipeline_mode<synchronous>, transform_indices = @transform_9, window_bounds = array<i64: 1, 256>}, {pipeline_mode = #tpu.pipeline_mode<synchronous>, transform_indices = @transform_10, window_bounds = array<i64: 64, 32>}, {pipeline_mode = #tpu.pipeline_mode<synchronous>, transform_indices = @transform_11, window_bounds = array<i64: 1, 32>}, {pipeline_mode = #tpu.pipeline_mode<synchronous>, transform_indices = @transform_12, window_bounds = array<i64: 32, 1>}, {pipeline_mode = #tpu.pipeline_mode<synchronous>, transform_indices = @transform_13, window_bounds = array<i64: 1, 1>}, {pipeline_mode = #tpu.pipeline_mode<synchronous>, transform_indices = @transform_14, window_bounds = array<i64: 2, 1>}]} {
    %c0 = arith.constant 0 : index
    %c0_0 = arith.constant 0 : index
    %c0_1 = arith.constant 0 : index
    %0 = vector.load %arg1[%c0, %c0_0, %c0_1] : memref<16x18x64xf32, #tpu.memory_space<vmem>>, vector<16x18x64xf32>
    %1 = vector.extract_strided_slice %0 {offsets = [0, 0, 0], sizes = [16, 16, 64], strides = [1, 1, 1]} : vector<16x18x64xf32> to vector<16x16x64xf32>
    %2 = vector.shape_cast %1 : vector<16x16x64xf32> to vector<256x64xf32>
    %c0_2 = arith.constant 0 : index
    %c0_3 = arith.constant 0 : index
    %c0_4 = arith.constant 0 : index
    %3 = vector.load %arg2[%c0_2, %c0_3, %c0_4] : memref<3x64x256xf32, #tpu.memory_space<vmem>>, vector<1x64x256xf32>
    %4 = vector.shape_cast %3 : vector<1x64x256xf32> to vector<64x256xf32>
    %cst = arith.constant dense<0.000000e+00> : vector<256x256xf32>
    %5 = tpu.matmul %2, %4, %cst {dimension_numbers = #tpu.dot_dimension_numbers<[1], [0], [0], [1], [0, 0, 1, 1], [], []>} : vector<256x64xf32>, vector<64x256xf32>, vector<256x256xf32> -> vector<256x256xf32>
    %6 = vector.extract_strided_slice %0 {offsets = [0, 1, 0], sizes = [16, 16, 64], strides = [1, 1, 1]} : vector<16x18x64xf32> to vector<16x16x64xf32>
    %7 = vector.shape_cast %6 : vector<16x16x64xf32> to vector<256x64xf32>
    %c1 = arith.constant 1 : index
    %c0_5 = arith.constant 0 : index
    %c0_6 = arith.constant 0 : index
    %8 = vector.load %arg2[%c1, %c0_5, %c0_6] : memref<3x64x256xf32, #tpu.memory_space<vmem>>, vector<1x64x256xf32>
    %9 = vector.shape_cast %8 : vector<1x64x256xf32> to vector<64x256xf32>
    %cst_7 = arith.constant dense<0.000000e+00> : vector<256x256xf32>
    %10 = tpu.matmul %7, %9, %cst_7 {dimension_numbers = #tpu.dot_dimension_numbers<[1], [0], [0], [1], [0, 0, 1, 1], [], []>} : vector<256x64xf32>, vector<64x256xf32>, vector<256x256xf32> -> vector<256x256xf32>
    %11 = arith.addf %5, %10 : vector<256x256xf32>
    %12 = vector.extract_strided_slice %0 {offsets = [0, 2, 0], sizes = [16, 16, 64], strides = [1, 1, 1]} : vector<16x18x64xf32> to vector<16x16x64xf32>
    %13 = vector.shape_cast %12 : vector<16x16x64xf32> to vector<256x64xf32>
    %c2 = arith.constant 2 : index
    %c0_8 = arith.constant 0 : index
    %c0_9 = arith.constant 0 : index
    %14 = vector.load %arg2[%c2, %c0_8, %c0_9] : memref<3x64x256xf32, #tpu.memory_space<vmem>>, vector<1x64x256xf32>
    %15 = vector.shape_cast %14 : vector<1x64x256xf32> to vector<64x256xf32>
    %cst_10 = arith.constant dense<0.000000e+00> : vector<256x256xf32>
    %16 = tpu.matmul %13, %15, %cst_10 {dimension_numbers = #tpu.dot_dimension_numbers<[1], [0], [0], [1], [0, 0, 1, 1], [], []>} : vector<256x64xf32>, vector<64x256xf32>, vector<256x256xf32> -> vector<256x256xf32>
    %17 = arith.addf %11, %16 : vector<256x256xf32>
    %c0_11 = arith.constant 0 : index
    %c0_12 = arith.constant 0 : index
    %18 = vector.load %arg3[%c0_11, %c0_12] : memref<1x256xf32, #tpu.memory_space<vmem>>, vector<1x256xf32>
    %19 = vector.broadcast %18 : vector<1x256xf32> to vector<256x256xf32>
    %20 = arith.addf %17, %19 : vector<256x256xf32>
    %cst_13 = arith.constant 0.000000e+00 : f32
    %21 = vector.broadcast %cst_13 : f32 to vector<256x256xf32>
    %22 = arith.maximumf %20, %21 : vector<256x256xf32>
    %c255_i32 = arith.constant 255 : i32
    %23 = tpu.dynamic_rotate %22 by %c255_i32 dim 0 : vector<256x256xf32>, i32 -> vector<256x256xf32>
    %24 = arith.maximumf %22, %23 : vector<256x256xf32>
    %c255_i32_14 = arith.constant 255 : i32
    %25 = tpu.dynamic_rotate %24 by %c255_i32_14 dim 1 : vector<256x256xf32>, i32 -> vector<256x256xf32>
    %26 = arith.maximumf %24, %25 : vector<256x256xf32>
    %27 = vector.shape_cast %26 : vector<256x256xf32> to vector<16x16x256xf32>
    %cst_15 = arith.constant 0.000000e+00 : f32
    %28 = vector.broadcast %cst_15 : f32 to vector<16x2x256xf32>
    %29 = tpu.concatenate %28, %27, %28 in 1 : vector<16x2x256xf32>, vector<16x16x256xf32>, vector<16x2x256xf32> -> vector<16x20x256xf32>
    %30 = vector.extract_strided_slice %29 {offsets = [0, 0, 0], sizes = [16, 16, 256], strides = [1, 1, 1]} : vector<16x20x256xf32> to vector<16x16x256xf32>
    %31 = vector.shape_cast %30 : vector<16x16x256xf32> to vector<256x256xf32>
    %c0_16 = arith.constant 0 : index
    %c0_17 = arith.constant 0 : index
    %c0_18 = arith.constant 0 : index
    %32 = vector.load %arg4[%c0_16, %c0_17, %c0_18] : memref<3x256x256xf32, #tpu.memory_space<vmem>>, vector<1x256x256xf32>
    %33 = vector.shape_cast %32 : vector<1x256x256xf32> to vector<256x256xf32>
    %cst_19 = arith.constant dense<0.000000e+00> : vector<256x256xf32>
    %34 = tpu.matmul %31, %33, %cst_19 {dimension_numbers = #tpu.dot_dimension_numbers<[1], [0], [0], [1], [0, 0, 1, 1], [], []>} : vector<256x256xf32>, vector<256x256xf32>, vector<256x256xf32> -> vector<256x256xf32>
    %35 = vector.extract_strided_slice %29 {offsets = [0, 2, 0], sizes = [16, 16, 256], strides = [1, 1, 1]} : vector<16x20x256xf32> to vector<16x16x256xf32>
    %36 = vector.shape_cast %35 : vector<16x16x256xf32> to vector<256x256xf32>
    %c1_20 = arith.constant 1 : index
    %c0_21 = arith.constant 0 : index
    %c0_22 = arith.constant 0 : index
    %37 = vector.load %arg4[%c1_20, %c0_21, %c0_22] : memref<3x256x256xf32, #tpu.memory_space<vmem>>, vector<1x256x256xf32>
    %38 = vector.shape_cast %37 : vector<1x256x256xf32> to vector<256x256xf32>
    %cst_23 = arith.constant dense<0.000000e+00> : vector<256x256xf32>
    %39 = tpu.matmul %36, %38, %cst_23 {dimension_numbers = #tpu.dot_dimension_numbers<[1], [0], [0], [1], [0, 0, 1, 1], [], []>} : vector<256x256xf32>, vector<256x256xf32>, vector<256x256xf32> -> vector<256x256xf32>
    %40 = arith.addf %34, %39 : vector<256x256xf32>
    %41 = vector.extract_strided_slice %29 {offsets = [0, 4, 0], sizes = [16, 16, 256], strides = [1, 1, 1]} : vector<16x20x256xf32> to vector<16x16x256xf32>
    %42 = vector.shape_cast %41 : vector<16x16x256xf32> to vector<256x256xf32>
    %c2_24 = arith.constant 2 : index
    %c0_25 = arith.constant 0 : index
    %c0_26 = arith.constant 0 : index
    %43 = vector.load %arg4[%c2_24, %c0_25, %c0_26] : memref<3x256x256xf32, #tpu.memory_space<vmem>>, vector<1x256x256xf32>
    %44 = vector.shape_cast %43 : vector<1x256x256xf32> to vector<256x256xf32>
    %cst_27 = arith.constant dense<0.000000e+00> : vector<256x256xf32>
    %45 = tpu.matmul %42, %44, %cst_27 {dimension_numbers = #tpu.dot_dimension_numbers<[1], [0], [0], [1], [0, 0, 1, 1], [], []>} : vector<256x256xf32>, vector<256x256xf32>, vector<256x256xf32> -> vector<256x256xf32>
    %46 = arith.addf %40, %45 : vector<256x256xf32>
    %c0_28 = arith.constant 0 : index
    %c0_29 = arith.constant 0 : index
    %47 = vector.load %arg5[%c0_28, %c0_29] : memref<1x256xf32, #tpu.memory_space<vmem>>, vector<1x256xf32>
    %48 = vector.broadcast %47 : vector<1x256xf32> to vector<256x256xf32>
    %49 = arith.addf %46, %48 : vector<256x256xf32>
    %cst_30 = arith.constant 0.000000e+00 : f32
    %50 = vector.broadcast %cst_30 : f32 to vector<256x256xf32>
    %51 = arith.maximumf %49, %50 : vector<256x256xf32>
    %52 = vector.shape_cast %51 : vector<256x256xf32> to vector<16x16x256xf32>
    %53 = tpu.iota {dimensions = array<i32: 0>} : vector<16x1xi32>
    %c2_i32 = arith.constant 2 : i32
    %c0_i32 = arith.constant 0 : i32
    %54 = arith.cmpi eq, %c2_i32, %c0_i32 : i32
    %c1_i32 = arith.constant 1 : i32
    %55 = arith.select %54, %c1_i32, %c2_i32 : i32
    %56 = vector.broadcast %55 : i32 to vector<16x1xi32>
    %57 = arith.remsi %53, %56 : vector<16x1xi32>
    %c0_i32_31 = arith.constant 0 : i32
    %58 = vector.broadcast %c0_i32_31 : i32 to vector<16x1xi32>
    %59 = arith.cmpi ne, %57, %58 : vector<16x1xi32>
    %c0_i32_32 = arith.constant 0 : i32
    %60 = vector.broadcast %c0_i32_32 : i32 to vector<16x1xi32>
    %61 = arith.cmpi slt, %57, %60 : vector<16x1xi32>
    %c0_i32_33 = arith.constant 0 : i32
    %62 = arith.cmpi slt, %55, %c0_i32_33 : i32
    %63 = vector.broadcast %62 : i1 to vector<16x1xi1>
    %64 = vector.broadcast %63 : vector<16x1xi1> to vector<16x1xi1>
    %65 = arith.xori %61, %64 : vector<16x1xi1>
    %66 = arith.andi %65, %59 : vector<16x1xi1>
    %67 = vector.broadcast %55 : i32 to vector<16x1xi32>
    %68 = arith.addi %57, %67 : vector<16x1xi32>
    %69 = arith.select %66, %68, %57 : vector<16x1xi1>, vector<16x1xi32>
    %c0_i32_34 = arith.constant 0 : i32
    %70 = vector.broadcast %c0_i32_34 : i32 to vector<16x1xi32>
    %71 = arith.cmpi eq, %69, %70 : vector<16x1xi32>
    %72 = vector.shape_cast %71 : vector<16x1xi1> to vector<1x16x1xi1>
    %cst_35 = arith.constant 0.000000e+00 : f32
    %73 = vector.shape_cast %72 : vector<1x16x1xi1> to vector<1x16x1xi1>
    %74 = vector.broadcast %73 : vector<1x16x1xi1> to vector<16x16x256xi1>
    %75 = vector.broadcast %cst_35 : f32 to vector<16x16x256xf32>
    %76 = arith.select %74, %52, %75 : vector<16x16x256xi1>, vector<16x16x256xf32>
    %cst_36 = arith.constant dense<0.000000e+00> : vector<16x256xf32>
    %77 = vector.multi_reduction <add>, %76, %cst_36 [1] : vector<16x16x256xf32> to vector<16x256xf32>
    %c0_37 = arith.constant 0 : index
    %c0_38 = arith.constant 0 : index
    %78 = vector.load %arg6[%c0_37, %c0_38] : memref<256x32xf32, #tpu.memory_space<vmem>>, vector<256x32xf32>
    %cst_39 = arith.constant dense<0.000000e+00> : vector<16x32xf32>
    %79 = tpu.matmul %77, %78, %cst_39 {dimension_numbers = #tpu.dot_dimension_numbers<[1], [0], [0], [1], [0, 0, 1, 1], [], []>} : vector<16x256xf32>, vector<256x32xf32>, vector<16x32xf32> -> vector<16x32xf32>
    %c0_40 = arith.constant 0 : index
    %c0_41 = arith.constant 0 : index
    %80 = vector.load %arg7[%c0_40, %c0_41] : memref<32x256xf32, #tpu.memory_space<vmem>>, vector<32x256xf32>
    %cst_42 = arith.constant dense<0.000000e+00> : vector<16x256xf32>
    %81 = tpu.matmul %79, %80, %cst_42 {dimension_numbers = #tpu.dot_dimension_numbers<[1], [0], [0], [1], [0, 0, 1, 1], [], []>} : vector<16x32xf32>, vector<32x256xf32>, vector<16x256xf32> -> vector<16x256xf32>
    %c0_43 = arith.constant 0 : index
    %c0_44 = arith.constant 0 : index
    %82 = vector.load %arg9[%c0_43, %c0_44] : memref<1x256xf32, #tpu.memory_space<vmem>>, vector<1x256xf32>
    %83 = vector.broadcast %82 : vector<1x256xf32> to vector<16x256xf32>
    %84 = arith.addf %81, %83 : vector<16x256xf32>
    %85 = vector.shape_cast %84 : vector<16x256xf32> to vector<8x2x256xf32>
    %c0_45 = arith.constant 0 : index
    %c0_46 = arith.constant 0 : index
    %86 = vector.load %arg10[%c0_45, %c0_46] : memref<1x256xf32, #tpu.memory_space<vmem>>, vector<1x256xf32>
    %cst_47 = arith.constant 5.000000e-01 : f32
    %87 = vector.broadcast %cst_47 : f32 to vector<1x256xf32>
    %88 = arith.cmpf ogt, %86, %87 : vector<1x256xf32>
    %c0_48 = arith.constant 0 : index
    %c0_49 = arith.constant 0 : index
    %89 = vector.load %arg8[%c0_48, %c0_49] : memref<64x256xf32, #tpu.memory_space<vmem>>, vector<64x256xf32>
    %cst_50 = arith.constant 0.000000e+00 : f32
    %90 = vector.broadcast %cst_50 : f32 to vector<2x64xf32>
    %cst_51 = arith.constant 0.000000e+00 : f32
    %91 = vector.broadcast %cst_51 : f32 to vector<2x64xf32>
    %92 = vector.extract_strided_slice %85 {offsets = [0, 0, 0], sizes = [1, 2, 256], strides = [1, 1, 1]} : vector<8x2x256xf32> to vector<1x2x256xf32>
    %93 = vector.shape_cast %92 : vector<1x2x256xf32> to vector<2x256xf32>
    %94 = vector.extract_strided_slice %85 {offsets = [7, 0, 0], sizes = [1, 2, 256], strides = [1, 1, 1]} : vector<8x2x256xf32> to vector<1x2x256xf32>
    %95 = vector.shape_cast %94 : vector<1x2x256xf32> to vector<2x256xf32>
    %96 = vector.shape_cast %88 : vector<1x256xi1> to vector<1x256xi1>
    %97 = vector.broadcast %96 : vector<1x256xi1> to vector<2x256xi1>
    %98 = arith.select %97, %93, %95 : vector<2x256xi1>, vector<2x256xf32>
    %cst_52 = arith.constant dense<0.000000e+00> : vector<2x256xf32>
    %99 = tpu.matmul %90, %89, %cst_52 {dimension_numbers = #tpu.dot_dimension_numbers<[1], [0], [0], [1], [0, 0, 1, 1], [], []>} : vector<2x64xf32>, vector<64x256xf32>, vector<2x256xf32> -> vector<2x256xf32>
    %100 = arith.addf %98, %99 : vector<2x256xf32>
    %101 = vector.extract_strided_slice %100 {offsets = [0, 0], sizes = [2, 64], strides = [1, 1]} : vector<2x256xf32> to vector<2x64xf32>
    %cst_53 = arith.constant 5.000000e-01 : f32
    %102 = vector.broadcast %cst_53 : f32 to vector<2x64xf32>
    %103 = arith.mulf %102, %101 : vector<2x64xf32>
    %104 = math.tanh %103 : vector<2x64xf32>
    %cst_54 = arith.constant 1.000000e+00 : f32
    %105 = vector.broadcast %cst_54 : f32 to vector<2x64xf32>
    %106 = arith.addf %104, %105 : vector<2x64xf32>
    %cst_55 = arith.constant 5.000000e-01 : f32
    %107 = vector.broadcast %cst_55 : f32 to vector<2x64xf32>
    %108 = arith.mulf %107, %106 : vector<2x64xf32>
    %109 = vector.extract_strided_slice %100 {offsets = [0, 64], sizes = [2, 64], strides = [1, 1]} : vector<2x256xf32> to vector<2x64xf32>
    %cst_56 = arith.constant 5.000000e-01 : f32
    %110 = vector.broadcast %cst_56 : f32 to vector<2x64xf32>
    %111 = arith.mulf %110, %109 : vector<2x64xf32>
    %112 = math.tanh %111 : vector<2x64xf32>
    %cst_57 = arith.constant 1.000000e+00 : f32
    %113 = vector.broadcast %cst_57 : f32 to vector<2x64xf32>
    %114 = arith.addf %112, %113 : vector<2x64xf32>
    %cst_58 = arith.constant 5.000000e-01 : f32
    %115 = vector.broadcast %cst_58 : f32 to vector<2x64xf32>
    %116 = arith.mulf %115, %114 : vector<2x64xf32>
    %117 = vector.extract_strided_slice %100 {offsets = [0, 128], sizes = [2, 64], strides = [1, 1]} : vector<2x256xf32> to vector<2x64xf32>
    %118 = math.tanh %117 : vector<2x64xf32>
    %119 = vector.extract_strided_slice %100 {offsets = [0, 192], sizes = [2, 64], strides = [1, 1]} : vector<2x256xf32> to vector<2x64xf32>
    %cst_59 = arith.constant 5.000000e-01 : f32
    %120 = vector.broadcast %cst_59 : f32 to vector<2x64xf32>
    %121 = arith.mulf %120, %119 : vector<2x64xf32>
    %122 = math.tanh %121 : vector<2x64xf32>
    %cst_60 = arith.constant 1.000000e+00 : f32
    %123 = vector.broadcast %cst_60 : f32 to vector<2x64xf32>
    %124 = arith.addf %122, %123 : vector<2x64xf32>
    %cst_61 = arith.constant 5.000000e-01 : f32
    %125 = vector.broadcast %cst_61 : f32 to vector<2x64xf32>
    %126 = arith.mulf %125, %124 : vector<2x64xf32>
    %127 = arith.mulf %116, %91 : vector<2x64xf32>
    %128 = arith.mulf %108, %118 : vector<2x64xf32>
    %129 = arith.addf %127, %128 : vector<2x64xf32>
    %130 = math.tanh %129 : vector<2x64xf32>
    %131 = arith.mulf %126, %130 : vector<2x64xf32>
    %132 = vector.extract_strided_slice %85 {offsets = [1, 0, 0], sizes = [1, 2, 256], strides = [1, 1, 1]} : vector<8x2x256xf32> to vector<1x2x256xf32>
    %133 = vector.shape_cast %132 : vector<1x2x256xf32> to vector<2x256xf32>
    %134 = vector.extract_strided_slice %85 {offsets = [6, 0, 0], sizes = [1, 2, 256], strides = [1, 1, 1]} : vector<8x2x256xf32> to vector<1x2x256xf32>
    %135 = vector.shape_cast %134 : vector<1x2x256xf32> to vector<2x256xf32>
    %136 = vector.shape_cast %88 : vector<1x256xi1> to vector<1x256xi1>
    %137 = vector.broadcast %136 : vector<1x256xi1> to vector<2x256xi1>
    %138 = arith.select %137, %133, %135 : vector<2x256xi1>, vector<2x256xf32>
    %cst_62 = arith.constant dense<0.000000e+00> : vector<2x256xf32>
    %139 = tpu.matmul %131, %89, %cst_62 {dimension_numbers = #tpu.dot_dimension_numbers<[1], [0], [0], [1], [0, 0, 1, 1], [], []>} : vector<2x64xf32>, vector<64x256xf32>, vector<2x256xf32> -> vector<2x256xf32>
    %140 = arith.addf %138, %139 : vector<2x256xf32>
    %141 = vector.extract_strided_slice %140 {offsets = [0, 0], sizes = [2, 64], strides = [1, 1]} : vector<2x256xf32> to vector<2x64xf32>
    %cst_63 = arith.constant 5.000000e-01 : f32
    %142 = vector.broadcast %cst_63 : f32 to vector<2x64xf32>
    %143 = arith.mulf %142, %141 : vector<2x64xf32>
    %144 = math.tanh %143 : vector<2x64xf32>
    %cst_64 = arith.constant 1.000000e+00 : f32
    %145 = vector.broadcast %cst_64 : f32 to vector<2x64xf32>
    %146 = arith.addf %144, %145 : vector<2x64xf32>
    %cst_65 = arith.constant 5.000000e-01 : f32
    %147 = vector.broadcast %cst_65 : f32 to vector<2x64xf32>
    %148 = arith.mulf %147, %146 : vector<2x64xf32>
    %149 = vector.extract_strided_slice %140 {offsets = [0, 64], sizes = [2, 64], strides = [1, 1]} : vector<2x256xf32> to vector<2x64xf32>
    %cst_66 = arith.constant 5.000000e-01 : f32
    %150 = vector.broadcast %cst_66 : f32 to vector<2x64xf32>
    %151 = arith.mulf %150, %149 : vector<2x64xf32>
    %152 = math.tanh %151 : vector<2x64xf32>
    %cst_67 = arith.constant 1.000000e+00 : f32
    %153 = vector.broadcast %cst_67 : f32 to vector<2x64xf32>
    %154 = arith.addf %152, %153 : vector<2x64xf32>
    %cst_68 = arith.constant 5.000000e-01 : f32
    %155 = vector.broadcast %cst_68 : f32 to vector<2x64xf32>
    %156 = arith.mulf %155, %154 : vector<2x64xf32>
    %157 = vector.extract_strided_slice %140 {offsets = [0, 128], sizes = [2, 64], strides = [1, 1]} : vector<2x256xf32> to vector<2x64xf32>
    %158 = math.tanh %157 : vector<2x64xf32>
    %159 = vector.extract_strided_slice %140 {offsets = [0, 192], sizes = [2, 64], strides = [1, 1]} : vector<2x256xf32> to vector<2x64xf32>
    %cst_69 = arith.constant 5.000000e-01 : f32
    %160 = vector.broadcast %cst_69 : f32 to vector<2x64xf32>
    %161 = arith.mulf %160, %159 : vector<2x64xf32>
    %162 = math.tanh %161 : vector<2x64xf32>
    %cst_70 = arith.constant 1.000000e+00 : f32
    %163 = vector.broadcast %cst_70 : f32 to vector<2x64xf32>
    %164 = arith.addf %162, %163 : vector<2x64xf32>
    %cst_71 = arith.constant 5.000000e-01 : f32
    %165 = vector.broadcast %cst_71 : f32 to vector<2x64xf32>
    %166 = arith.mulf %165, %164 : vector<2x64xf32>
    %167 = arith.mulf %156, %129 : vector<2x64xf32>
    %168 = arith.mulf %148, %158 : vector<2x64xf32>
    %169 = arith.addf %167, %168 : vector<2x64xf32>
    %170 = math.tanh %169 : vector<2x64xf32>
    %171 = arith.mulf %166, %170 : vector<2x64xf32>
    %172 = vector.extract_strided_slice %85 {offsets = [2, 0, 0], sizes = [1, 2, 256], strides = [1, 1, 1]} : vector<8x2x256xf32> to vector<1x2x256xf32>
    %173 = vector.shape_cast %172 : vector<1x2x256xf32> to vector<2x256xf32>
    %174 = vector.extract_strided_slice %85 {offsets = [5, 0, 0], sizes = [1, 2, 256], strides = [1, 1, 1]} : vector<8x2x256xf32> to vector<1x2x256xf32>
    %175 = vector.shape_cast %174 : vector<1x2x256xf32> to vector<2x256xf32>
    %176 = vector.shape_cast %88 : vector<1x256xi1> to vector<1x256xi1>
    %177 = vector.broadcast %176 : vector<1x256xi1> to vector<2x256xi1>
    %178 = arith.select %177, %173, %175 : vector<2x256xi1>, vector<2x256xf32>
    %cst_72 = arith.constant dense<0.000000e+00> : vector<2x256xf32>
    %179 = tpu.matmul %171, %89, %cst_72 {dimension_numbers = #tpu.dot_dimension_numbers<[1], [0], [0], [1], [0, 0, 1, 1], [], []>} : vector<2x64xf32>, vector<64x256xf32>, vector<2x256xf32> -> vector<2x256xf32>
    %180 = arith.addf %178, %179 : vector<2x256xf32>
    %181 = vector.extract_strided_slice %180 {offsets = [0, 0], sizes = [2, 64], strides = [1, 1]} : vector<2x256xf32> to vector<2x64xf32>
    %cst_73 = arith.constant 5.000000e-01 : f32
    %182 = vector.broadcast %cst_73 : f32 to vector<2x64xf32>
    %183 = arith.mulf %182, %181 : vector<2x64xf32>
    %184 = math.tanh %183 : vector<2x64xf32>
    %cst_74 = arith.constant 1.000000e+00 : f32
    %185 = vector.broadcast %cst_74 : f32 to vector<2x64xf32>
    %186 = arith.addf %184, %185 : vector<2x64xf32>
    %cst_75 = arith.constant 5.000000e-01 : f32
    %187 = vector.broadcast %cst_75 : f32 to vector<2x64xf32>
    %188 = arith.mulf %187, %186 : vector<2x64xf32>
    %189 = vector.extract_strided_slice %180 {offsets = [0, 64], sizes = [2, 64], strides = [1, 1]} : vector<2x256xf32> to vector<2x64xf32>
    %cst_76 = arith.constant 5.000000e-01 : f32
    %190 = vector.broadcast %cst_76 : f32 to vector<2x64xf32>
    %191 = arith.mulf %190, %189 : vector<2x64xf32>
    %192 = math.tanh %191 : vector<2x64xf32>
    %cst_77 = arith.constant 1.000000e+00 : f32
    %193 = vector.broadcast %cst_77 : f32 to vector<2x64xf32>
    %194 = arith.addf %192, %193 : vector<2x64xf32>
    %cst_78 = arith.constant 5.000000e-01 : f32
    %195 = vector.broadcast %cst_78 : f32 to vector<2x64xf32>
    %196 = arith.mulf %195, %194 : vector<2x64xf32>
    %197 = vector.extract_strided_slice %180 {offsets = [0, 128], sizes = [2, 64], strides = [1, 1]} : vector<2x256xf32> to vector<2x64xf32>
    %198 = math.tanh %197 : vector<2x64xf32>
    %199 = vector.extract_strided_slice %180 {offsets = [0, 192], sizes = [2, 64], strides = [1, 1]} : vector<2x256xf32> to vector<2x64xf32>
    %cst_79 = arith.constant 5.000000e-01 : f32
    %200 = vector.broadcast %cst_79 : f32 to vector<2x64xf32>
    %201 = arith.mulf %200, %199 : vector<2x64xf32>
    %202 = math.tanh %201 : vector<2x64xf32>
    %cst_80 = arith.constant 1.000000e+00 : f32
    %203 = vector.broadcast %cst_80 : f32 to vector<2x64xf32>
    %204 = arith.addf %202, %203 : vector<2x64xf32>
    %cst_81 = arith.constant 5.000000e-01 : f32
    %205 = vector.broadcast %cst_81 : f32 to vector<2x64xf32>
    %206 = arith.mulf %205, %204 : vector<2x64xf32>
    %207 = arith.mulf %196, %169 : vector<2x64xf32>
    %208 = arith.mulf %188, %198 : vector<2x64xf32>
    %209 = arith.addf %207, %208 : vector<2x64xf32>
    %210 = math.tanh %209 : vector<2x64xf32>
    %211 = arith.mulf %206, %210 : vector<2x64xf32>
    %212 = vector.extract_strided_slice %85 {offsets = [3, 0, 0], sizes = [1, 2, 256], strides = [1, 1, 1]} : vector<8x2x256xf32> to vector<1x2x256xf32>
    %213 = vector.shape_cast %212 : vector<1x2x256xf32> to vector<2x256xf32>
    %214 = vector.extract_strided_slice %85 {offsets = [4, 0, 0], sizes = [1, 2, 256], strides = [1, 1, 1]} : vector<8x2x256xf32> to vector<1x2x256xf32>
    %215 = vector.shape_cast %214 : vector<1x2x256xf32> to vector<2x256xf32>
    %216 = vector.shape_cast %88 : vector<1x256xi1> to vector<1x256xi1>
    %217 = vector.broadcast %216 : vector<1x256xi1> to vector<2x256xi1>
    %218 = arith.select %217, %213, %215 : vector<2x256xi1>, vector<2x256xf32>
    %cst_82 = arith.constant dense<0.000000e+00> : vector<2x256xf32>
    %219 = tpu.matmul %211, %89, %cst_82 {dimension_numbers = #tpu.dot_dimension_numbers<[1], [0], [0], [1], [0, 0, 1, 1], [], []>} : vector<2x64xf32>, vector<64x256xf32>, vector<2x256xf32> -> vector<2x256xf32>
    %220 = arith.addf %218, %219 : vector<2x256xf32>
    %221 = vector.extract_strided_slice %220 {offsets = [0, 0], sizes = [2, 64], strides = [1, 1]} : vector<2x256xf32> to vector<2x64xf32>
    %cst_83 = arith.constant 5.000000e-01 : f32
    %222 = vector.broadcast %cst_83 : f32 to vector<2x64xf32>
    %223 = arith.mulf %222, %221 : vector<2x64xf32>
    %224 = math.tanh %223 : vector<2x64xf32>
    %cst_84 = arith.constant 1.000000e+00 : f32
    %225 = vector.broadcast %cst_84 : f32 to vector<2x64xf32>
    %226 = arith.addf %224, %225 : vector<2x64xf32>
    %cst_85 = arith.constant 5.000000e-01 : f32
    %227 = vector.broadcast %cst_85 : f32 to vector<2x64xf32>
    %228 = arith.mulf %227, %226 : vector<2x64xf32>
    %229 = vector.extract_strided_slice %220 {offsets = [0, 64], sizes = [2, 64], strides = [1, 1]} : vector<2x256xf32> to vector<2x64xf32>
    %cst_86 = arith.constant 5.000000e-01 : f32
    %230 = vector.broadcast %cst_86 : f32 to vector<2x64xf32>
    %231 = arith.mulf %230, %229 : vector<2x64xf32>
    %232 = math.tanh %231 : vector<2x64xf32>
    %cst_87 = arith.constant 1.000000e+00 : f32
    %233 = vector.broadcast %cst_87 : f32 to vector<2x64xf32>
    %234 = arith.addf %232, %233 : vector<2x64xf32>
    %cst_88 = arith.constant 5.000000e-01 : f32
    %235 = vector.broadcast %cst_88 : f32 to vector<2x64xf32>
    %236 = arith.mulf %235, %234 : vector<2x64xf32>
    %237 = vector.extract_strided_slice %220 {offsets = [0, 128], sizes = [2, 64], strides = [1, 1]} : vector<2x256xf32> to vector<2x64xf32>
    %238 = math.tanh %237 : vector<2x64xf32>
    %239 = vector.extract_strided_slice %220 {offsets = [0, 192], sizes = [2, 64], strides = [1, 1]} : vector<2x256xf32> to vector<2x64xf32>
    %cst_89 = arith.constant 5.000000e-01 : f32
    %240 = vector.broadcast %cst_89 : f32 to vector<2x64xf32>
    %241 = arith.mulf %240, %239 : vector<2x64xf32>
    %242 = math.tanh %241 : vector<2x64xf32>
    %cst_90 = arith.constant 1.000000e+00 : f32
    %243 = vector.broadcast %cst_90 : f32 to vector<2x64xf32>
    %244 = arith.addf %242, %243 : vector<2x64xf32>
    %cst_91 = arith.constant 5.000000e-01 : f32
    %245 = vector.broadcast %cst_91 : f32 to vector<2x64xf32>
    %246 = arith.mulf %245, %244 : vector<2x64xf32>
    %247 = arith.mulf %236, %209 : vector<2x64xf32>
    %248 = arith.mulf %228, %238 : vector<2x64xf32>
    %249 = arith.addf %247, %248 : vector<2x64xf32>
    %250 = math.tanh %249 : vector<2x64xf32>
    %251 = arith.mulf %246, %250 : vector<2x64xf32>
    %252 = vector.extract_strided_slice %85 {offsets = [4, 0, 0], sizes = [1, 2, 256], strides = [1, 1, 1]} : vector<8x2x256xf32> to vector<1x2x256xf32>
    %253 = vector.shape_cast %252 : vector<1x2x256xf32> to vector<2x256xf32>
    %254 = vector.extract_strided_slice %85 {offsets = [3, 0, 0], sizes = [1, 2, 256], strides = [1, 1, 1]} : vector<8x2x256xf32> to vector<1x2x256xf32>
    %255 = vector.shape_cast %254 : vector<1x2x256xf32> to vector<2x256xf32>
    %256 = vector.shape_cast %88 : vector<1x256xi1> to vector<1x256xi1>
    %257 = vector.broadcast %256 : vector<1x256xi1> to vector<2x256xi1>
    %258 = arith.select %257, %253, %255 : vector<2x256xi1>, vector<2x256xf32>
    %cst_92 = arith.constant dense<0.000000e+00> : vector<2x256xf32>
    %259 = tpu.matmul %251, %89, %cst_92 {dimension_numbers = #tpu.dot_dimension_numbers<[1], [0], [0], [1], [0, 0, 1, 1], [], []>} : vector<2x64xf32>, vector<64x256xf32>, vector<2x256xf32> -> vector<2x256xf32>
    %260 = arith.addf %258, %259 : vector<2x256xf32>
    %261 = vector.extract_strided_slice %260 {offsets = [0, 0], sizes = [2, 64], strides = [1, 1]} : vector<2x256xf32> to vector<2x64xf32>
    %cst_93 = arith.constant 5.000000e-01 : f32
    %262 = vector.broadcast %cst_93 : f32 to vector<2x64xf32>
    %263 = arith.mulf %262, %261 : vector<2x64xf32>
    %264 = math.tanh %263 : vector<2x64xf32>
    %cst_94 = arith.constant 1.000000e+00 : f32
    %265 = vector.broadcast %cst_94 : f32 to vector<2x64xf32>
    %266 = arith.addf %264, %265 : vector<2x64xf32>
    %cst_95 = arith.constant 5.000000e-01 : f32
    %267 = vector.broadcast %cst_95 : f32 to vector<2x64xf32>
    %268 = arith.mulf %267, %266 : vector<2x64xf32>
    %269 = vector.extract_strided_slice %260 {offsets = [0, 64], sizes = [2, 64], strides = [1, 1]} : vector<2x256xf32> to vector<2x64xf32>
    %cst_96 = arith.constant 5.000000e-01 : f32
    %270 = vector.broadcast %cst_96 : f32 to vector<2x64xf32>
    %271 = arith.mulf %270, %269 : vector<2x64xf32>
    %272 = math.tanh %271 : vector<2x64xf32>
    %cst_97 = arith.constant 1.000000e+00 : f32
    %273 = vector.broadcast %cst_97 : f32 to vector<2x64xf32>
    %274 = arith.addf %272, %273 : vector<2x64xf32>
    %cst_98 = arith.constant 5.000000e-01 : f32
    %275 = vector.broadcast %cst_98 : f32 to vector<2x64xf32>
    %276 = arith.mulf %275, %274 : vector<2x64xf32>
    %277 = vector.extract_strided_slice %260 {offsets = [0, 128], sizes = [2, 64], strides = [1, 1]} : vector<2x256xf32> to vector<2x64xf32>
    %278 = math.tanh %277 : vector<2x64xf32>
    %279 = vector.extract_strided_slice %260 {offsets = [0, 192], sizes = [2, 64], strides = [1, 1]} : vector<2x256xf32> to vector<2x64xf32>
    %cst_99 = arith.constant 5.000000e-01 : f32
    %280 = vector.broadcast %cst_99 : f32 to vector<2x64xf32>
    %281 = arith.mulf %280, %279 : vector<2x64xf32>
    %282 = math.tanh %281 : vector<2x64xf32>
    %cst_100 = arith.constant 1.000000e+00 : f32
    %283 = vector.broadcast %cst_100 : f32 to vector<2x64xf32>
    %284 = arith.addf %282, %283 : vector<2x64xf32>
    %cst_101 = arith.constant 5.000000e-01 : f32
    %285 = vector.broadcast %cst_101 : f32 to vector<2x64xf32>
    %286 = arith.mulf %285, %284 : vector<2x64xf32>
    %287 = arith.mulf %276, %249 : vector<2x64xf32>
    %288 = arith.mulf %268, %278 : vector<2x64xf32>
    %289 = arith.addf %287, %288 : vector<2x64xf32>
    %290 = math.tanh %289 : vector<2x64xf32>
    %291 = arith.mulf %286, %290 : vector<2x64xf32>
    %292 = vector.extract_strided_slice %85 {offsets = [5, 0, 0], sizes = [1, 2, 256], strides = [1, 1, 1]} : vector<8x2x256xf32> to vector<1x2x256xf32>
    %293 = vector.shape_cast %292 : vector<1x2x256xf32> to vector<2x256xf32>
    %294 = vector.extract_strided_slice %85 {offsets = [2, 0, 0], sizes = [1, 2, 256], strides = [1, 1, 1]} : vector<8x2x256xf32> to vector<1x2x256xf32>
    %295 = vector.shape_cast %294 : vector<1x2x256xf32> to vector<2x256xf32>
    %296 = vector.shape_cast %88 : vector<1x256xi1> to vector<1x256xi1>
    %297 = vector.broadcast %296 : vector<1x256xi1> to vector<2x256xi1>
    %298 = arith.select %297, %293, %295 : vector<2x256xi1>, vector<2x256xf32>
    %cst_102 = arith.constant dense<0.000000e+00> : vector<2x256xf32>
    %299 = tpu.matmul %291, %89, %cst_102 {dimension_numbers = #tpu.dot_dimension_numbers<[1], [0], [0], [1], [0, 0, 1, 1], [], []>} : vector<2x64xf32>, vector<64x256xf32>, vector<2x256xf32> -> vector<2x256xf32>
    %300 = arith.addf %298, %299 : vector<2x256xf32>
    %301 = vector.extract_strided_slice %300 {offsets = [0, 0], sizes = [2, 64], strides = [1, 1]} : vector<2x256xf32> to vector<2x64xf32>
    %cst_103 = arith.constant 5.000000e-01 : f32
    %302 = vector.broadcast %cst_103 : f32 to vector<2x64xf32>
    %303 = arith.mulf %302, %301 : vector<2x64xf32>
    %304 = math.tanh %303 : vector<2x64xf32>
    %cst_104 = arith.constant 1.000000e+00 : f32
    %305 = vector.broadcast %cst_104 : f32 to vector<2x64xf32>
    %306 = arith.addf %304, %305 : vector<2x64xf32>
    %cst_105 = arith.constant 5.000000e-01 : f32
    %307 = vector.broadcast %cst_105 : f32 to vector<2x64xf32>
    %308 = arith.mulf %307, %306 : vector<2x64xf32>
    %309 = vector.extract_strided_slice %300 {offsets = [0, 64], sizes = [2, 64], strides = [1, 1]} : vector<2x256xf32> to vector<2x64xf32>
    %cst_106 = arith.constant 5.000000e-01 : f32
    %310 = vector.broadcast %cst_106 : f32 to vector<2x64xf32>
    %311 = arith.mulf %310, %309 : vector<2x64xf32>
    %312 = math.tanh %311 : vector<2x64xf32>
    %cst_107 = arith.constant 1.000000e+00 : f32
    %313 = vector.broadcast %cst_107 : f32 to vector<2x64xf32>
    %314 = arith.addf %312, %313 : vector<2x64xf32>
    %cst_108 = arith.constant 5.000000e-01 : f32
    %315 = vector.broadcast %cst_108 : f32 to vector<2x64xf32>
    %316 = arith.mulf %315, %314 : vector<2x64xf32>
    %317 = vector.extract_strided_slice %300 {offsets = [0, 128], sizes = [2, 64], strides = [1, 1]} : vector<2x256xf32> to vector<2x64xf32>
    %318 = math.tanh %317 : vector<2x64xf32>
    %319 = vector.extract_strided_slice %300 {offsets = [0, 192], sizes = [2, 64], strides = [1, 1]} : vector<2x256xf32> to vector<2x64xf32>
    %cst_109 = arith.constant 5.000000e-01 : f32
    %320 = vector.broadcast %cst_109 : f32 to vector<2x64xf32>
    %321 = arith.mulf %320, %319 : vector<2x64xf32>
    %322 = math.tanh %321 : vector<2x64xf32>
    %cst_110 = arith.constant 1.000000e+00 : f32
    %323 = vector.broadcast %cst_110 : f32 to vector<2x64xf32>
    %324 = arith.addf %322, %323 : vector<2x64xf32>
    %cst_111 = arith.constant 5.000000e-01 : f32
    %325 = vector.broadcast %cst_111 : f32 to vector<2x64xf32>
    %326 = arith.mulf %325, %324 : vector<2x64xf32>
    %327 = arith.mulf %316, %289 : vector<2x64xf32>
    %328 = arith.mulf %308, %318 : vector<2x64xf32>
    %329 = arith.addf %327, %328 : vector<2x64xf32>
    %330 = math.tanh %329 : vector<2x64xf32>
    %331 = arith.mulf %326, %330 : vector<2x64xf32>
    %332 = vector.extract_strided_slice %85 {offsets = [6, 0, 0], sizes = [1, 2, 256], strides = [1, 1, 1]} : vector<8x2x256xf32> to vector<1x2x256xf32>
    %333 = vector.shape_cast %332 : vector<1x2x256xf32> to vector<2x256xf32>
    %334 = vector.extract_strided_slice %85 {offsets = [1, 0, 0], sizes = [1, 2, 256], strides = [1, 1, 1]} : vector<8x2x256xf32> to vector<1x2x256xf32>
    %335 = vector.shape_cast %334 : vector<1x2x256xf32> to vector<2x256xf32>
    %336 = vector.shape_cast %88 : vector<1x256xi1> to vector<1x256xi1>
    %337 = vector.broadcast %336 : vector<1x256xi1> to vector<2x256xi1>
    %338 = arith.select %337, %333, %335 : vector<2x256xi1>, vector<2x256xf32>
    %cst_112 = arith.constant dense<0.000000e+00> : vector<2x256xf32>
    %339 = tpu.matmul %331, %89, %cst_112 {dimension_numbers = #tpu.dot_dimension_numbers<[1], [0], [0], [1], [0, 0, 1, 1], [], []>} : vector<2x64xf32>, vector<64x256xf32>, vector<2x256xf32> -> vector<2x256xf32>
    %340 = arith.addf %338, %339 : vector<2x256xf32>
    %341 = vector.extract_strided_slice %340 {offsets = [0, 0], sizes = [2, 64], strides = [1, 1]} : vector<2x256xf32> to vector<2x64xf32>
    %cst_113 = arith.constant 5.000000e-01 : f32
    %342 = vector.broadcast %cst_113 : f32 to vector<2x64xf32>
    %343 = arith.mulf %342, %341 : vector<2x64xf32>
    %344 = math.tanh %343 : vector<2x64xf32>
    %cst_114 = arith.constant 1.000000e+00 : f32
    %345 = vector.broadcast %cst_114 : f32 to vector<2x64xf32>
    %346 = arith.addf %344, %345 : vector<2x64xf32>
    %cst_115 = arith.constant 5.000000e-01 : f32
    %347 = vector.broadcast %cst_115 : f32 to vector<2x64xf32>
    %348 = arith.mulf %347, %346 : vector<2x64xf32>
    %349 = vector.extract_strided_slice %340 {offsets = [0, 64], sizes = [2, 64], strides = [1, 1]} : vector<2x256xf32> to vector<2x64xf32>
    %cst_116 = arith.constant 5.000000e-01 : f32
    %350 = vector.broadcast %cst_116 : f32 to vector<2x64xf32>
    %351 = arith.mulf %350, %349 : vector<2x64xf32>
    %352 = math.tanh %351 : vector<2x64xf32>
    %cst_117 = arith.constant 1.000000e+00 : f32
    %353 = vector.broadcast %cst_117 : f32 to vector<2x64xf32>
    %354 = arith.addf %352, %353 : vector<2x64xf32>
    %cst_118 = arith.constant 5.000000e-01 : f32
    %355 = vector.broadcast %cst_118 : f32 to vector<2x64xf32>
    %356 = arith.mulf %355, %354 : vector<2x64xf32>
    %357 = vector.extract_strided_slice %340 {offsets = [0, 128], sizes = [2, 64], strides = [1, 1]} : vector<2x256xf32> to vector<2x64xf32>
    %358 = math.tanh %357 : vector<2x64xf32>
    %359 = vector.extract_strided_slice %340 {offsets = [0, 192], sizes = [2, 64], strides = [1, 1]} : vector<2x256xf32> to vector<2x64xf32>
    %cst_119 = arith.constant 5.000000e-01 : f32
    %360 = vector.broadcast %cst_119 : f32 to vector<2x64xf32>
    %361 = arith.mulf %360, %359 : vector<2x64xf32>
    %362 = math.tanh %361 : vector<2x64xf32>
    %cst_120 = arith.constant 1.000000e+00 : f32
    %363 = vector.broadcast %cst_120 : f32 to vector<2x64xf32>
    %364 = arith.addf %362, %363 : vector<2x64xf32>
    %cst_121 = arith.constant 5.000000e-01 : f32
    %365 = vector.broadcast %cst_121 : f32 to vector<2x64xf32>
    %366 = arith.mulf %365, %364 : vector<2x64xf32>
    %367 = arith.mulf %356, %329 : vector<2x64xf32>
    %368 = arith.mulf %348, %358 : vector<2x64xf32>
    %369 = arith.addf %367, %368 : vector<2x64xf32>
    %370 = math.tanh %369 : vector<2x64xf32>
    %371 = arith.mulf %366, %370 : vector<2x64xf32>
    %372 = vector.extract_strided_slice %85 {offsets = [7, 0, 0], sizes = [1, 2, 256], strides = [1, 1, 1]} : vector<8x2x256xf32> to vector<1x2x256xf32>
    %373 = vector.shape_cast %372 : vector<1x2x256xf32> to vector<2x256xf32>
    %374 = vector.extract_strided_slice %85 {offsets = [0, 0, 0], sizes = [1, 2, 256], strides = [1, 1, 1]} : vector<8x2x256xf32> to vector<1x2x256xf32>
    %375 = vector.shape_cast %374 : vector<1x2x256xf32> to vector<2x256xf32>
    %376 = vector.shape_cast %88 : vector<1x256xi1> to vector<1x256xi1>
    %377 = vector.broadcast %376 : vector<1x256xi1> to vector<2x256xi1>
    %378 = arith.select %377, %373, %375 : vector<2x256xi1>, vector<2x256xf32>
    %cst_122 = arith.constant dense<0.000000e+00> : vector<2x256xf32>
    %379 = tpu.matmul %371, %89, %cst_122 {dimension_numbers = #tpu.dot_dimension_numbers<[1], [0], [0], [1], [0, 0, 1, 1], [], []>} : vector<2x64xf32>, vector<64x256xf32>, vector<2x256xf32> -> vector<2x256xf32>
    %380 = arith.addf %378, %379 : vector<2x256xf32>
    %381 = vector.extract_strided_slice %380 {offsets = [0, 0], sizes = [2, 64], strides = [1, 1]} : vector<2x256xf32> to vector<2x64xf32>
    %cst_123 = arith.constant 5.000000e-01 : f32
    %382 = vector.broadcast %cst_123 : f32 to vector<2x64xf32>
    %383 = arith.mulf %382, %381 : vector<2x64xf32>
    %384 = math.tanh %383 : vector<2x64xf32>
    %cst_124 = arith.constant 1.000000e+00 : f32
    %385 = vector.broadcast %cst_124 : f32 to vector<2x64xf32>
    %386 = arith.addf %384, %385 : vector<2x64xf32>
    %cst_125 = arith.constant 5.000000e-01 : f32
    %387 = vector.broadcast %cst_125 : f32 to vector<2x64xf32>
    %388 = arith.mulf %387, %386 : vector<2x64xf32>
    %389 = vector.extract_strided_slice %380 {offsets = [0, 64], sizes = [2, 64], strides = [1, 1]} : vector<2x256xf32> to vector<2x64xf32>
    %cst_126 = arith.constant 5.000000e-01 : f32
    %390 = vector.broadcast %cst_126 : f32 to vector<2x64xf32>
    %391 = arith.mulf %390, %389 : vector<2x64xf32>
    %392 = math.tanh %391 : vector<2x64xf32>
    %cst_127 = arith.constant 1.000000e+00 : f32
    %393 = vector.broadcast %cst_127 : f32 to vector<2x64xf32>
    %394 = arith.addf %392, %393 : vector<2x64xf32>
    %cst_128 = arith.constant 5.000000e-01 : f32
    %395 = vector.broadcast %cst_128 : f32 to vector<2x64xf32>
    %396 = arith.mulf %395, %394 : vector<2x64xf32>
    %397 = vector.extract_strided_slice %380 {offsets = [0, 128], sizes = [2, 64], strides = [1, 1]} : vector<2x256xf32> to vector<2x64xf32>
    %398 = math.tanh %397 : vector<2x64xf32>
    %399 = vector.extract_strided_slice %380 {offsets = [0, 192], sizes = [2, 64], strides = [1, 1]} : vector<2x256xf32> to vector<2x64xf32>
    %cst_129 = arith.constant 5.000000e-01 : f32
    %400 = vector.broadcast %cst_129 : f32 to vector<2x64xf32>
    %401 = arith.mulf %400, %399 : vector<2x64xf32>
    %402 = math.tanh %401 : vector<2x64xf32>
    %cst_130 = arith.constant 1.000000e+00 : f32
    %403 = vector.broadcast %cst_130 : f32 to vector<2x64xf32>
    %404 = arith.addf %402, %403 : vector<2x64xf32>
    %cst_131 = arith.constant 5.000000e-01 : f32
    %405 = vector.broadcast %cst_131 : f32 to vector<2x64xf32>
    %406 = arith.mulf %405, %404 : vector<2x64xf32>
    %407 = arith.mulf %396, %369 : vector<2x64xf32>
    %408 = arith.mulf %388, %398 : vector<2x64xf32>
    %409 = arith.addf %407, %408 : vector<2x64xf32>
    %410 = math.tanh %409 : vector<2x64xf32>
    %411 = arith.mulf %406, %410 : vector<2x64xf32>
    %c0_132 = arith.constant 0 : index
    %c0_133 = arith.constant 0 : index
    %412 = vector.load %arg11[%c0_132, %c0_133] : memref<64x32xf32, #tpu.memory_space<vmem>>, vector<64x32xf32>
    %cst_134 = arith.constant dense<0.000000e+00> : vector<2x32xf32>
    %413 = tpu.matmul %411, %412, %cst_134 {dimension_numbers = #tpu.dot_dimension_numbers<[1], [0], [0], [1], [0, 0, 1, 1], [], []>} : vector<2x64xf32>, vector<64x32xf32>, vector<2x32xf32> -> vector<2x32xf32>
    %c0_135 = arith.constant 0 : index
    %c0_136 = arith.constant 0 : index
    %414 = vector.load %arg12[%c0_135, %c0_136] : memref<1x32xf32, #tpu.memory_space<vmem>>, vector<1x32xf32>
    %415 = vector.broadcast %414 : vector<1x32xf32> to vector<2x32xf32>
    %416 = arith.addf %413, %415 : vector<2x32xf32>
    %cst_137 = arith.constant 0.000000e+00 : f32
    %417 = vector.broadcast %cst_137 : f32 to vector<2x32xf32>
    %418 = arith.maximumf %416, %417 : vector<2x32xf32>
    %c0_138 = arith.constant 0 : index
    %c0_139 = arith.constant 0 : index
    %419 = vector.load %arg13[%c0_138, %c0_139] : memref<32x1xf32, #tpu.memory_space<vmem>>, vector<32x1xf32>
    %cst_140 = arith.constant dense<0.000000e+00> : vector<2x1xf32>
    %420 = tpu.matmul %418, %419, %cst_140 {dimension_numbers = #tpu.dot_dimension_numbers<[1], [0], [0], [1], [0, 0, 1, 1], [], []>} : vector<2x32xf32>, vector<32x1xf32>, vector<2x1xf32> -> vector<2x1xf32>
    %c0_141 = arith.constant 0 : index
    %c0_142 = arith.constant 0 : index
    %421 = vector.load %arg14[%c0_141, %c0_142] : memref<1x1xf32, #tpu.memory_space<vmem>>, vector<1x1xf32>
    %422 = vector.broadcast %421 : vector<1x1xf32> to vector<2x1xf32>
    %423 = arith.addf %420, %422 : vector<2x1xf32>
    %c0_143 = arith.constant 0 : index
    %c0_144 = arith.constant 0 : index
    %424 = vector.load %arg15[%c0_143, %c0_144] : memref<2x1xf32, #tpu.memory_space<vmem>>, vector<2x1xf32>
    tpu.vector_store %arg15[%c0_143, %c0_144], %423 {strides = array<i32>} : memref<2x1xf32, #tpu.memory_space<vmem>>, vector<2x1xf32>,
    return
  }
  func.func @transform_0(%arg0: i32) -> (i32, i32, i32) {
    %c0_i32 = arith.constant 0 : i32
    %c0_i32_0 = arith.constant 0 : i32
    %c0_i32_1 = arith.constant 0 : i32
    %c0_i32_2 = arith.constant 0 : i32
    return %c0_i32, %c0_i32_0, %c0_i32_1 : i32, i32, i32
  }
  func.func @transform_1(%arg0: i32) -> (i32, i32, i32) {
    %c0_i32 = arith.constant 0 : i32
    %c0_i32_0 = arith.constant 0 : i32
    %c0_i32_1 = arith.constant 0 : i32
    %c0_i32_2 = arith.constant 0 : i32
    return %c0_i32, %c0_i32_0, %c0_i32_1 : i32, i32, i32
  }
  func.func @transform_2(%arg0: i32) -> (i32, i32) {
    %c0_i32 = arith.constant 0 : i32
    %c0_i32_0 = arith.constant 0 : i32
    %c0_i32_1 = arith.constant 0 : i32
    return %c0_i32, %c0_i32_0 : i32, i32
  }
  func.func @transform_3(%arg0: i32) -> (i32, i32, i32) {
    %c0_i32 = arith.constant 0 : i32
    %c0_i32_0 = arith.constant 0 : i32
    %c0_i32_1 = arith.constant 0 : i32
    %c0_i32_2 = arith.constant 0 : i32
    return %c0_i32, %c0_i32_0, %c0_i32_1 : i32, i32, i32
  }
  func.func @transform_4(%arg0: i32) -> (i32, i32) {
    %c0_i32 = arith.constant 0 : i32
    %c0_i32_0 = arith.constant 0 : i32
    %c0_i32_1 = arith.constant 0 : i32
    return %c0_i32, %c0_i32_0 : i32, i32
  }
  func.func @transform_5(%arg0: i32) -> (i32, i32) {
    %c0_i32 = arith.constant 0 : i32
    %c0_i32_0 = arith.constant 0 : i32
    %c0_i32_1 = arith.constant 0 : i32
    return %c0_i32, %c0_i32_0 : i32, i32
  }
  func.func @transform_6(%arg0: i32) -> (i32, i32) {
    %c0_i32 = arith.constant 0 : i32
    %c0_i32_0 = arith.constant 0 : i32
    %c0_i32_1 = arith.constant 0 : i32
    return %c0_i32, %c0_i32_0 : i32, i32
  }
  func.func @transform_7(%arg0: i32) -> (i32, i32) {
    %c0_i32 = arith.constant 0 : i32
    %c0_i32_0 = arith.constant 0 : i32
    %c0_i32_1 = arith.constant 0 : i32
    return %c0_i32, %c0_i32_0 : i32, i32
  }
  func.func @transform_8(%arg0: i32) -> (i32, i32) {
    %c0_i32 = arith.constant 0 : i32
    %c0_i32_0 = arith.constant 0 : i32
    %c0_i32_1 = arith.constant 0 : i32
    return %c0_i32, %c0_i32_0 : i32, i32
  }
  func.func @transform_9(%arg0: i32) -> (i32, i32) {
    %c0_i32 = arith.constant 0 : i32
    %c0_i32_0 = arith.constant 0 : i32
    %c0_i32_1 = arith.constant 0 : i32
    return %c0_i32, %c0_i32_0 : i32, i32
  }
  func.func @transform_10(%arg0: i32) -> (i32, i32) {
    %c0_i32 = arith.constant 0 : i32
    %c0_i32_0 = arith.constant 0 : i32
    %c0_i32_1 = arith.constant 0 : i32
    return %c0_i32, %c0_i32_0 : i32, i32
  }
  func.func @transform_11(%arg0: i32) -> (i32, i32) {
    %c0_i32 = arith.constant 0 : i32
    %c0_i32_0 = arith.constant 0 : i32
    %c0_i32_1 = arith.constant 0 : i32
    return %c0_i32, %c0_i32_0 : i32, i32
  }
  func.func @transform_12(%arg0: i32) -> (i32, i32) {
    %c0_i32 = arith.constant 0 : i32
    %c0_i32_0 = arith.constant 0 : i32
    %c0_i32_1 = arith.constant 0 : i32
    return %c0_i32, %c0_i32_0 : i32, i32
  }
  func.func @transform_13(%arg0: i32) -> (i32, i32) {
    %c0_i32 = arith.constant 0 : i32
    %c0_i32_0 = arith.constant 0 : i32
    %c0_i32_1 = arith.constant 0 : i32
    return %c0_i32, %c0_i32_0 : i32, i32
  }
  func.func @transform_14(%arg0: i32) -> (i32, i32) {
    %c0_i32 = arith.constant 0 : i32
    %c0_i32_0 = arith.constant 0 : i32
    %c0_i32_1 = arith.constant 0 : i32
    return %c0_i32, %c0_i32_0 : i32, i32
  }
}

</mosaic_0001>

<llo_original>
// kernel: cnn_lstm_forward.1
$region0: #{cnn_lstm_forward.1}
  #allocation0 [shape = 'u32[]', space=smem, size = 0x4, offset = 0x4, fixed_abs, tag = 'smem constant byte address 0x4 - core index']
  #allocation1 [shape = 'u32[144,128]{1,0:T(1,128)}', space=vmem, size = 0x12000, scoped, tag = 'internal scratch']
  #allocation2 [shape = 'f32[1,1]{1,0:T(1,128)S(1)}', space=vmem, size = 0x200, scoped, tag = 'scoped memory for cnn_lstm_forward.1']
  %s0 = inlined_call_operand.vmem [shape: f32[16,18,64], index: 0, kind: input, shape index: {}]
  %s1 = inlined_call_operand.vmem [shape: f32[3,64,256], index: 1, kind: input, shape index: {}]
  %s2 = inlined_call_operand.vmem [shape: f32[1,256], index: 2, kind: input, shape index: {}]
  %s3 = inlined_call_operand.vmem [shape: f32[3,256,256], index: 3, kind: input, shape index: {}]
  %s4 = inlined_call_operand.vmem [shape: f32[1,256], index: 4, kind: input, shape index: {}]
  %s5 = inlined_call_operand.vmem [shape: f32[256,32], index: 5, kind: input, shape index: {}]
  %s6 = inlined_call_operand.vmem [shape: f32[32,256], index: 6, kind: input, shape index: {}]
  %s7 = inlined_call_operand.vmem [shape: f32[64,256], index: 7, kind: input, shape index: {}]
  %s8 = inlined_call_operand.vmem [shape: f32[1,256], index: 8, kind: input, shape index: {}]
  %s9 = inlined_call_operand.vmem [shape: f32[1,256], index: 9, kind: input, shape index: {}]
  %s10 = inlined_call_operand.vmem [shape: f32[64,32], index: 10, kind: input, shape index: {}]
  %s11 = inlined_call_operand.vmem [shape: f32[1,32], index: 11, kind: input, shape index: {}]
  %s12 = inlined_call_operand.vmem [shape: f32[32,1], index: 12, kind: input, shape index: {}]
  %s13 = inlined_call_operand.<no memory space> [shape: f32[1,1], index: 13, kind: input, shape index: {}]
  %s14 = inlined_call_operand.vmem [shape: f32[2,1], index: 14, kind: output, shape index: {}]
  %s15 = sld [smem:[#allocation0]]
  $region66: #{cnn_lstm_forward.1} parent=0
    _
  %s17 = ssub.s32 1, %s15
  %s18 = scalar_select 0, %s17, %s15
  %v19 = vstv %s13
  %20 = vst [vmem:[#allocation2] sm:$0x1] %v19
  // Predicated region
  $region2: #{cnn_lstm_forward.1} parent=0 // pred_check
    _
  $region3: #{cnn_lstm_forward.1} parent=0 // pred_check_branch
    %22 = sbr.rel (0) target = $region5
  $region4: #{cnn_lstm_forward.1} parent=0 // pred_region
    _
  $region5: #{cnn_lstm_forward.1} parent=0 // pred_fallthru
    _
  // Predicated region
  $region6: #{cnn_lstm_forward.1} parent=0 // pred_check
    _
  $region7: #{cnn_lstm_forward.1} parent=0 // pred_check_branch
    %24 = sbr.rel (0) target = $region9
  $region8: #{cnn_lstm_forward.1} parent=0 // pred_region
    _
  $region9: #{cnn_lstm_forward.1} parent=0 // pred_fallthru
    _
  // Predicated region
  $region10: #{cnn_lstm_forward.1} parent=0 // pred_check
    _
  $region11: #{cnn_lstm_forward.1} parent=0 // pred_check_branch
    %26 = sbr.rel (0) target = $region13
  $region12: #{cnn_lstm_forward.1} parent=0 // pred_region
    _
  $region13: #{cnn_lstm_forward.1} parent=0 // pred_fallthru
    _
  // Predicated region
  $region14: #{cnn_lstm_forward.1} parent=0 // pred_check
    _
  $region15: #{cnn_lstm_forward.1} parent=0 // pred_check_branch
    %28 = sbr.rel (0) target = $region17
  $region16: #{cnn_lstm_forward.1} parent=0 // pred_region
    _
  $region17: #{cnn_lstm_forward.1} parent=0 // pred_fallthru
    _
  // Predicated region
  $region18: #{cnn_lstm_forward.1} parent=0 // pred_check
    _
  $region19: #{cnn_lstm_forward.1} parent=0 // pred_check_branch
    %30 = sbr.rel (0) target = $region21
  $region20: #{cnn_lstm_forward.1} parent=0 // pred_region
    _
  $region21: #{cnn_lstm_forward.1} parent=0 // pred_fallthru
    _
  // Predicated region
  $region22: #{cnn_lstm_forward.1} parent=0 // pred_check
    _
  $region23: #{cnn_lstm_forward.1} parent=0 // pred_check_branch
    %32 = sbr.rel (0) target = $region25
  $region24: #{cnn_lstm_forward.1} parent=0 // pred_region
    _
  $region25: #{cnn_lstm_forward.1} parent=0 // pred_fallthru
    _
  // Predicated region
  $region26: #{cnn_lstm_forward.1} parent=0 // pred_check
    _
  $region27: #{cnn_lstm_forward.1} parent=0 // pred_check_branch
    %34 = sbr.rel (0) target = $region29
  $region28: #{cnn_lstm_forward.1} parent=0 // pred_region
    _
  $region29: #{cnn_lstm_forward.1} parent=0 // pred_fallthru
    _
  // Predicated region
  $region30: #{cnn_lstm_forward.1} parent=0 // pred_check
    _
  $region31: #{cnn_lstm_forward.1} parent=0 // pred_check_branch
    %36 = sbr.rel (0) target = $region33
  $region32: #{cnn_lstm_forward.1} parent=0 // pred_region
    _
  $region33: #{cnn_lstm_forward.1} parent=0 // pred_fallthru
    _
  // Predicated region
  $region34: #{cnn_lstm_forward.1} parent=0 // pred_check
    _
  $region35: #{cnn_lstm_forward.1} parent=0 // pred_check_branch
    %38 = sbr.rel (0) target = $region37
  $region36: #{cnn_lstm_forward.1} parent=0 // pred_region
    _
  $region37: #{cnn_lstm_forward.1} parent=0 // pred_fallthru
    _
  // Predicated region
  $region38: #{cnn_lstm_forward.1} parent=0 // pred_check
    _
  $region39: #{cnn_lstm_forward.1} parent=0 // pred_check_branch
    %40 = sbr.rel (0) target = $region41
  $region40: #{cnn_lstm_forward.1} parent=0 // pred_region
    _
  $region41: #{cnn_lstm_forward.1} parent=0 // pred_fallthru
    _
  // Predicated region
  $region42: #{cnn_lstm_forward.1} parent=0 // pred_check
    _
  $region43: #{cnn_lstm_forward.1} parent=0 // pred_check_branch
    %42 = sbr.rel (0) target = $region45
  $region44: #{cnn_lstm_forward.1} parent=0 // pred_region
    _
  $region45: #{cnn_lstm_forward.1} parent=0 // pred_fallthru
    _
  // Predicated region
  $region46: #{cnn_lstm_forward.1} parent=0 // pred_check
    _
  $region47: #{cnn_lstm_forward.1} parent=0 // pred_check_branch
    %44 = sbr.rel (0) target = $region49
  $region48: #{cnn_lstm_forward.1} parent=0 // pred_region
    _
  $region49: #{cnn_lstm_forward.1} parent=0 // pred_fallthru
    _
  // Predicated region
  $region50: #{cnn_lstm_forward.1} parent=0 // pred_check
    _
  $region51: #{cnn_lstm_forward.1} parent=0 // pred_check_branch
    %46 = sbr.rel (0) target = $region53
  $region52: #{cnn_lstm_forward.1} parent=0 // pred_region
    _
  $region53: #{cnn_lstm_forward.1} parent=0 // pred_fallthru
    _
  // Predicated region
  $region54: #{cnn_lstm_forward.1} parent=0 // pred_check
    _
  $region55: #{cnn_lstm_forward.1} parent=0 // pred_check_branch
    %48 = sbr.rel (0) target = $region57
  $region56: #{cnn_lstm_forward.1} parent=0 // pred_region
    _
  $region57: #{cnn_lstm_forward.1} parent=0 // pred_fallthru
    _
  %v49 = vld [vmem:[%s0] sm:$0xff]
  %v50 = vld [vmem:[%s0 + $0x8] sm:$0xff]
  %v51 = vld [vmem:[%s0 + $0x10] sm:$0x3]
  %v52 = vld [vmem:[%s0 + $0x18] sm:$0xff]
  %v53 = vld [vmem:[%s0 + $0x20] sm:$0xff]
  %v54 = vld [vmem:[%s0 + $0x28] sm:$0x3]
  %v55 = vld [vmem:[%s0 + $0x30] sm:$0xff]
  %v56 = vld [vmem:[%s0 + $0x38] sm:$0xff]
  %v57 = vld [vmem:[%s0 + $0x40] sm:$0x3]
  %v58 = vld [vmem:[%s0 + $0x48] sm:$0xff]
  %v59 = vld [vmem:[%s0 + $0x50] sm:$0xff]
  %v60 = vld [vmem:[%s0 + $0x58] sm:$0x3]
  %v61 = vld [vmem:[%s0 + $0x60] sm:$0xff]
  %v62 = vld [vmem:[%s0 + $0x68] sm:$0xff]
  %v63 = vld [vmem:[%s0 + $0x70] sm:$0x3]
  %v64 = vld [vmem:[%s0 + $0x78] sm:$0xff]
  %v65 = vld [vmem:[%s0 + $0x80] sm:$0xff]
  %v66 = vld [vmem:[%s0 + $0x88] sm:$0x3]
  %v67 = vld [vmem:[%s0 + $0x90] sm:$0xff]
  %v68 = vld [vmem:[%s0 + $0x98] sm:$0xff]
  %v69 = vld [vmem:[%s0 + $0xa0] sm:$0x3]
  %v70 = vld [vmem:[%s0 + $0xa8] sm:$0xff]
  %v71 = vld [vmem:[%s0 + $0xb0] sm:$0xff]
  %v72 = vld [vmem:[%s0 + $0xb8] sm:$0x3]
  %v73 = vld [vmem:[%s0 + $0xc0] sm:$0xff]
  %v74 = vld [vmem:[%s0 + $0xc8] sm:$0xff]
  %v75 = vld [vmem:[%s0 + $0xd0] sm:$0x3]
  %v76 = vld [vmem:[%s0 + $0xd8] sm:$0xff]
  %v77 = vld [vmem:[%s0 + $0xe0] sm:$0xff]
  %v78 = vld [vmem:[%s0 + $0xe8] sm:$0x3]
  %v79 = vld [vmem:[%s0 + $0xf0] sm:$0xff]
  %v80 = vld [vmem:[%s0 + $0xf8] sm:$0xff]
  %v81 = vld [vmem:[%s0 + $0x100] sm:$0x3]
  %v82 = vld [vmem:[%s0 + $0x108] sm:$0xff]
  %v83 = vld [vmem:[%s0 + $0x110] sm:$0xff]
  %v84 = vld [vmem:[%s0 + $0x118] sm:$0x3]
  %v85 = vld [vmem:[%s0 + $0x120] sm:$0xff]
  %v86 = vld [vmem:[%s0 + $0x128] sm:$0xff]
  %v87 = vld [vmem:[%s0 + $0x130] sm:$0x3]
  %v88 = vld [vmem:[%s0 + $0x138] sm:$0xff]
  %v89 = vld [vmem:[%s0 + $0x140] sm:$0xff]
  %v90 = vld [vmem:[%s0 + $0x148] sm:$0x3]
  %v91 = vld [vmem:[%s0 + $0x150] sm:$0xff]
  %v92 = vld [vmem:[%s0 + $0x158] sm:$0xff]
  %v93 = vld [vmem:[%s0 + $0x160] sm:$0x3]
  %v94 = vld [vmem:[%s0 + $0x168] sm:$0xff]
  %v95 = vld [vmem:[%s0 + $0x170] sm:$0xff]
  %v96 = vld [vmem:[%s0 + $0x178] sm:$0x3]
  %v97 = vld [vmem:[%s1] sm:$0xff]
  %v98 = vld [vmem:[%s1 + $0x8] sm:$0xff]
  %v99 = vld [vmem:[%s1 + $0x10] sm:$0xff]
  %v100 = vld [vmem:[%s1 + $0x18] sm:$0xff]
  %v101 = vld [vmem:[%s1 + $0x20] sm:$0xff]
  %v102 = vld [vmem:[%s1 + $0x28] sm:$0xff]
  %v103 = vld [vmem:[%s1 + $0x30] sm:$0xff]
  %v104 = vld [vmem:[%s1 + $0x38] sm:$0xff]
  %v105 = vld [vmem:[%s1 + $0x40] sm:$0xff]
  %v106 = vld [vmem:[%s1 + $0x48] sm:$0xff]
  %v107 = vld [vmem:[%s1 + $0x50] sm:$0xff]
  %v108 = vld [vmem:[%s1 + $0x58] sm:$0xff]
  %v109 = vld [vmem:[%s1 + $0x60] sm:$0xff]
  %v110 = vld [vmem:[%s1 + $0x68] sm:$0xff]
  %v111 = vld [vmem:[%s1 + $0x70] sm:$0xff]
  %v112 = vld [vmem:[%s1 + $0x78] sm:$0xff]
  %vm161 = vcmask 1046528
  %v162 = vrot.slane %v49, 1
  %v163 = vrot.slane %v50, 1
  %v164 = vsel %vm161, %v162, %v163
  %v165 = vrot.slane %v51, 1
  %v166 = vsel %vm161, %v163, %v165
  %v167 = vrot.slane %v52, 1
  %v168 = vrot.slane %v53, 1
  %v169 = vsel %vm161, %v167, %v168
  %v170 = vrot.slane %v54, 1
  %v171 = vsel %vm161, %v168, %v170
  %v172 = vrot.slane %v55, 1
  %v173 = vrot.slane %v56, 1
  %v174 = vsel %vm161, %v172, %v173
  %v175 = vrot.slane %v57, 1
  %v176 = vsel %vm161, %v173, %v175
  %v177 = vrot.slane %v58, 1
  %v178 = vrot.slane %v59, 1
  %v179 = vsel %vm161, %v177, %v178
  %v180 = vrot.slane %v60, 1
  %v181 = vsel %vm161, %v178, %v180
  %v182 = vrot.slane %v61, 1
  %v183 = vrot.slane %v62, 1
  %v184 = vsel %vm161, %v182, %v183
  %v185 = vrot.slane %v63, 1
  %v186 = vsel %vm161, %v183, %v185
  %v187 = vrot.slane %v64, 1
  %v188 = vrot.slane %v65, 1
  %v189 = vsel %vm161, %v187, %v188
  %v190 = vrot.slane %v66, 1
  %v191 = vsel %vm161, %v188, %v190
  %v192 = vrot.slane %v67, 1
  %v193 = vrot.slane %v68, 1
  %v194 = vsel %vm161, %v192, %v193
  %v195 = vrot.slane %v69, 1
  %v196 = vsel %vm161, %v193, %v195
  %v197 = vrot.slane %v70, 1
  %v198 = vrot.slane %v71, 1
  %v199 = vsel %vm161, %v197, %v198
  %v200 = vrot.slane %v72, 1
  %v201 = vsel %vm161, %v198, %v200
  %v202 = vrot.slane %v73, 1
  %v203 = vrot.slane %v74, 1
  %v204 = vsel %vm161, %v202, %v203
  %v205 = vrot.slane %v75, 1
  %v206 = vsel %vm161, %v203, %v205
  %v207 = vrot.slane %v76, 1
  %v208 = vrot.slane %v77, 1
  %v209 = vsel %vm161, %v207, %v208
  %v210 = vrot.slane %v78, 1
  %v211 = vsel %vm161, %v208, %v210
  %v212 = vrot.slane %v79, 1
  %v213 = vrot.slane %v80, 1
  %v214 = vsel %vm161, %v212, %v213
  %v215 = vrot.slane %v81, 1
  %v216 = vsel %vm161, %v213, %v215
  %v217 = vrot.slane %v82, 1
  %v218 = vrot.slane %v83, 1
  %v219 = vsel %vm161, %v217, %v218
  %v220 = vrot.slane %v84, 1
  %v221 = vsel %vm161, %v218, %v220
  %v222 = vrot.slane %v85, 1
  %v223 = vrot.slane %v86, 1
  %v224 = vsel %vm161, %v222, %v223
  %v225 = vrot.slane %v87, 1
  %v226 = vsel %vm161, %v223, %v225
  %v227 = vrot.slane %v88, 1
  %v228 = vrot.slane %v89, 1
  %v229 = vsel %vm161, %v227, %v228
  %v230 = vrot.slane %v90, 1
  %v231 = vsel %vm161, %v228, %v230
  %v232 = vrot.slane %v91, 1
  %v233 = vrot.slane %v92, 1
  %v234 = vsel %vm161, %v232, %v233
  %v235 = vrot.slane %v93, 1
  %v236 = vsel %vm161, %v233, %v235
  %v237 = vrot.slane %v94, 1
  %v238 = vrot.slane %v95, 1
  %v239 = vsel %vm161, %v237, %v238
  %v240 = vrot.slane %v96, 1
  %v241 = vsel %vm161, %v238, %v240
  %s242 = scalar_lea.vmem %s1, 128
  %v243 = vld [vmem:[%s242] sm:$0xff]
  %v244 = vld [vmem:[%s242 + $0x8] sm:$0xff]
  %v245 = vld [vmem:[%s242 + $0x10] sm:$0xff]
  %v246 = vld [vmem:[%s242 + $0x18] sm:$0xff]
  %v247 = vld [vmem:[%s242 + $0x20] sm:$0xff]
  %v248 = vld [vmem:[%s242 + $0x28] sm:$0xff]
  %v249 = vld [vmem:[%s242 + $0x30] sm:$0xff]
  %v250 = vld [vmem:[%s242 + $0x38] sm:$0xff]
  %v251 = vld [vmem:[%s242 + $0x40] sm:$0xff]
  %v252 = vld [vmem:[%s242 + $0x48] sm:$0xff]
  %v253 = vld [vmem:[%s242 + $0x50] sm:$0xff]
  %v254 = vld [vmem:[%s242 + $0x58] sm:$0xff]
  %v255 = vld [vmem:[%s242 + $0x60] sm:$0xff]
  %v256 = vld [vmem:[%s242 + $0x68] sm:$0xff]
  %v257 = vld [vmem:[%s242 + $0x70] sm:$0xff]
  %v258 = vld [vmem:[%s242 + $0x78] sm:$0xff]
  %vm259 = vcmask 523264
  %v260 = vsel %vm259, %v164, 0
  %v262 = vsel %vm259, %v166, 0
  %v264 = vsel %vm259, %v169, 0
  %v266 = vsel %vm259, %v171, 0
  %v268 = vsel %vm259, %v174, 0
  %v270 = vsel %vm259, %v176, 0
  %v272 = vsel %vm259, %v179, 0
  %v274 = vsel %vm259, %v181, 0
  %v276 = vsel %vm259, %v184, 0
  %v278 = vsel %vm259, %v186, 0
  %v280 = vsel %vm259, %v189, 0
  %v282 = vsel %vm259, %v191, 0
  %v284 = vsel %vm259, %v194, 0
  %v286 = vsel %vm259, %v196, 0
  %v288 = vsel %vm259, %v199, 0
  %v290 = vsel %vm259, %v201, 0
  %v292 = vsel %vm259, %v204, 0
  %v294 = vsel %vm259, %v206, 0
  %v296 = vsel %vm259, %v209, 0
  %v298 = vsel %vm259, %v211, 0
  %v300 = vsel %vm259, %v214, 0
  %v302 = vsel %vm259, %v216, 0
  %v304 = vsel %vm259, %v219, 0
  %v306 = vsel %vm259, %v221, 0
  %v308 = vsel %vm259, %v224, 0
  %v310 = vsel %vm259, %v226, 0
  %v312 = vsel %vm259, %v229, 0
  %v314 = vsel %vm259, %v231, 0
  %v316 = vsel %vm259, %v234, 0
  %v318 = vsel %vm259, %v236, 0
  %v320 = vsel %vm259, %v239, 0
  %v322 = vsel %vm259, %v241, 0
  %324 = vmatprep.subr.mxu0 %v244
  %325 = vmatpush1.msra.mxu0 %v243
  %326 = vmatprep.subr.mxu0 %v246
  %327 = vmatpush1.msra.mxu0 %v245
  %328 = vmatprep.subr.mxu0 %v248
  %329 = vmatpush1.msra.mxu0 %v247
  %330 = vmatprep.subr.mxu0 %v250
  %331 = vmatpush1.msra.mxu0 %v249
  %332 = vmatprep.subr.mxu0 %v252
  %333 = vmatpush1.msra.mxu0 %v251
  %334 = vmatprep.subr.mxu0 %v254
  %335 = vmatpush1.msra.mxu0 %v253
  %336 = vmatprep.subr.mxu0 %v256
  %337 = vmatpush1.msra.mxu0 %v255
  %338 = vmatprep.subr.mxu0 %v258
  %339 = vmatpush1.msra.mxu0 %v257
  %340 = vmatprep.subr.mxu0 0.0
  %341 = vmatpush1.msra.mxu0 0.0
  %342 = vmatprep.subr.mxu0 0.0
  %343 = vmatpush1.msra.mxu0 0.0
  %344 = vmatprep.subr.mxu0 0.0
  %345 = vmatpush1.msra.mxu0 0.0
  %346 = vmatprep.subr.mxu0 0.0
  %347 = vmatpush1.msra.mxu0 0.0
  %348 = vmatprep.subr.mxu0 0.0
  %349 = vmatpush1.msra.mxu0 0.0
  %350 = vmatprep.subr.mxu0 0.0
  %351 = vmatpush1.msra.mxu0 0.0
  %352 = vmatprep.subr.mxu0 0.0
  %353 = vmatpush1.msra.mxu0 0.0
  %354 = vmatprep.subr.mxu0 0.0
  %355 = vmatpush1.msra.mxu0 0.0
  %356 = vmatprep.subr.mxu0 0.0
  %357 = vmatpush1.msra.mxu0 0.0
  %358 = vmatprep.subr.mxu0 0.0
  %359 = vmatpush1.msra.mxu0 0.0
  %360 = vmatprep.subr.mxu0 0.0
  %361 = vmatpush1.msra.mxu0 0.0
  %362 = vmatprep.subr.mxu0 0.0
  %363 = vmatpush1.msra.mxu0 0.0
  %364 = vmatprep.subr.mxu0 0.0
  %365 = vmatpush1.msra.mxu0 0.0
  %366 = vmatprep.subr.mxu0 0.0
  %367 = vmatpush1.msra.mxu0 0.0
  %368 = vmatprep.subr.mxu0 0.0
  %369 = vmatpush1.msra.mxu0 0.0
  %370 = vmatprep.subr.mxu0 0.0
  %371 = vmatpush1.msra.mxu0 0.0
  %372 = vmatprep.subr.mxu0 0.0
  %373 = vmatpush1.msra.mxu0 0.0
  %374 = vmatprep.subr.mxu0 0.0
  %375 = vmatpush1.msra.mxu0 0.0
  %376 = vmatprep.subr.mxu0 0.0
  %377 = vmatpush1.msra.mxu0 0.0
  %378 = vmatprep.subr.mxu0 0.0
  %379 = vmatpush1.msra.mxu0 0.0
  %380 = vmatprep.subr.mxu0 0.0
  %381 = vmatpush1.msra.mxu0 0.0
  %382 = vmatprep.subr.mxu0 0.0
  %383 = vmatpush1.msra.mxu0 0.0
  %384 = vmatprep.subr.mxu0 0.0
  %385 = vmatpush1.msra.mxu0 0.0
  %386 = vmatprep.subr.mxu0 0.0
  %387 = vmatpush1.msra.mxu0 0.0
  %388 = vmatprep.mubr.f32.mxu0 0.0
  %389 = vmatmul.mubr.f32.gmra.mrb[0].mxu0 %v260
  %v390 = vpop.f32.mrb[0].mxu0
  %v391 = vadd.f32 0.0, %v390
  %v392 = vpop.f32.mrb[0].mxu0
  %v393 = vadd.f32 0.0, %v392
  %394 = vmatprep.mubr.f32.mxu0 0.0
  %395 = vmatmul.mubr.f32.gmra.mrb[0].mxu0 %v262
  %v396 = vpop.f32.mrb[0].mxu0
  %v397 = vadd.f32 0.0, %v396
  %v398 = vpop.f32.mrb[0].mxu0
  %v399 = vadd.f32 0.0, %v398
  %400 = vmatprep.mubr.f32.mxu0 0.0
  %401 = vmatmul.mubr.f32.gmra.mrb[0].mxu0 %v264
  %v402 = vpop.f32.mrb[0].mxu0
  %v403 = vadd.f32 0.0, %v402
  %v404 = vpop.f32.mrb[0].mxu0
  %v405 = vadd.f32 0.0, %v404
  %406 = vmatprep.mubr.f32.mxu0 0.0
  %407 = vmatmul.mubr.f32.gmra.mrb[0].mxu0 %v266
  %v408 = vpop.f32.mrb[0].mxu0
  %v409 = vadd.f32 0.0, %v408
  %v410 = vpop.f32.mrb[0].mxu0
  %v411 = vadd.f32 0.0, %v410
  %412 = vmatprep.mubr.f32.mxu0 0.0
  %413 = vmatmul.mubr.f32.gmra.mrb[0].mxu0 %v268
  %v414 = vpop.f32.mrb[0].mxu0
  %v415 = vadd.f32 0.0, %v414
  %v416 = vpop.f32.mrb[0].mxu0
  %v417 = vadd.f32 0.0, %v416
  %418 = vmatprep.mubr.f32.mxu0 0.0
  %419 = vmatmul.mubr.f32.gmra.mrb[0].mxu0 %v270
  %v420 = vpop.f32.mrb[0].mxu0
  %v421 = vadd.f32 0.0, %v420
  %v422 = vpop.f32.mrb[0].mxu0
  %v423 = vadd.f32 0.0, %v422
  %424 = vmatprep.mubr.f32.mxu0 0.0
  %425 = vmatmul.mubr.f32.gmra.mrb[0].mxu0 %v272
  %v426 = vpop.f32.mrb[0].mxu0
  %v427 = vadd.f32 0.0, %v426
  %v428 = vpop.f32.mrb[0].mxu0
  %v429 = vadd.f32 0.0, %v428
  %430 = vmatprep.mubr.f32.mxu0 0.0
  %431 = vmatmul.mubr.f32.gmra.mrb[0].mxu0 %v274
  %v432 = vpop.f32.mrb[0].mxu0
  %v433 = vadd.f32 0.0, %v432
  %v434 = vpop.f32.mrb[0].mxu0
  %v435 = vadd.f32 0.0, %v434
  %436 = vmatprep.mubr.f32.mxu0 0.0
  %437 = vmatmul.mubr.f32.gmra.mrb[0].mxu0 %v276
  %v438 = vpop.f32.mrb[0].mxu0
  %v439 = vadd.f32 0.0, %v438
  %v440 = vpop.f32.mrb[0].mxu0
  %v441 = vadd.f32 0.0, %v440
  %442 = vmatprep.mubr.f32.mxu0 0.0
  %443 = vmatmul.mubr.f32.gmra.mrb[0].mxu0 %v278
  %v444 = vpop.f32.mrb[0].mxu0
  %v445 = vadd.f32 0.0, %v444
  %v446 = vpop.f32.mrb[0].mxu0
  %v447 = vadd.f32 0.0, %v446
  %448 = vmatprep.mubr.f32.mxu0 0.0
  %449 = vmatmul.mubr.f32.gmra.mrb[0].mxu0 %v280
  %v450 = vpop.f32.mrb[0].mxu0
  %v451 = vadd.f32 0.0, %v450
  %v452 = vpop.f32.mrb[0].mxu0
  %v453 = vadd.f32 0.0, %v452
  %454 = vmatprep.mubr.f32.mxu0 0.0
  %455 = vmatmul.mubr.f32.gmra.mrb[0].mxu0 %v282
  %v456 = vpop.f32.mrb[0].mxu0
  %v457 = vadd.f32 0.0, %v456
  %v458 = vpop.f32.mrb[0].mxu0
  %v459 = vadd.f32 0.0, %v458
  %460 = vmatprep.mubr.f32.mxu0 0.0
  %461 = vmatmul.mubr.f32.gmra.mrb[0].mxu0 %v284
  %v462 = vpop.f32.mrb[0].mxu0
  %v463 = vadd.f32 0.0, %v462
  %v464 = vpop.f32.mrb[0].mxu0
  %v465 = vadd.f32 0.0, %v464
  %466 = vmatprep.mubr.f32.mxu0 0.0
  %467 = vmatmul.mubr.f32.gmra.mrb[0].mxu0 %v286
  %v468 = vpop.f32.mrb[0].mxu0
  %v469 = vadd.f32 0.0, %v468
  %v470 = vpop.f32.mrb[0].mxu0
  %v471 = vadd.f32 0.0, %v470
  %472 = vmatprep.mubr.f32.mxu0 0.0
  %473 = vmatmul.mubr.f32.gmra.mrb[0].mxu0 %v288
  %v474 = vpop.f32.mrb[0].mxu0
  %v475 = vadd.f32 0.0, %v474
  %v476 = vpop.f32.mrb[0].mxu0
  %v477 = vadd.f32 0.0, %v476
  %478 = vmatprep.mubr.f32.mxu0 0.0
  %479 = vmatmul.mubr.f32.gmra.mrb[0].mxu0 %v290
  %v480 = vpop.f32.mrb[0].mxu0
  %v481 = vadd.f32 0.0, %v480
  %v482 = vpop.f32.mrb[0].mxu0
  %v483 = vadd.f32 0.0, %v482
  %484 = vmatprep.mubr.f32.mxu0 0.0
  %485 = vmatmul.mubr.f32.gmra.mrb[0].mxu0 %v292
  %v486 = vpop.f32.mrb[0].mxu0
  %v487 = vadd.f32 0.0, %v486
  %v488 = vpop.f32.mrb[0].mxu0
  %v489 = vadd.f32 0.0, %v488
  %490 = vmatprep.mubr.f32.mxu0 0.0
  %491 = vmatmul.mubr.f32.gmra.mrb[0].mxu0 %v294
  %v492 = vpop.f32.mrb[0].mxu0
  %v493 = vadd.f32 0.0, %v492
  %v494 = vpop.f32.mrb[0].mxu0
  %v495 = vadd.f32 0.0, %v494
  %496 = vmatprep.mubr.f32.mxu0 0.0
  %497 = vmatmul.mubr.f32.gmra.mrb[0].mxu0 %v296
  %v498 = vpop.f32.mrb[0].mxu0
  %v499 = vadd.f32 0.0, %v498
  %v500 = vpop.f32.mrb[0].mxu0
  %v501 = vadd.f32 0.0, %v500
  %502 = vmatprep.mubr.f32.mxu0 0.0
  %503 = vmatmul.mubr.f32.gmra.mrb[0].mxu0 %v298
  %v504 = vpop.f32.mrb[0].mxu0
  %v505 = vadd.f32 0.0, %v504
  %v506 = vpop.f32.mrb[0].mxu0
  %v507 = vadd.f32 0.0, %v506
  %508 = vmatprep.mubr.f32.mxu0 0.0
  %509 = vmatmul.mubr.f32.gmra.mrb[0].mxu0 %v300
  %v510 = vpop.f32.mrb[0].mxu0
  %v511 = vadd.f32 0.0, %v510
  %v512 = vpop.f32.mrb[0].mxu0
  %v513 = vadd.f32 0.0, %v512
  %514 = vmatprep.mubr.f32.mxu0 0.0
  %515 = vmatmul.mubr.f32.gmra.mrb[0].mxu0 %v302
  %v516 = vpop.f32.mrb[0].mxu0
  %v517 = vadd.f32 0.0, %v516
  %v518 = vpop.f32.mrb[0].mxu0
  %v519 = vadd.f32 0.0, %v518
  %520 = vmatprep.mubr.f32.mxu0 0.0
  %521 = vmatmul.mubr.f32.gmra.mrb[0].mxu0 %v304
  %v522 = vpop.f32.mrb[0].mxu0
  %v523 = vadd.f32 0.0, %v522
  %v524 = vpop.f32.mrb[0].mxu0
  %v525 = vadd.f32 0.0, %v524
  %526 = vmatprep.mubr.f32.mxu0 0.0
  %527 = vmatmul.mubr.f32.gmra.mrb[0].mxu0 %v306
  %v528 = vpop.f32.mrb[0].mxu0
  %v529 = vadd.f32 0.0, %v528
  %v530 = vpop.f32.mrb[0].mxu0
  %v531 = vadd.f32 0.0, %v530
  %532 = vmatprep.mubr.f32.mxu0 0.0
  %533 = vmatmul.mubr.f32.gmra.mrb[0].mxu0 %v308
  %v534 = vpop.f32.mrb[0].mxu0
  %v535 = vadd.f32 0.0, %v534
  %v536 = vpop.f32.mrb[0].mxu0
  %v537 = vadd.f32 0.0, %v536
  %538 = vmatprep.mubr.f32.mxu0 0.0
  %539 = vmatmul.mubr.f32.gmra.mrb[0].mxu0 %v310
  %v540 = vpop.f32.mrb[0].mxu0
  %v541 = vadd.f32 0.0, %v540
  %v542 = vpop.f32.mrb[0].mxu0
  %v543 = vadd.f32 0.0, %v542
  %544 = vmatprep.mubr.f32.mxu0 0.0
  %545 = vmatmul.mubr.f32.gmra.mrb[0].mxu0 %v312
  %v546 = vpop.f32.mrb[0].mxu0
  %v547 = vadd.f32 0.0, %v546
  %v548 = vpop.f32.mrb[0].mxu0
  %v549 = vadd.f32 0.0, %v548
  %550 = vmatprep.mubr.f32.mxu0 0.0
  %551 = vmatmul.mubr.f32.gmra.mrb[0].mxu0 %v314
  %v552 = vpop.f32.mrb[0].mxu0
  %v553 = vadd.f32 0.0, %v552
  %v554 = vpop.f32.mrb[0].mxu0
  %v555 = vadd.f32 0.0, %v554
  %556 = vmatprep.mubr.f32.mxu0 0.0
  %557 = vmatmul.mubr.f32.gmra.mrb[0].mxu0 %v316
  %v558 = vpop.f32.mrb[0].mxu0
  %v559 = vadd.f32 0.0, %v558
  %v560 = vpop.f32.mrb[0].mxu0
  %v561 = vadd.f32 0.0, %v560
  %562 = vmatprep.mubr.f32.mxu0 0.0
  %563 = vmatmul.mubr.f32.gmra.mrb[0].mxu0 %v318
  %v564 = vpop.f32.mrb[0].mxu0
  %v565 = vadd.f32 0.0, %v564
  %v566 = vpop.f32.mrb[0].mxu0
  %v567 = vadd.f32 0.0, %v566
  %568 = vmatprep.mubr.f32.mxu0 0.0
  %569 = vmatmul.mubr.f32.gmra.mrb[0].mxu0 %v320
  %v570 = vpop.f32.mrb[0].mxu0
  %v571 = vadd.f32 0.0, %v570
  %v572 = vpop.f32.mrb[0].mxu0
  %v573 = vadd.f32 0.0, %v572
  %574 = vmatprep.mubr.f32.mxu0 0.0
  %575 = vmatmul.mubr.f32.gmra.mrb[0].mxu0 %v322
  %v576 = vpop.f32.mrb[0].mxu0
  %v577 = vadd.f32 0.0, %v576
  %v578 = vpop.f32.mrb[0].mxu0
  %v579 = vadd.f32 0.0, %v578
  %580 = vdwg.mxu0
  %v581 = vsel %vm259, %v49, 0
  %v583 = vsel %vm259, %v50, 0
  %v585 = vsel %vm259, %v52, 0
  %v587 = vsel %vm259, %v53, 0
  %v589 = vsel %vm259, %v55, 0
  %v591 = vsel %vm259, %v56, 0
  %v593 = vsel %vm259, %v58, 0
  %v595 = vsel %vm259, %v59, 0
  %v597 = vsel %vm259, %v61, 0
  %v599 = vsel %vm259, %v62, 0
  %v601 = vsel %vm259, %v64, 0
  %v603 = vsel %vm259, %v65, 0
  %v605 = vsel %vm259, %v67, 0
  %v607 = vsel %vm259, %v68, 0
  %v609 = vsel %vm259, %v70, 0
  %v611 = vsel %vm259, %v71, 0
  %v613 = vsel %vm259, %v73, 0
  %v615 = vsel %vm259, %v74, 0
  %v617 = vsel %vm259, %v76, 0
  %v619 = vsel %vm259, %v77, 0
  %v621 = vsel %vm259, %v79, 0
  %v623 = vsel %vm259, %v80, 0
  %v625 = vsel %vm259, %v82, 0
  %v627 = vsel %vm259, %v83, 0
  %v629 = vsel %vm259, %v85, 0
  %v631 = vsel %vm259, %v86, 0
  %v633 = vsel %vm259, %v88, 0
  %v635 = vsel %vm259, %v89, 0
  %v637 = vsel %vm259, %v91, 0
  %v639 = vsel %vm259, %v92, 0
  %v641 = vsel %vm259, %v94, 0
  %v643 = vsel %vm259, %v95, 0
  %645 = vmatprep.subr.mxu0 %v98
  %646 = vmatpush1.msra.mxu0 %v97
  %647 = vmatprep.subr.mxu0 %v100
  %648 = vmatpush1.msra.mxu0 %v99
  %649 = vmatprep.subr.mxu0 %v102
  %650 = vmatpush1.msra.mxu0 %v101
  %651 = vmatprep.subr.mxu0 %v104
  %652 = vmatpush1.msra.mxu0 %v103
  %653 = vmatprep.subr.mxu0 %v106
  %654 = vmatpush1.msra.mxu0 %v105
  %655 = vmatprep.subr.mxu0 %v108
  %656 = vmatpush1.msra.mxu0 %v107
  %657 = vmatprep.subr.mxu0 %v110
  %658 = vmatpush1.msra.mxu0 %v109
  %659 = vmatprep.subr.mxu0 %v112
  %660 = vmatpush1.msra.mxu0 %v111
  %661 = vmatprep.subr.mxu0 0.0
  %662 = vmatpush1.msra.mxu0 0.0
  %663 = vmatprep.subr.mxu0 0.0
  %664 = vmatpush1.msra.mxu0 0.0
  %665 = vmatprep.subr.mxu0 0.0
  %666 = vmatpush1.msra.mxu0 0.0
  %667 = vmatprep.subr.mxu0 0.0
  %668 = vmatpush1.msra.mxu0 0.0
  %669 = vmatprep.subr.mxu0 0.0
  %670 = vmatpush1.msra.mxu0 0.0
  %671 = vmatprep.subr.mxu0 0.0
  %672 = vmatpush1.msra.mxu0 0.0
  %673 = vmatprep.subr.mxu0 0.0
  %674 = vmatpush1.msra.mxu0 0.0
  %675 = vmatprep.subr.mxu0 0.0
  %676 = vmatpush1.msra.mxu0 0.0
  %677 = vmatprep.subr.mxu0 0.0
  %678 = vmatpush1.msra.mxu0 0.0
  %679 = vmatprep.subr.mxu0 0.0
  %680 = vmatpush1.msra.mxu0 0.0
  %681 = vmatprep.subr.mxu0 0.0
  %682 = vmatpush1.msra.mxu0 0.0
  %683 = vmatprep.subr.mxu0 0.0
  %684 = vmatpush1.msra.mxu0 0.0
  %685 = vmatprep.subr.mxu0 0.0
  %686 = vmatpush1.msra.mxu0 0.0
  %687 = vmatprep.subr.mxu0 0.0
  %688 = vmatpush1.msra.mxu0 0.0
  %689 = vmatprep.subr.mxu0 0.0
  %690 = vmatpush1.msra.mxu0 0.0
  %691 = vmatprep.subr.mxu0 0.0
  %692 = vmatpush1.msra.mxu0 0.0
  %693 = vmatprep.subr.mxu0 0.0
  %694 = vmatpush1.msra.mxu0 0.0
  %695 = vmatprep.subr.mxu0 0.0
  %696 = vmatpush1.msra.mxu0 0.0
  %697 = vmatprep.subr.mxu0 0.0
  %698 = vmatpush1.msra.mxu0 0.0
  %699 = vmatprep.subr.mxu0 0.0
  %700 = vmatpush1.msra.mxu0 0.0
  %701 = vmatprep.subr.mxu0 0.0
  %702 = vmatpush1.msra.mxu0 0.0
  %703 = vmatprep.subr.mxu0 0.0
  %704 = vmatpush1.msra.mxu0 0.0
  %705 = vmatprep.subr.mxu0 0.0
  %706 = vmatpush1.msra.mxu0 0.0
  %707 = vmatprep.subr.mxu0 0.0
  %708 = vmatpush1.msra.mxu0 0.0
  %709 = vmatprep.mubr.f32.mxu0 0.0
  %710 = vmatmul.mubr.f32.gmra.mrb[0].mxu0 %v581
  %v711 = vpop.f32.mrb[0].mxu0
  %v712 = vadd.f32 %v391, %v711
  %v713 = vpop.f32.mrb[0].mxu0
  %v714 = vadd.f32 %v393, %v713
  %715 = vmatprep.mubr.f32.mxu0 0.0
  %716 = vmatmul.mubr.f32.gmra.mrb[0].mxu0 %v583
  %v717 = vpop.f32.mrb[0].mxu0
  %v718 = vadd.f32 %v397, %v717
  %v719 = vpop.f32.mrb[0].mxu0
  %v720 = vadd.f32 %v399, %v719
  %721 = vmatprep.mubr.f32.mxu0 0.0
  %722 = vmatmul.mubr.f32.gmra.mrb[0].mxu0 %v585
  %v723 = vpop.f32.mrb[0].mxu0
  %v724 = vadd.f32 %v403, %v723
  %v725 = vpop.f32.mrb[0].mxu0
  %v726 = vadd.f32 %v405, %v725
  %727 = vmatprep.mubr.f32.mxu0 0.0
  %728 = vmatmul.mubr.f32.gmra.mrb[0].mxu0 %v587
  %v729 = vpop.f32.mrb[0].mxu0
  %v730 = vadd.f32 %v409, %v729
  %v731 = vpop.f32.mrb[0].mxu0
  %v732 = vadd.f32 %v411, %v731
  %733 = vmatprep.mubr.f32.mxu0 0.0
  %734 = vmatmul.mubr.f32.gmra.mrb[0].mxu0 %v589
  %v735 = vpop.f32.mrb[0].mxu0
  %v736 = vadd.f32 %v415, %v735
  %v737 = vpop.f32.mrb[0].mxu0
  %v738 = vadd.f32 %v417, %v737
  %739 = vmatprep.mubr.f32.mxu0 0.0
  %740 = vmatmul.mubr.f32.gmra.mrb[0].mxu0 %v591
  %v741 = vpop.f32.mrb[0].mxu0
  %v742 = vadd.f32 %v421, %v741
  %v743 = vpop.f32.mrb[0].mxu0
  %v744 = vadd.f32 %v423, %v743
  %745 = vmatprep.mubr.f32.mxu0 0.0
  %746 = vmatmul.mubr.f32.gmra.mrb[0].mxu0 %v593
  %v747 = vpop.f32.mrb[0].mxu0
  %v748 = vadd.f32 %v427, %v747
  %v749 = vpop.f32.mrb[0].mxu0
  %v750 = vadd.f32 %v429, %v749
  %751 = vmatprep.mubr.f32.mxu0 0.0
  %752 = vmatmul.mubr.f32.gmra.mrb[0].mxu0 %v595
  %v753 = vpop.f32.mrb[0].mxu0
  %v754 = vadd.f32 %v433, %v753
  %v755 = vpop.f32.mrb[0].mxu0
  %v756 = vadd.f32 %v435, %v755
  %757 = vmatprep.mubr.f32.mxu0 0.0
  %758 = vmatmul.mubr.f32.gmra.mrb[0].mxu0 %v597
  %v759 = vpop.f32.mrb[0].mxu0
  %v760 = vadd.f32 %v439, %v759
  %v761 = vpop.f32.mrb[0].mxu0
  %v762 = vadd.f32 %v441, %v761
  %763 = vmatprep.mubr.f32.mxu0 0.0
  %764 = vmatmul.mubr.f32.gmra.mrb[0].mxu0 %v599
  %v765 = vpop.f32.mrb[0].mxu0
  %v766 = vadd.f32 %v445, %v765
  %v767 = vpop.f32.mrb[0].mxu0
  %v768 = vadd.f32 %v447, %v767
  %769 = vmatprep.mubr.f32.mxu0 0.0
  %770 = vmatmul.mubr.f32.gmra.mrb[0].mxu0 %v601
  %v771 = vpop.f32.mrb[0].mxu0
  %v772 = vadd.f32 %v451, %v771
  %v773 = vpop.f32.mrb[0].mxu0
  %v774 = vadd.f32 %v453, %v773
  %775 = vmatprep.mubr.f32.mxu0 0.0
  %776 = vmatmul.mubr.f32.gmra.mrb[0].mxu0 %v603
  %v777 = vpop.f32.mrb[0].mxu0
  %v778 = vadd.f32 %v457, %v777
  %v779 = vpop.f32.mrb[0].mxu0
  %v780 = vadd.f32 %v459, %v779
  %781 = vmatprep.mubr.f32.mxu0 0.0
  %782 = vmatmul.mubr.f32.gmra.mrb[0].mxu0 %v605
  %v783 = vpop.f32.mrb[0].mxu0
  %v784 = vadd.f32 %v463, %v783
  %v785 = vpop.f32.mrb[0].mxu0
  %v786 = vadd.f32 %v465, %v785
  %787 = vmatprep.mubr.f32.mxu0 0.0
  %788 = vmatmul.mubr.f32.gmra.mrb[0].mxu0 %v607
  %v789 = vpop.f32.mrb[0].mxu0
  %v790 = vadd.f32 %v469, %v789
  %v791 = vpop.f32.mrb[0].mxu0
  %v792 = vadd.f32 %v471, %v791
  %793 = vmatprep.mubr.f32.mxu0 0.0
  %794 = vmatmul.mubr.f32.gmra.mrb[0].mxu0 %v609
  %v795 = vpop.f32.mrb[0].mxu0
  %v796 = vadd.f32 %v475, %v795
  %v797 = vpop.f32.mrb[0].mxu0
  %v798 = vadd.f32 %v477, %v797
  %799 = vmatprep.mubr.f32.mxu0 0.0
  %800 = vmatmul.mubr.f32.gmra.mrb[0].mxu0 %v611
  %v801 = vpop.f32.mrb[0].mxu0
  %v802 = vadd.f32 %v481, %v801
  %v803 = vpop.f32.mrb[0].mxu0
  %v804 = vadd.f32 %v483, %v803
  %805 = vmatprep.mubr.f32.mxu0 0.0
  %806 = vmatmul.mubr.f32.gmra.mrb[0].mxu0 %v613
  %v807 = vpop.f32.mrb[0].mxu0
  %v808 = vadd.f32 %v487, %v807
  %v809 = vpop.f32.mrb[0].mxu0
  %v810 = vadd.f32 %v489, %v809
  %811 = vmatprep.mubr.f32.mxu0 0.0
  %812 = vmatmul.mubr.f32.gmra.mrb[0].mxu0 %v615
  %v813 = vpop.f32.mrb[0].mxu0
  %v814 = vadd.f32 %v493, %v813
  %v815 = vpop.f32.mrb[0].mxu0
  %v816 = vadd.f32 %v495, %v815
  %817 = vmatprep.mubr.f32.mxu0 0.0
  %818 = vmatmul.mubr.f32.gmra.mrb[0].mxu0 %v617
  %v819 = vpop.f32.mrb[0].mxu0
  %v820 = vadd.f32 %v499, %v819
  %v821 = vpop.f32.mrb[0].mxu0
  %v822 = vadd.f32 %v501, %v821
  %823 = vmatprep.mubr.f32.mxu0 0.0
  %824 = vmatmul.mubr.f32.gmra.mrb[0].mxu0 %v619
  %v825 = vpop.f32.mrb[0].mxu0
  %v826 = vadd.f32 %v505, %v825
  %v827 = vpop.f32.mrb[0].mxu0
  %v828 = vadd.f32 %v507, %v827
  %829 = vmatprep.mubr.f32.mxu0 0.0
  %830 = vmatmul.mubr.f32.gmra.mrb[0].mxu0 %v621
  %v831 = vpop.f32.mrb[0].mxu0
  %v832 = vadd.f32 %v511, %v831
  %v833 = vpop.f32.mrb[0].mxu0
  %v834 = vadd.f32 %v513, %v833
  %835 = vmatprep.mubr.f32.mxu0 0.0
  %836 = vmatmul.mubr.f32.gmra.mrb[0].mxu0 %v623
  %v837 = vpop.f32.mrb[0].mxu0
  %v838 = vadd.f32 %v517, %v837
  %v839 = vpop.f32.mrb[0].mxu0
  %v840 = vadd.f32 %v519, %v839
  %841 = vmatprep.mubr.f32.mxu0 0.0
  %842 = vmatmul.mubr.f32.gmra.mrb[0].mxu0 %v625
  %v843 = vpop.f32.mrb[0].mxu0
  %v844 = vadd.f32 %v523, %v843
  %v845 = vpop.f32.mrb[0].mxu0
  %v846 = vadd.f32 %v525, %v845
  %847 = vmatprep.mubr.f32.mxu0 0.0
  %848 = vmatmul.mubr.f32.gmra.mrb[0].mxu0 %v627
  %v849 = vpop.f32.mrb[0].mxu0
  %v850 = vadd.f32 %v529, %v849
  %v851 = vpop.f32.mrb[0].mxu0
  %v852 = vadd.f32 %v531, %v851
  %853 = vmatprep.mubr.f32.mxu0 0.0
  %854 = vmatmul.mubr.f32.gmra.mrb[0].mxu0 %v629
  %v855 = vpop.f32.mrb[0].mxu0
  %v856 = vadd.f32 %v535, %v855
  %v857 = vpop.f32.mrb[0].mxu0
  %v858 = vadd.f32 %v537, %v857
  %859 = vmatprep.mubr.f32.mxu0 0.0
  %860 = vmatmul.mubr.f32.gmra.mrb[0].mxu0 %v631
  %v861 = vpop.f32.mrb[0].mxu0
  %v862 = vadd.f32 %v541, %v861
  %v863 = vpop.f32.mrb[0].mxu0
  %v864 = vadd.f32 %v543, %v863
  %865 = vmatprep.mubr.f32.mxu0 0.0
  %866 = vmatmul.mubr.f32.gmra.mrb[0].mxu0 %v633
  %v867 = vpop.f32.mrb[0].mxu0
  %v868 = vadd.f32 %v547, %v867
  %v869 = vpop.f32.mrb[0].mxu0
  %v870 = vadd.f32 %v549, %v869
  %871 = vmatprep.mubr.f32.mxu0 0.0
  %872 = vmatmul.mubr.f32.gmra.mrb[0].mxu0 %v635
  %v873 = vpop.f32.mrb[0].mxu0
  %v874 = vadd.f32 %v553, %v873
  %v875 = vpop.f32.mrb[0].mxu0
  %v876 = vadd.f32 %v555, %v875
  %877 = vmatprep.mubr.f32.mxu0 0.0
  %878 = vmatmul.mubr.f32.gmra.mrb[0].mxu0 %v637
  %v879 = vpop.f32.mrb[0].mxu0
  %v880 = vadd.f32 %v559, %v879
  %v881 = vpop.f32.mrb[0].mxu0
  %v882 = vadd.f32 %v561, %v881
  %883 = vmatprep.mubr.f32.mxu0 0.0
  %884 = vmatmul.mubr.f32.gmra.mrb[0].mxu0 %v639
  %v885 = vpop.f32.mrb[0].mxu0
  %v886 = vadd.f32 %v565, %v885
  %v887 = vpop.f32.mrb[0].mxu0
  %v888 = vadd.f32 %v567, %v887
  %889 = vmatprep.mubr.f32.mxu0 0.0
  %890 = vmatmul.mubr.f32.gmra.mrb[0].mxu0 %v641
  %v891 = vpop.f32.mrb[0].mxu0
  %v892 = vadd.f32 %v571, %v891
  %v893 = vpop.f32.mrb[0].mxu0
  %v894 = vadd.f32 %v573, %v893
  %895 = vmatprep.mubr.f32.mxu0 0.0
  %896 = vmatmul.mubr.f32.gmra.mrb[0].mxu0 %v643
  %v897 = vpop.f32.mrb[0].mxu0
  %v898 = vadd.f32 %v577, %v897
  %v899 = vpop.f32.mrb[0].mxu0
  %v900 = vadd.f32 %v579, %v899
  %901 = vdwg.mxu0
  %vm902 = vcmask 1045504
  %v903 = vrot.slane %v49, 2
  %v904 = vrot.slane %v50, 2
  %v905 = vsel %vm902, %v903, %v904
  %v906 = vrot.slane %v51, 2
  %v907 = vsel %vm902, %v904, %v906
  %v908 = vrot.slane %v52, 2
  %v909 = vrot.slane %v53, 2
  %v910 = vsel %vm902, %v908, %v909
  %v911 = vrot.slane %v54, 2
  %v912 = vsel %vm902, %v909, %v911
  %v913 = vrot.slane %v55, 2
  %v914 = vrot.slane %v56, 2
  %v915 = vsel %vm902, %v913, %v914
  %v916 = vrot.slane %v57, 2
  %v917 = vsel %vm902, %v914, %v916
  %v918 = vrot.slane %v58, 2
  %v919 = vrot.slane %v59, 2
  %v920 = vsel %vm902, %v918, %v919
  %v921 = vrot.slane %v60, 2
  %v922 = vsel %vm902, %v919, %v921
  %v923 = vrot.slane %v61, 2
  %v924 = vrot.slane %v62, 2
  %v925 = vsel %vm902, %v923, %v924
  %v926 = vrot.slane %v63, 2
  %v927 = vsel %vm902, %v924, %v926
  %v928 = vrot.slane %v64, 2
  %v929 = vrot.slane %v65, 2
  %v930 = vsel %vm902, %v928, %v929
  %v931 = vrot.slane %v66, 2
  %v932 = vsel %vm902, %v929, %v931
  %v933 = vrot.slane %v67, 2
  %v934 = vrot.slane %v68, 2
  %v935 = vsel %vm902, %v933, %v934
  %v936 = vrot.slane %v69, 2
  %v937 = vsel %vm902, %v934, %v936
  %v938 = vrot.slane %v70, 2
  %v939 = vrot.slane %v71, 2
  %v940 = vsel %vm902, %v938, %v939
  %v941 = vrot.slane %v72, 2
  %v942 = vsel %vm902, %v939, %v941
  %v943 = vrot.slane %v73, 2
  %v944 = vrot.slane %v74, 2
  %v945 = vsel %vm902, %v943, %v944
  %v946 = vrot.slane %v75, 2
  %v947 = vsel %vm902, %v944, %v946
  %v948 = vrot.slane %v76, 2
  %v949 = vrot.slane %v77, 2
  %v950 = vsel %vm902, %v948, %v949
  %v951 = vrot.slane %v78, 2
  %v952 = vsel %vm902, %v949, %v951
  %v953 = vrot.slane %v79, 2
  %v954 = vrot.slane %v80, 2
  %v955 = vsel %vm902, %v953, %v954
  %v956 = vrot.slane %v81, 2
  %v957 = vsel %vm902, %v954, %v956
  %v958 = vrot.slane %v82, 2
  %v959 = vrot.slane %v83, 2
  %v960 = vsel %vm902, %v958, %v959
  %v961 = vrot.slane %v84, 2
  %v962 = vsel %vm902, %v959, %v961
  %v963 = vrot.slane %v85, 2
  %v964 = vrot.slane %v86, 2
  %v965 = vsel %vm902, %v963, %v964
  %v966 = vrot.slane %v87, 2
  %v967 = vsel %vm902, %v964, %v966
  %v968 = vrot.slane %v88, 2
  %v969 = vrot.slane %v89, 2
  %v970 = vsel %vm902, %v968, %v969
  %v971 = vrot.slane %v90, 2
  %v972 = vsel %vm902, %v969, %v971
  %v973 = vrot.slane %v91, 2
  %v974 = vrot.slane %v92, 2
  %v975 = vsel %vm902, %v973, %v974
  %v976 = vrot.slane %v93, 2
  %v977 = vsel %vm902, %v974, %v976
  %v978 = vrot.slane %v94, 2
  %v979 = vrot.slane %v95, 2
  %v980 = vsel %vm902, %v978, %v979
  %v981 = vrot.slane %v96, 2
  %v982 = vsel %vm902, %v979, %v981
  %s983 = scalar_lea.vmem %s1, 256
  %v984 = vld [vmem:[%s983] sm:$0xff]
  %v985 = vld [vmem:[%s983 + $0x8] sm:$0xff]
  %v986 = vld [vmem:[%s983 + $0x10] sm:$0xff]
  %v987 = vld [vmem:[%s983 + $0x18] sm:$0xff]
  %v988 = vld [vmem:[%s983 + $0x20] sm:$0xff]
  %v989 = vld [vmem:[%s983 + $0x28] sm:$0xff]
  %v990 = vld [vmem:[%s983 + $0x30] sm:$0xff]
  %v991 = vld [vmem:[%s983 + $0x38] sm:$0xff]
  %v992 = vld [vmem:[%s983 + $0x40] sm:$0xff]
  %v993 = vld [vmem:[%s983 + $0x48] sm:$0xff]
  %v994 = vld [vmem:[%s983 + $0x50] sm:$0xff]
  %v995 = vld [vmem:[%s983 + $0x58] sm:$0xff]
  %v996 = vld [vmem:[%s983 + $0x60] sm:$0xff]
  %v997 = vld [vmem:[%s983 + $0x68] sm:$0xff]
  %v998 = vld [vmem:[%s983 + $0x70] sm:$0xff]
  %v999 = vld [vmem:[%s983 + $0x78] sm:$0xff]
  %v1000 = vsel %vm259, %v905, 0
  %v1002 = vsel %vm259, %v907, 0
  %v1004 = vsel %vm259, %v910, 0
  %v1006 = vsel %vm259, %v912, 0
  %v1008 = vsel %vm259, %v915, 0
  %v1010 = vsel %vm259, %v917, 0
  %v1012 = vsel %vm259, %v920, 0
  %v1014 = vsel %vm259, %v922, 0
  %v1016 = vsel %vm259, %v925, 0
  %v1018 = vsel %vm259, %v927, 0
  %v1020 = vsel %vm259, %v930, 0
  %v1022 = vsel %vm259, %v932, 0
  %v1024 = vsel %vm259, %v935, 0
  %v1026 = vsel %vm259, %v937, 0
  %v1028 = vsel %vm259, %v940, 0
  %v1030 = vsel %vm259, %v942, 0
  %v1032 = vsel %vm259, %v945, 0
  %v1034 = vsel %vm259, %v947, 0
  %v1036 = vsel %vm259, %v950, 0
  %v1038 = vsel %vm259, %v952, 0
  %v1040 = vsel %vm259, %v955, 0
  %v1042 = vsel %vm259, %v957, 0
  %v1044 = vsel %vm259, %v960, 0
  %v1046 = vsel %vm259, %v962, 0
  %v1048 = vsel %vm259, %v965, 0
  %v1050 = vsel %vm259, %v967, 0
  %v1052 = vsel %vm259, %v970, 0
  %v1054 = vsel %vm259, %v972, 0
  %v1056 = vsel %vm259, %v975, 0
  %v1058 = vsel %vm259, %v977, 0
  %v1060 = vsel %vm259, %v980, 0
  %v1062 = vsel %vm259, %v982, 0
  %1064 = vmatprep.subr.mxu0 %v985
  %1065 = vmatpush1.msra.mxu0 %v984
  %1066 = vmatprep.subr.mxu0 %v987
  %1067 = vmatpush1.msra.mxu0 %v986
  %1068 = vmatprep.subr.mxu0 %v989
  %1069 = vmatpush1.msra.mxu0 %v988
  %1070 = vmatprep.subr.mxu0 %v991
  %1071 = vmatpush1.msra.mxu0 %v990
  %1072 = vmatprep.subr.mxu0 %v993
  %1073 = vmatpush1.msra.mxu0 %v992
  %1074 = vmatprep.subr.mxu0 %v995
  %1075 = vmatpush1.msra.mxu0 %v994
  %1076 = vmatprep.subr.mxu0 %v997
  %1077 = vmatpush1.msra.mxu0 %v996
  %1078 = vmatprep.subr.mxu0 %v999
  %1079 = vmatpush1.msra.mxu0 %v998
  %1080 = vmatprep.subr.mxu0 0.0
  %1081 = vmatpush1.msra.mxu0 0.0
  %1082 = vmatprep.subr.mxu0 0.0
  %1083 = vmatpush1.msra.mxu0 0.0
  %1084 = vmatprep.subr.mxu0 0.0
  %1085 = vmatpush1.msra.mxu0 0.0
  %1086 = vmatprep.subr.mxu0 0.0
  %1087 = vmatpush1.msra.mxu0 0.0
  %1088 = vmatprep.subr.mxu0 0.0
  %1089 = vmatpush1.msra.mxu0 0.0
  %1090 = vmatprep.subr.mxu0 0.0
  %1091 = vmatpush1.msra.mxu0 0.0
  %1092 = vmatprep.subr.mxu0 0.0
  %1093 = vmatpush1.msra.mxu0 0.0
  %1094 = vmatprep.subr.mxu0 0.0
  %1095 = vmatpush1.msra.mxu0 0.0
  %1096 = vmatprep.subr.mxu0 0.0
  %1097 = vmatpush1.msra.mxu0 0.0
  %1098 = vmatprep.subr.mxu0 0.0
  %1099 = vmatpush1.msra.mxu0 0.0
  %1100 = vmatprep.subr.mxu0 0.0
  %1101 = vmatpush1.msra.mxu0 0.0
  %1102 = vmatprep.subr.mxu0 0.0
  %1103 = vmatpush1.msra.mxu0 0.0
  %1104 = vmatprep.subr.mxu0 0.0
  %1105 = vmatpush1.msra.mxu0 0.0
  %1106 = vmatprep.subr.mxu0 0.0
  %1107 = vmatpush1.msra.mxu0 0.0
  %1108 = vmatprep.subr.mxu0 0.0
  %1109 = vmatpush1.msra.mxu0 0.0
  %1110 = vmatprep.subr.mxu0 0.0
  %1111 = vmatpush1.msra.mxu0 0.0
  %1112 = vmatprep.subr.mxu0 0.0
  %1113 = vmatpush1.msra.mxu0 0.0
  %1114 = vmatprep.subr.mxu0 0.0
  %1115 = vmatpush1.msra.mxu0 0.0
  %1116 = vmatprep.subr.mxu0 0.0
  %1117 = vmatpush1.msra.mxu0 0.0
  %1118 = vmatprep.subr.mxu0 0.0
  %1119 = vmatpush1.msra.mxu0 0.0
  %1120 = vmatprep.subr.mxu0 0.0
  %1121 = vmatpush1.msra.mxu0 0.0
  %1122 = vmatprep.subr.mxu0 0.0
  %1123 = vmatpush1.msra.mxu0 0.0
  %1124 = vmatprep.subr.mxu0 0.0
  %1125 = vmatpush1.msra.mxu0 0.0
  %1126 = vmatprep.subr.mxu0 0.0
  %1127 = vmatpush1.msra.mxu0 0.0
  %1128 = vmatprep.mubr.f32.mxu0 0.0
  %1129 = vmatmul.mubr.f32.gmra.mrb[0].mxu0 %v1000
  %v1130 = vpop.f32.mrb[0].mxu0
  %v1131 = vadd.f32 0.0, %v1130
  %v1132 = vpop.f32.mrb[0].mxu0
  %v1133 = vadd.f32 0.0, %v1132
  %1134 = vmatprep.mubr.f32.mxu0 0.0
  %1135 = vmatmul.mubr.f32.gmra.mrb[0].mxu0 %v1002
  %v1136 = vpop.f32.mrb[0].mxu0
  %v1137 = vadd.f32 0.0, %v1136
  %v1138 = vpop.f32.mrb[0].mxu0
  %v1139 = vadd.f32 0.0, %v1138
  %1140 = vmatprep.mubr.f32.mxu0 0.0
  %1141 = vmatmul.mubr.f32.gmra.mrb[0].mxu0 %v1004
  %v1142 = vpop.f32.mrb[0].mxu0
  %v1143 = vadd.f32 0.0, %v1142
  %v1144 = vpop.f32.mrb[0].mxu0
  %v1145 = vadd.f32 0.0, %v1144
  %1146 = vmatprep.mubr.f32.mxu0 0.0
  %1147 = vmatmul.mubr.f32.gmra.mrb[0].mxu0 %v1006
  %v1148 = vpop.f32.mrb[0].mxu0
  %v1149 = vadd.f32 0.0, %v1148
  %v1150 = vpop.f32.mrb[0].mxu0
  %v1151 = vadd.f32 0.0, %v1150
  %1152 = vmatprep.mubr.f32.mxu0 0.0
  %1153 = vmatmul.mubr.f32.gmra.mrb[0].mxu0 %v1008
  %v1154 = vpop.f32.mrb[0].mxu0
  %v1155 = vadd.f32 0.0, %v1154
  %v1156 = vpop.f32.mrb[0].mxu0
  %v1157 = vadd.f32 0.0, %v1156
  %1158 = vmatprep.mubr.f32.mxu0 0.0
  %1159 = vmatmul.mubr.f32.gmra.mrb[0].mxu0 %v1010
  %v1160 = vpop.f32.mrb[0].mxu0
  %v1161 = vadd.f32 0.0, %v1160
  %v1162 = vpop.f32.mrb[0].mxu0
  %v1163 = vadd.f32 0.0, %v1162
  %1164 = vmatprep.mubr.f32.mxu0 0.0
  %1165 = vmatmul.mubr.f32.gmra.mrb[0].mxu0 %v1012
  %v1166 = vpop.f32.mrb[0].mxu0
  %v1167 = vadd.f32 0.0, %v1166
  %v1168 = vpop.f32.mrb[0].mxu0
  %v1169 = vadd.f32 0.0, %v1168
  %1170 = vmatprep.mubr.f32.mxu0 0.0
  %1171 = vmatmul.mubr.f32.gmra.mrb[0].mxu0 %v1014
  %v1172 = vpop.f32.mrb[0].mxu0
  %v1173 = vadd.f32 0.0, %v1172
  %v1174 = vpop.f32.mrb[0].mxu0
  %v1175 = vadd.f32 0.0, %v1174
  %1176 = vmatprep.mubr.f32.mxu0 0.0
  %1177 = vmatmul.mubr.f32.gmra.mrb[0].mxu0 %v1016
  %v1178 = vpop.f32.mrb[0].mxu0
  %v1179 = vadd.f32 0.0, %v1178
  %v1180 = vpop.f32.mrb[0].mxu0
  %v1181 = vadd.f32 0.0, %v1180
  %1182 = vmatprep.mubr.f32.mxu0 0.0
  %1183 = vmatmul.mubr.f32.gmra.mrb[0].mxu0 %v1018
  %v1184 = vpop.f32.mrb[0].mxu0
  %v1185 = vadd.f32 0.0, %v1184
  %v1186 = vpop.f32.mrb[0].mxu0
  %v1187 = vadd.f32 0.0, %v1186
  %1188 = vmatprep.mubr.f32.mxu0 0.0
  %1189 = vmatmul.mubr.f32.gmra.mrb[0].mxu0 %v1020
  %v1190 = vpop.f32.mrb[0].mxu0
  %v1191 = vadd.f32 0.0, %v1190
  %v1192 = vpop.f32.mrb[0].mxu0
  %v1193 = vadd.f32 0.0, %v1192
  %1194 = vmatprep.mubr.f32.mxu0 0.0
  %1195 = vmatmul.mubr.f32.gmra.mrb[0].mxu0 %v1022
  %v1196 = vpop.f32.mrb[0].mxu0
  %v1197 = vadd.f32 0.0, %v1196
  %v1198 = vpop.f32.mrb[0].mxu0
  %v1199 = vadd.f32 0.0, %v1198
  %1200 = vmatprep.mubr.f32.mxu0 0.0
  %1201 = vmatmul.mubr.f32.gmra.mrb[0].mxu0 %v1024
  %v1202 = vpop.f32.mrb[0].mxu0
  %v1203 = vadd.f32 0.0, %v1202
  %v1204 = vpop.f32.mrb[0].mxu0
  %v1205 = vadd.f32 0.0, %v1204
  %1206 = vmatprep.mubr.f32.mxu0 0.0
  %1207 = vmatmul.mubr.f32.gmra.mrb[0].mxu0 %v1026
  %v1208 = vpop.f32.mrb[0].mxu0
  %v1209 = vadd.f32 0.0, %v1208
  %v1210 = vpop.f32.mrb[0].mxu0
  %v1211 = vadd.f32 0.0, %v1210
  %1212 = vmatprep.mubr.f32.mxu0 0.0
  %1213 = vmatmul.mubr.f32.gmra.mrb[0].mxu0 %v1028
  %v1214 = vpop.f32.mrb[0].mxu0
  %v1215 = vadd.f32 0.0, %v1214
  %v1216 = vpop.f32.mrb[0].mxu0
  %v1217 = vadd.f32 0.0, %v1216
  %1218 = vmatprep.mubr.f32.mxu0 0.0
  %1219 = vmatmul.mubr.f32.gmra.mrb[0].mxu0 %v1030
  %v1220 = vpop.f32.mrb[0].mxu0
  %v1221 = vadd.f32 0.0, %v1220
  %v1222 = vpop.f32.mrb[0].mxu0
  %v1223 = vadd.f32 0.0, %v1222
  %1224 = vmatprep.mubr.f32.mxu0 0.0
  %1225 = vmatmul.mubr.f32.gmra.mrb[0].mxu0 %v1032
  %v1226 = vpop.f32.mrb[0].mxu0
  %v1227 = vadd.f32 0.0, %v1226
  %v1228 = vpop.f32.mrb[0].mxu0
  %v1229 = vadd.f32 0.0, %v1228
  %1230 = vmatprep.mubr.f32.mxu0 0.0
  %1231 = vmatmul.mubr.f32.gmra.mrb[0].mxu0 %v1034
  %v1232 = vpop.f32.mrb[0].mxu0
  %v1233 = vadd.f32 0.0, %v1232
  %v1234 = vpop.f32.mrb[0].mxu0
  %v1235 = vadd.f32 0.0, %v1234
  %1236 = vmatprep.mubr.f32.mxu0 0.0
  %1237 = vmatmul.mubr.f32.gmra.mrb[0].mxu0 %v1036
  %v1238 = vpop.f32.mrb[0].mxu0
  %v1239 = vadd.f32 0.0, %v1238
  %v1240 = vpop.f32.mrb[0].mxu0
  %v1241 = vadd.f32 0.0, %v1240
  %1242 = vmatprep.mubr.f32.mxu0 0.0
  %1243 = vmatmul.mubr.f32.gmra.mrb[0].mxu0 %v1038
  %v1244 = vpop.f32.mrb[0].mxu0
  %v1245 = vadd.f32 0.0, %v1244
  %v1246 = vpop.f32.mrb[0].mxu0
  %v1247 = vadd.f32 0.0, %v1246
  %1248 = vmatprep.mubr.f32.mxu0 0.0
  %1249 = vmatmul.mubr.f32.gmra.mrb[0].mxu0 %v1040
  %v1250 = vpop.f32.mrb[0].mxu0
  %v1251 = vadd.f32 0.0, %v1250
  %v1252 = vpop.f32.mrb[0].mxu0
  %v1253 = vadd.f32 0.0, %v1252
  %1254 = vmatprep.mubr.f32.mxu0 0.0
  %1255 = vmatmul.mubr.f32.gmra.mrb[0].mxu0 %v1042
  %v1256 = vpop.f32.mrb[0].mxu0
  %v1257 = vadd.f32 0.0, %v1256
  %v1258 = vpop.f32.mrb[0].mxu0
  %v1259 = vadd.f32 0.0, %v1258
  %1260 = vmatprep.mubr.f32.mxu0 0.0
  %1261 = vmatmul.mubr.f32.gmra.mrb[0].mxu0 %v1044
  %v1262 = vpop.f32.mrb[0].mxu0
  %v1263 = vadd.f32 0.0, %v1262
  %v1264 = vpop.f32.mrb[0].mxu0
  %v1265 = vadd.f32 0.0, %v1264
  %1266 = vmatprep.mubr.f32.mxu0 0.0
  %1267 = vmatmul.mubr.f32.gmra.mrb[0].mxu0 %v1046
  %v1268 = vpop.f32.mrb[0].mxu0
  %v1269 = vadd.f32 0.0, %v1268
  %v1270 = vpop.f32.mrb[0].mxu0
  %v1271 = vadd.f32 0.0, %v1270
  %1272 = vmatprep.mubr.f32.mxu0 0.0
  %1273 = vmatmul.mubr.f32.gmra.mrb[0].mxu0 %v1048
  %v1274 = vpop.f32.mrb[0].mxu0
  %v1275 = vadd.f32 0.0, %v1274
  %v1276 = vpop.f32.mrb[0].mxu0
  %v1277 = vadd.f32 0.0, %v1276
  %1278 = vmatprep.mubr.f32.mxu0 0.0
  %1279 = vmatmul.mubr.f32.gmra.mrb[0].mxu0 %v1050
  %v1280 = vpop.f32.mrb[0].mxu0
  %v1281 = vadd.f32 0.0, %v1280
  %v1282 = vpop.f32.mrb[0].mxu0
  %v1283 = vadd.f32 0.0, %v1282
  %1284 = vmatprep.mubr.f32.mxu0 0.0
  %1285 = vmatmul.mubr.f32.gmra.mrb[0].mxu0 %v1052
  %v1286 = vpop.f32.mrb[0].mxu0
  %v1287 = vadd.f32 0.0, %v1286
  %v1288 = vpop.f32.mrb[0].mxu0
  %v1289 = vadd.f32 0.0, %v1288
  %1290 = vmatprep.mubr.f32.mxu0 0.0
  %1291 = vmatmul.mubr.f32.gmra.mrb[0].mxu0 %v1054
  %v1292 = vpop.f32.mrb[0].mxu0
  %v1293 = vadd.f32 0.0, %v1292
  %v1294 = vpop.f32.mrb[0].mxu0
  %v1295 = vadd.f32 0.0, %v1294
  %1296 = vmatprep.mubr.f32.mxu0 0.0
  %1297 = vmatmul.mubr.f32.gmra.mrb[0].mxu0 %v1056
  %v1298 = vpop.f32.mrb[0].mxu0
  %v1299 = vadd.f32 0.0, %v1298
  %v1300 = vpop.f32.mrb[0].mxu0
  %v1301 = vadd.f32 0.0, %v1300
  %1302 = vmatprep.mubr.f32.mxu0 0.0
  %1303 = vmatmul.mubr.f32.gmra.mrb[0].mxu0 %v1058
  %v1304 = vpop.f32.mrb[0].mxu0
  %v1305 = vadd.f32 0.0, %v1304
  %v1306 = vpop.f32.mrb[0].mxu0
  %v1307 = vadd.f32 0.0, %v1306
  %1308 = vmatprep.mubr.f32.mxu0 0.0
  %1309 = vmatmul.mubr.f32.gmra.mrb[0].mxu0 %v1060
  %v1310 = vpop.f32.mrb[0].mxu0
  %v1311 = vadd.f32 0.0, %v1310
  %v1312 = vpop.f32.mrb[0].mxu0
  %v1313 = vadd.f32 0.0, %v1312
  %1314 = vmatprep.mubr.f32.mxu0 0.0
  %1315 = vmatmul.mubr.f32.gmra.mrb[0].mxu0 %v1062
  %v1316 = vpop.f32.mrb[0].mxu0
  %v1317 = vadd.f32 0.0, %v1316
  %v1318 = vpop.f32.mrb[0].mxu0
  %v1319 = vadd.f32 0.0, %v1318
  %1320 = vdwg.mxu0
  %v1321 = vadd.f32 %v712, %v1131
  %v1322 = vadd.f32 %v714, %v1133
  %v1323 = vadd.f32 %v718, %v1137
  %v1324 = vadd.f32 %v720, %v1139
  %v1325 = vadd.f32 %v724, %v1143
  %v1326 = vadd.f32 %v726, %v1145
  %v1327 = vadd.f32 %v730, %v1149
  %v1328 = vadd.f32 %v732, %v1151
  %v1329 = vadd.f32 %v736, %v1155
  %v1330 = vadd.f32 %v738, %v1157
  %v1331 = vadd.f32 %v742, %v1161
  %v1332 = vadd.f32 %v744, %v1163
  %v1333 = vadd.f32 %v748, %v1167
  %v1334 = vadd.f32 %v750, %v1169
  %v1335 = vadd.f32 %v754, %v1173
  %v1336 = vadd.f32 %v756, %v1175
  %v1337 = vadd.f32 %v760, %v1179
  %v1338 = vadd.f32 %v762, %v1181
  %v1339 = vadd.f32 %v766, %v1185
  %v1340 = vadd.f32 %v768, %v1187
  %v1341 = vadd.f32 %v772, %v1191
  %v1342 = vadd.f32 %v774, %v1193
  %v1343 = vadd.f32 %v778, %v1197
  %v1344 = vadd.f32 %v780, %v1199
  %v1345 = vadd.f32 %v784, %v1203
  %v1346 = vadd.f32 %v786, %v1205
  %v1347 = vadd.f32 %v790, %v1209
  %v1348 = vadd.f32 %v792, %v1211
  %v1349 = vadd.f32 %v796, %v1215
  %v1350 = vadd.f32 %v798, %v1217
  %v1351 = vadd.f32 %v802, %v1221
  %v1352 = vadd.f32 %v804, %v1223
  %v1353 = vadd.f32 %v808, %v1227
  %v1354 = vadd.f32 %v810, %v1229
  %v1355 = vadd.f32 %v814, %v1233
  %v1356 = vadd.f32 %v816, %v1235
  %v1357 = vadd.f32 %v820, %v1239
  %v1358 = vadd.f32 %v822, %v1241
  %v1359 = vadd.f32 %v826, %v1245
  %v1360 = vadd.f32 %v828, %v1247
  %v1361 = vadd.f32 %v832, %v1251
  %v1362 = vadd.f32 %v834, %v1253
  %v1363 = vadd.f32 %v838, %v1257
  %v1364 = vadd.f32 %v840, %v1259
  %v1365 = vadd.f32 %v844, %v1263
  %v1366 = vadd.f32 %v846, %v1265
  %v1367 = vadd.f32 %v850, %v1269
  %v1368 = vadd.f32 %v852, %v1271
  %v1369 = vadd.f32 %v856, %v1275
  %v1370 = vadd.f32 %v858, %v1277
  %v1371 = vadd.f32 %v862, %v1281
  %v1372 = vadd.f32 %v864, %v1283
  %v1373 = vadd.f32 %v868, %v1287
  %v1374 = vadd.f32 %v870, %v1289
  %v1375 = vadd.f32 %v874, %v1293
  %v1376 = vadd.f32 %v876, %v1295
  %v1377 = vadd.f32 %v880, %v1299
  %v1378 = vadd.f32 %v882, %v1301
  %v1379 = vadd.f32 %v886, %v1305
  %v1380 = vadd.f32 %v888, %v1307
  %v1381 = vadd.f32 %v892, %v1311
  %v1382 = vadd.f32 %v894, %v1313
  %v1383 = vadd.f32 %v898, %v1317
  %v1384 = vadd.f32 %v900, %v1319
  %v1385 = vld [vmem:[%s2] sm:$0x3]
  %v1387 = vlaneseq
  %v1388 = vshrl.u32 %v1387, 7
  %v1389 = vsub.s32 0, %v1388
  %v1390 = vrot.slane %v1385, %v1389
  %v1391 = vlaneseq
  %v1392 = vshrl.u32 %v1391, 7
  %v1393 = vsub.s32 1, %v1392
  %v1394 = vrot.slane %v1385, %v1393
  %v1397 = vadd.f32 %v1321, %v1390
  %v1398 = vadd.f32 %v1322, %v1394
  %v1399 = vadd.f32 %v1323, %v1390
  %v1400 = vadd.f32 %v1324, %v1394
  %v1401 = vadd.f32 %v1325, %v1390
  %v1402 = vadd.f32 %v1326, %v1394
  %v1403 = vadd.f32 %v1327, %v1390
  %v1404 = vadd.f32 %v1328, %v1394
  %v1405 = vadd.f32 %v1329, %v1390
  %v1406 = vadd.f32 %v1330, %v1394
  %v1407 = vadd.f32 %v1331, %v1390
  %v1408 = vadd.f32 %v1332, %v1394
  %v1409 = vadd.f32 %v1333, %v1390
  %v1410 = vadd.f32 %v1334, %v1394
  %v1411 = vadd.f32 %v1335, %v1390
  %v1412 = vadd.f32 %v1336, %v1394
  %v1413 = vadd.f32 %v1337, %v1390
  %v1414 = vadd.f32 %v1338, %v1394
  %v1415 = vadd.f32 %v1339, %v1390
  %v1416 = vadd.f32 %v1340, %v1394
  %v1417 = vadd.f32 %v1341, %v1390
  %v1418 = vadd.f32 %v1342, %v1394
  %v1419 = vadd.f32 %v1343, %v1390
  %v1420 = vadd.f32 %v1344, %v1394
  %v1421 = vadd.f32 %v1345, %v1390
  %v1422 = vadd.f32 %v1346, %v1394
  %v1423 = vadd.f32 %v1347, %v1390
  %v1424 = vadd.f32 %v1348, %v1394
  %v1425 = vadd.f32 %v1349, %v1390
  %v1426 = vadd.f32 %v1350, %v1394
  %v1427 = vadd.f32 %v1351, %v1390
  %v1428 = vadd.f32 %v1352, %v1394
  %v1429 = vadd.f32 %v1353, %v1390
  %v1430 = vadd.f32 %v1354, %v1394
  %v1431 = vadd.f32 %v1355, %v1390
  %v1432 = vadd.f32 %v1356, %v1394
  %v1433 = vadd.f32 %v1357, %v1390
  %v1434 = vadd.f32 %v1358, %v1394
  %v1435 = vadd.f32 %v1359, %v1390
  %v1436 = vadd.f32 %v1360, %v1394
  %v1437 = vadd.f32 %v1361, %v1390
  %v1438 = vadd.f32 %v1362, %v1394
  %v1439 = vadd.f32 %v1363, %v1390
  %v1440 = vadd.f32 %v1364, %v1394
  %v1441 = vadd.f32 %v1365, %v1390
  %v1442 = vadd.f32 %v1366, %v1394
  %v1443 = vadd.f32 %v1367, %v1390
  %v1444 = vadd.f32 %v1368, %v1394
  %v1445 = vadd.f32 %v1369, %v1390
  %v1446 = vadd.f32 %v1370, %v1394
  %v1447 = vadd.f32 %v1371, %v1390
  %v1448 = vadd.f32 %v1372, %v1394
  %v1449 = vadd.f32 %v1373, %v1390
  %v1450 = vadd.f32 %v1374, %v1394
  %v1451 = vadd.f32 %v1375, %v1390
  %v1452 = vadd.f32 %v1376, %v1394
  %v1453 = vadd.f32 %v1377, %v1390
  %v1454 = vadd.f32 %v1378, %v1394
  %v1455 = vadd.f32 %v1379, %v1390
  %v1456 = vadd.f32 %v1380, %v1394
  %v1457 = vadd.f32 %v1381, %v1390
  %v1458 = vadd.f32 %v1382, %v1394
  %v1459 = vadd.f32 %v1383, %v1390
  %v1460 = vadd.f32 %v1384, %v1394
  %v1461 = vmax.f32 %v1397, 0.0
  %v1462 = vmax.f32 %v1398, 0.0
  %v1463 = vmax.f32 %v1399, 0.0
  %v1464 = vmax.f32 %v1400, 0.0
  %v1465 = vmax.f32 %v1401, 0.0
  %v1466 = vmax.f32 %v1402, 0.0
  %v1467 = vmax.f32 %v1403, 0.0
  %v1468 = vmax.f32 %v1404, 0.0
  %v1469 = vmax.f32 %v1405, 0.0
  %v1470 = vmax.f32 %v1406, 0.0
  %v1471 = vmax.f32 %v1407, 0.0
  %v1472 = vmax.f32 %v1408, 0.0
  %v1473 = vmax.f32 %v1409, 0.0
  %v1474 = vmax.f32 %v1410, 0.0
  %v1475 = vmax.f32 %v1411, 0.0
  %v1476 = vmax.f32 %v1412, 0.0
  %v1477 = vmax.f32 %v1413, 0.0
  %v1478 = vmax.f32 %v1414, 0.0
  %v1479 = vmax.f32 %v1415, 0.0
  %v1480 = vmax.f32 %v1416, 0.0
  %v1481 = vmax.f32 %v1417, 0.0
  %v1482 = vmax.f32 %v1418, 0.0
  %v1483 = vmax.f32 %v1419, 0.0
  %v1484 = vmax.f32 %v1420, 0.0
  %v1485 = vmax.f32 %v1421, 0.0
  %v1486 = vmax.f32 %v1422, 0.0
  %v1487 = vmax.f32 %v1423, 0.0
  %v1488 = vmax.f32 %v1424, 0.0
  %v1489 = vmax.f32 %v1425, 0.0
  %v1490 = vmax.f32 %v1426, 0.0
  %v1491 = vmax.f32 %v1427, 0.0
  %v1492 = vmax.f32 %v1428, 0.0
  %v1493 = vmax.f32 %v1429, 0.0
  %v1494 = vmax.f32 %v1430, 0.0
  %v1495 = vmax.f32 %v1431, 0.0
  %v1496 = vmax.f32 %v1432, 0.0
  %v1497 = vmax.f32 %v1433, 0.0
  %v1498 = vmax.f32 %v1434, 0.0
  %v1499 = vmax.f32 %v1435, 0.0
  %v1500 = vmax.f32 %v1436, 0.0
  %v1501 = vmax.f32 %v1437, 0.0
  %v1502 = vmax.f32 %v1438, 0.0
  %v1503 = vmax.f32 %v1439, 0.0
  %v1504 = vmax.f32 %v1440, 0.0
  %v1505 = vmax.f32 %v1441, 0.0
  %v1506 = vmax.f32 %v1442, 0.0
  %v1507 = vmax.f32 %v1443, 0.0
  %v1508 = vmax.f32 %v1444, 0.0
  %v1509 = vmax.f32 %v1445, 0.0
  %v1510 = vmax.f32 %v1446, 0.0
  %v1511 = vmax.f32 %v1447, 0.0
  %v1512 = vmax.f32 %v1448, 0.0
  %v1513 = vmax.f32 %v1449, 0.0
  %v1514 = vmax.f32 %v1450, 0.0
  %v1515 = vmax.f32 %v1451, 0.0
  %v1516 = vmax.f32 %v1452, 0.0
  %v1517 = vmax.f32 %v1453, 0.0
  %v1518 = vmax.f32 %v1454, 0.0
  %v1519 = vmax.f32 %v1455, 0.0
  %v1520 = vmax.f32 %v1456, 0.0
  %v1521 = vmax.f32 %v1457, 0.0
  %v1522 = vmax.f32 %v1458, 0.0
  %v1523 = vmax.f32 %v1459, 0.0
  %v1524 = vmax.f32 %v1460, 0.0
  %v1525 = vrot.slane %v1461, 1
  %v1526 = vrot.slane %v1462, 1
  %v1527 = vrot.slane %v1463, 1
  %v1528 = vrot.slane %v1464, 1
  %v1529 = vrot.slane %v1465, 1
  %v1530 = vrot.slane %v1466, 1
  %v1531 = vrot.slane %v1467, 1
  %v1532 = vrot.slane %v1468, 1
  %v1533 = vrot.slane %v1469, 1
  %v1534 = vrot.slane %v1470, 1
  %v1535 = vrot.slane %v1471, 1
  %v1536 = vrot.slane %v1472, 1
  %v1537 = vrot.slane %v1473, 1
  %v1538 = vrot.slane %v1474, 1
  %v1539 = vrot.slane %v1475, 1
  %v1540 = vrot.slane %v1476, 1
  %v1541 = vrot.slane %v1477, 1
  %v1542 = vrot.slane %v1478, 1
  %v1543 = vrot.slane %v1479, 1
  %v1544 = vrot.slane %v1480, 1
  %v1545 = vrot.slane %v1481, 1
  %v1546 = vrot.slane %v1482, 1
  %v1547 = vrot.slane %v1483, 1
  %v1548 = vrot.slane %v1484, 1
  %v1549 = vrot.slane %v1485, 1
  %v1550 = vrot.slane %v1486, 1
  %v1551 = vrot.slane %v1487, 1
  %v1552 = vrot.slane %v1488, 1
  %v1553 = vrot.slane %v1489, 1
  %v1554 = vrot.slane %v1490, 1
  %v1555 = vrot.slane %v1491, 1
  %v1556 = vrot.slane %v1492, 1
  %v1557 = vrot.slane %v1493, 1
  %v1558 = vrot.slane %v1494, 1
  %v1559 = vrot.slane %v1495, 1
  %v1560 = vrot.slane %v1496, 1
  %v1561 = vrot.slane %v1497, 1
  %v1562 = vrot.slane %v1498, 1
  %v1563 = vrot.slane %v1499, 1
  %v1564 = vrot.slane %v1500, 1
  %v1565 = vrot.slane %v1501, 1
  %v1566 = vrot.slane %v1502, 1
  %v1567 = vrot.slane %v1503, 1
  %v1568 = vrot.slane %v1504, 1
  %v1569 = vrot.slane %v1505, 1
  %v1570 = vrot.slane %v1506, 1
  %v1571 = vrot.slane %v1507, 1
  %v1572 = vrot.slane %v1508, 1
  %v1573 = vrot.slane %v1509, 1
  %v1574 = vrot.slane %v1510, 1
  %v1575 = vrot.slane %v1511, 1
  %v1576 = vrot.slane %v1512, 1
  %v1577 = vrot.slane %v1513, 1
  %v1578 = vrot.slane %v1514, 1
  %v1579 = vrot.slane %v1515, 1
  %v1580 = vrot.slane %v1516, 1
  %v1581 = vrot.slane %v1517, 1
  %v1582 = vrot.slane %v1518, 1
  %v1583 = vrot.slane %v1519, 1
  %v1584 = vrot.slane %v1520, 1
  %v1585 = vrot.slane %v1521, 1
  %v1586 = vrot.slane %v1522, 1
  %v1587 = vrot.slane %v1523, 1
  %v1588 = vrot.slane %v1524, 1
  %v1589 = vlaneseq
  %v1590 = vshrl.u32 %v1589, 7
  %vm1591 = vcmp.lt.s32.totalorder %v1590, 7
  %v1592 = vsel %vm1591, %v1585, %v1587
  %v1593 = vsel %vm1591, %v1586, %v1588
  %v1594 = vsel %vm1591, %v1583, %v1585
  %v1595 = vsel %vm1591, %v1584, %v1586
  %v1596 = vsel %vm1591, %v1581, %v1583
  %v1597 = vsel %vm1591, %v1582, %v1584
  %v1598 = vsel %vm1591, %v1579, %v1581
  %v1599 = vsel %vm1591, %v1580, %v1582
  %v1600 = vsel %vm1591, %v1577, %v1579
  %v1601 = vsel %vm1591, %v1578, %v1580
  %v1602 = vsel %vm1591, %v1575, %v1577
  %v1603 = vsel %vm1591, %v1576, %v1578
  %v1604 = vsel %vm1591, %v1573, %v1575
  %v1605 = vsel %vm1591, %v1574, %v1576
  %v1606 = vsel %vm1591, %v1571, %v1573
  %v1607 = vsel %vm1591, %v1572, %v1574
  %v1608 = vsel %vm1591, %v1569, %v1571
  %v1609 = vsel %vm1591, %v1570, %v1572
  %v1610 = vsel %vm1591, %v1567, %v1569
  %v1611 = vsel %vm1591, %v1568, %v1570
  %v1612 = vsel %vm1591, %v1565, %v1567
  %v1613 = vsel %vm1591, %v1566, %v1568
  %v1614 = vsel %vm1591, %v1563, %v1565
  %v1615 = vsel %vm1591, %v1564, %v1566
  %v1616 = vsel %vm1591, %v1561, %v1563
  %v1617 = vsel %vm1591, %v1562, %v1564
  %v1618 = vsel %vm1591, %v1559, %v1561
  %v1619 = vsel %vm1591, %v1560, %v1562
  %v1620 = vsel %vm1591, %v1557, %v1559
  %v1621 = vsel %vm1591, %v1558, %v1560
  %v1622 = vsel %vm1591, %v1555, %v1557
  %v1623 = vsel %vm1591, %v1556, %v1558
  %v1624 = vsel %vm1591, %v1553, %v1555
  %v1625 = vsel %vm1591, %v1554, %v1556
  %v1626 = vsel %vm1591, %v1551, %v1553
  %v1627 = vsel %vm1591, %v1552, %v1554
  %v1628 = vsel %vm1591, %v1549, %v1551
  %v1629 = vsel %vm1591, %v1550, %v1552
  %v1630 = vsel %vm1591, %v1547, %v1549
  %v1631 = vsel %vm1591, %v1548, %v1550
  %v1632 = vsel %vm1591, %v1545, %v1547
  %v1633 = vsel %vm1591, %v1546, %v1548
  %v1634 = vsel %vm1591, %v1543, %v1545
  %v1635 = vsel %vm1591, %v1544, %v1546
  %v1636 = vsel %vm1591, %v1541, %v1543
  %v1637 = vsel %vm1591, %v1542, %v1544
  %v1638 = vsel %vm1591, %v1539, %v1541
  %v1639 = vsel %vm1591, %v1540, %v1542
  %v1640 = vsel %vm1591, %v1537, %v1539
  %v1641 = vsel %vm1591, %v1538, %v1540
  %v1642 = vsel %vm1591, %v1535, %v1537
  %v1643 = vsel %vm1591, %v1536, %v1538
  %v1644 = vsel %vm1591, %v1533, %v1535
  %v1645 = vsel %vm1591, %v1534, %v1536
  %v1646 = vsel %vm1591, %v1531, %v1533
  %v1647 = vsel %vm1591, %v1532, %v1534
  %v1648 = vsel %vm1591, %v1529, %v1531
  %v1649 = vsel %vm1591, %v1530, %v1532
  %v1650 = vsel %vm1591, %v1527, %v1529
  %v1651 = vsel %vm1591, %v1528, %v1530
  %v1652 = vsel %vm1591, %v1525, %v1527
  %v1653 = vsel %vm1591, %v1526, %v1528
  %v1654 = vsel %vm1591, %v1587, %v1525
  %v1655 = vsel %vm1591, %v1588, %v1526
  %v1656 = vmax.f32 %v1461, %v1652
  %v1657 = vmax.f32 %v1462, %v1653
  %v1658 = vmax.f32 %v1463, %v1650
  %v1659 = vmax.f32 %v1464, %v1651
  %v1660 = vmax.f32 %v1465, %v1648
  %v1661 = vmax.f32 %v1466, %v1649
  %v1662 = vmax.f32 %v1467, %v1646
  %v1663 = vmax.f32 %v1468, %v1647
  %v1664 = vmax.f32 %v1469, %v1644
  %v1665 = vmax.f32 %v1470, %v1645
  %v1666 = vmax.f32 %v1471, %v1642
  %v1667 = vmax.f32 %v1472, %v1643
  %v1668 = vmax.f32 %v1473, %v1640
  %v1669 = vmax.f32 %v1474, %v1641
  %v1670 = vmax.f32 %v1475, %v1638
  %v1671 = vmax.f32 %v1476, %v1639
  %v1672 = vmax.f32 %v1477, %v1636
  %v1673 = vmax.f32 %v1478, %v1637
  %v1674 = vmax.f32 %v1479, %v1634
  %v1675 = vmax.f32 %v1480, %v1635
  %v1676 = vmax.f32 %v1481, %v1632
  %v1677 = vmax.f32 %v1482, %v1633
  %v1678 = vmax.f32 %v1483, %v1630
  %v1679 = vmax.f32 %v1484, %v1631
  %v1680 = vmax.f32 %v1485, %v1628
  %v1681 = vmax.f32 %v1486, %v1629
  %v1682 = vmax.f32 %v1487, %v1626
  %v1683 = vmax.f32 %v1488, %v1627
  %v1684 = vmax.f32 %v1489, %v1624
  %v1685 = vmax.f32 %v1490, %v1625
  %v1686 = vmax.f32 %v1491, %v1622
  %v1687 = vmax.f32 %v1492, %v1623
  %v1688 = vmax.f32 %v1493, %v1620
  %v1689 = vmax.f32 %v1494, %v1621
  %v1690 = vmax.f32 %v1495, %v1618
  %v1691 = vmax.f32 %v1496, %v1619
  %v1692 = vmax.f32 %v1497, %v1616
  %v1693 = vmax.f32 %v1498, %v1617
  %v1694 = vmax.f32 %v1499, %v1614
  %v1695 = vmax.f32 %v1500, %v1615
  %v1696 = vmax.f32 %v1501, %v1612
  %v1697 = vmax.f32 %v1502, %v1613
  %v1698 = vmax.f32 %v1503, %v1610
  %v1699 = vmax.f32 %v1504, %v1611
  %v1700 = vmax.f32 %v1505, %v1608
  %v1701 = vmax.f32 %v1506, %v1609
  %v1702 = vmax.f32 %v1507, %v1606
  %v1703 = vmax.f32 %v1508, %v1607
  %v1704 = vmax.f32 %v1509, %v1604
  %v1705 = vmax.f32 %v1510, %v1605
  %v1706 = vmax.f32 %v1511, %v1602
  %v1707 = vmax.f32 %v1512, %v1603
  %v1708 = vmax.f32 %v1513, %v1600
  %v1709 = vmax.f32 %v1514, %v1601
  %v1710 = vmax.f32 %v1515, %v1598
  %v1711 = vmax.f32 %v1516, %v1599
  %v1712 = vmax.f32 %v1517, %v1596
  %v1713 = vmax.f32 %v1518, %v1597
  %v1714 = vmax.f32 %v1519, %v1594
  %v1715 = vmax.f32 %v1520, %v1595
  %v1716 = vmax.f32 %v1521, %v1592
  %v1717 = vmax.f32 %v1522, %v1593
  %v1718 = vmax.f32 %v1523, %v1654
  %v1719 = vmax.f32 %v1524, %v1655
  %1720 = vrot.lane.b32.xlu0 %v1656, 127
  %v1721 = vpop.permute.xlu0 %1720
  %1722 = vrot.lane.b32.xlu0 %v1658, 127
  %v1723 = vpop.permute.xlu0 %1722
  %1724 = vrot.lane.b32.xlu0 %v1660, 127
  %v1725 = vpop.permute.xlu0 %1724
  %1726 = vrot.lane.b32.xlu0 %v1662, 127
  %v1727 = vpop.permute.xlu0 %1726
  %1728 = vrot.lane.b32.xlu0 %v1664, 127
  %v1729 = vpop.permute.xlu0 %1728
  %1730 = vrot.lane.b32.xlu0 %v1666, 127
  %v1731 = vpop.permute.xlu0 %1730
  %1732 = vrot.lane.b32.xlu0 %v1668, 127
  %v1733 = vpop.permute.xlu0 %1732
  %1734 = vrot.lane.b32.xlu0 %v1670, 127
  %v1735 = vpop.permute.xlu0 %1734
  %1736 = vrot.lane.b32.xlu0 %v1672, 127
  %v1737 = vpop.permute.xlu0 %1736
  %1738 = vrot.lane.b32.xlu0 %v1674, 127
  %v1739 = vpop.permute.xlu0 %1738
  %1740 = vrot.lane.b32.xlu0 %v1676, 127
  %v1741 = vpop.permute.xlu0 %1740
  %1742 = vrot.lane.b32.xlu0 %v1678, 127
  %v1743 = vpop.permute.xlu0 %1742
  %1744 = vrot.lane.b32.xlu0 %v1680, 127
  %v1745 = vpop.permute.xlu0 %1744
  %1746 = vrot.lane.b32.xlu0 %v1682, 127
  %v1747 = vpop.permute.xlu0 %1746
  %1748 = vrot.lane.b32.xlu0 %v1684, 127
  %v1749 = vpop.permute.xlu0 %1748
  %1750 = vrot.lane.b32.xlu0 %v1686, 127
  %v1751 = vpop.permute.xlu0 %1750
  %1752 = vrot.lane.b32.xlu0 %v1688, 127
  %v1753 = vpop.permute.xlu0 %1752
  %1754 = vrot.lane.b32.xlu0 %v1690, 127
  %v1755 = vpop.permute.xlu0 %1754
  %1756 = vrot.lane.b32.xlu0 %v1692, 127
  %v1757 = vpop.permute.xlu0 %1756
  %1758 = vrot.lane.b32.xlu0 %v1694, 127
  %v1759 = vpop.permute.xlu0 %1758
  %1760 = vrot.lane.b32.xlu0 %v1696, 127
  %v1761 = vpop.permute.xlu0 %1760
  %1762 = vrot.lane.b32.xlu0 %v1698, 127
  %v1763 = vpop.permute.xlu0 %1762
  %1764 = vrot.lane.b32.xlu0 %v1700, 127
  %v1765 = vpop.permute.xlu0 %1764
  %1766 = vrot.lane.b32.xlu0 %v1702, 127
  %v1767 = vpop.permute.xlu0 %1766
  %1768 = vrot.lane.b32.xlu0 %v1704, 127
  %v1769 = vpop.permute.xlu0 %1768
  %1770 = vrot.lane.b32.xlu0 %v1706, 127
  %v1771 = vpop.permute.xlu0 %1770
  %1772 = vrot.lane.b32.xlu0 %v1708, 127
  %v1773 = vpop.permute.xlu0 %1772
  %1774 = vrot.lane.b32.xlu0 %v1710, 127
  %v1775 = vpop.permute.xlu0 %1774
  %1776 = vrot.lane.b32.xlu0 %v1712, 127
  %v1777 = vpop.permute.xlu0 %1776
  %1778 = vrot.lane.b32.xlu0 %v1714, 127
  %v1779 = vpop.permute.xlu0 %1778
  %1780 = vrot.lane.b32.xlu0 %v1716, 127
  %v1781 = vpop.permute.xlu0 %1780
  %1782 = vrot.lane.b32.xlu0 %v1718, 127
  %v1783 = vpop.permute.xlu0 %1782
  %1784 = vrot.lane.b32.xlu0 %v1657, 127
  %v1785 = vpop.permute.xlu0 %1784
  %1786 = vrot.lane.b32.xlu0 %v1659, 127
  %v1787 = vpop.permute.xlu0 %1786
  %1788 = vrot.lane.b32.xlu0 %v1661, 127
  %v1789 = vpop.permute.xlu0 %1788
  %1790 = vrot.lane.b32.xlu0 %v1663, 127
  %v1791 = vpop.permute.xlu0 %1790
  %1792 = vrot.lane.b32.xlu0 %v1665, 127
  %v1793 = vpop.permute.xlu0 %1792
  %1794 = vrot.lane.b32.xlu0 %v1667, 127
  %v1795 = vpop.permute.xlu0 %1794
  %1796 = vrot.lane.b32.xlu0 %v1669, 127
  %v1797 = vpop.permute.xlu0 %1796
  %1798 = vrot.lane.b32.xlu0 %v1671, 127
  %v1799 = vpop.permute.xlu0 %1798
  %1800 = vrot.lane.b32.xlu0 %v1673, 127
  %v1801 = vpop.permute.xlu0 %1800
  %1802 = vrot.lane.b32.xlu0 %v1675, 127
  %v1803 = vpop.permute.xlu0 %1802
  %1804 = vrot.lane.b32.xlu0 %v1677, 127
  %v1805 = vpop.permute.xlu0 %1804
  %1806 = vrot.lane.b32.xlu0 %v1679, 127
  %v1807 = vpop.permute.xlu0 %1806
  %1808 = vrot.lane.b32.xlu0 %v1681, 127
  %v1809 = vpop.permute.xlu0 %1808
  %1810 = vrot.lane.b32.xlu0 %v1683, 127
  %v1811 = vpop.permute.xlu0 %1810
  %1812 = vrot.lane.b32.xlu0 %v1685, 127
  %v1813 = vpop.permute.xlu0 %1812
  %1814 = vrot.lane.b32.xlu0 %v1687, 127
  %v1815 = vpop.permute.xlu0 %1814
  %1816 = vrot.lane.b32.xlu0 %v1689, 127
  %v1817 = vpop.permute.xlu0 %1816
  %1818 = vrot.lane.b32.xlu0 %v1691, 127
  %v1819 = vpop.permute.xlu0 %1818
  %1820 = vrot.lane.b32.xlu0 %v1693, 127
  %v1821 = vpop.permute.xlu0 %1820
  %1822 = vrot.lane.b32.xlu0 %v1695, 127
  %v1823 = vpop.permute.xlu0 %1822
  %1824 = vrot.lane.b32.xlu0 %v1697, 127
  %v1825 = vpop.permute.xlu0 %1824
  %1826 = vrot.lane.b32.xlu0 %v1699, 127
  %v1827 = vpop.permute.xlu0 %1826
  %1828 = vrot.lane.b32.xlu0 %v1701, 127
  %v1829 = vpop.permute.xlu0 %1828
  %1830 = vrot.lane.b32.xlu0 %v1703, 127
  %v1831 = vpop.permute.xlu0 %1830
  %1832 = vrot.lane.b32.xlu0 %v1705, 127
  %v1833 = vpop.permute.xlu0 %1832
  %1834 = vrot.lane.b32.xlu0 %v1707, 127
  %v1835 = vpop.permute.xlu0 %1834
  %1836 = vrot.lane.b32.xlu0 %v1709, 127
  %v1837 = vpop.permute.xlu0 %1836
  %1838 = vrot.lane.b32.xlu0 %v1711, 127
  %v1839 = vpop.permute.xlu0 %1838
  %1840 = vrot.lane.b32.xlu0 %v1713, 127
  %v1841 = vpop.permute.xlu0 %1840
  %1842 = vrot.lane.b32.xlu0 %v1715, 127
  %v1843 = vpop.permute.xlu0 %1842
  %1844 = vrot.lane.b32.xlu0 %v1717, 127
  %v1845 = vpop.permute.xlu0 %1844
  %1846 = vrot.lane.b32.xlu0 %v1719, 127
  %v1847 = vpop.permute.xlu0 %1846
  %v1848 = vlaneseq
  %v1849 = vand.u32 %v1848, 127
  %vm1850 = vcmp.lt.s32.totalorder %v1849, 127
  %v1851 = vsel %vm1850, %v1721, %v1785
  %v1852 = vsel %vm1850, %v1723, %v1787
  %v1853 = vsel %vm1850, %v1725, %v1789
  %v1854 = vsel %vm1850, %v1727, %v1791
  %v1855 = vsel %vm1850, %v1729, %v1793
  %v1856 = vsel %vm1850, %v1731, %v1795
  %v1857 = vsel %vm1850, %v1733, %v1797
  %v1858 = vsel %vm1850, %v1735, %v1799
  %v1859 = vsel %vm1850, %v1737, %v1801
  %v1860 = vsel %vm1850, %v1739, %v1803
  %v1861 = vsel %vm1850, %v1741, %v1805
  %v1862 = vsel %vm1850, %v1743, %v1807
  %v1863 = vsel %vm1850, %v1745, %v1809
  %v1864 = vsel %vm1850, %v1747, %v1811
  %v1865 = vsel %vm1850, %v1749, %v1813
  %v1866 = vsel %vm1850, %v1751, %v1815
  %v1867 = vsel %vm1850, %v1753, %v1817
  %v1868 = vsel %vm1850, %v1755, %v1819
  %v1869 = vsel %vm1850, %v1757, %v1821
  %v1870 = vsel %vm1850, %v1759, %v1823
  %v1871 = vsel %vm1850, %v1761, %v1825
  %v1872 = vsel %vm1850, %v1763, %v1827
  %v1873 = vsel %vm1850, %v1765, %v1829
  %v1874 = vsel %vm1850, %v1767, %v1831
  %v1875 = vsel %vm1850, %v1769, %v1833
  %v1876 = vsel %vm1850, %v1771, %v1835
  %v1877 = vsel %vm1850, %v1773, %v1837
  %v1878 = vsel %vm1850, %v1775, %v1839
  %v1879 = vsel %vm1850, %v1777, %v1841
  %v1880 = vsel %vm1850, %v1779, %v1843
  %v1881 = vsel %vm1850, %v1781, %v1845
  %v1882 = vsel %vm1850, %v1783, %v1847
  %v1883 = vsel %vm1850, %v1785, %v1721
  %v1884 = vsel %vm1850, %v1787, %v1723
  %v1885 = vsel %vm1850, %v1789, %v1725
  %v1886 = vsel %vm1850, %v1791, %v1727
  %v1887 = vsel %vm1850, %v1793, %v1729
  %v1888 = vsel %vm1850, %v1795, %v1731
  %v1889 = vsel %vm1850, %v1797, %v1733
  %v1890 = vsel %vm1850, %v1799, %v1735
  %v1891 = vsel %vm1850, %v1801, %v1737
  %v1892 = vsel %vm1850, %v1803, %v1739
  %v1893 = vsel %vm1850, %v1805, %v1741
  %v1894 = vsel %vm1850, %v1807, %v1743
  %v1895 = vsel %vm1850, %v1809, %v1745
  %v1896 = vsel %vm1850, %v1811, %v1747
  %v1897 = vsel %vm1850, %v1813, %v1749
  %v1898 = vsel %vm1850, %v1815, %v1751
  %v1899 = vsel %vm1850, %v1817, %v1753
  %v1900 = vsel %vm1850, %v1819, %v1755
  %v1901 = vsel %vm1850, %v1821, %v1757
  %v1902 = vsel %vm1850, %v1823, %v1759
  %v1903 = vsel %vm1850, %v1825, %v1761
  %v1904 = vsel %vm1850, %v1827, %v1763
  %v1905 = vsel %vm1850, %v1829, %v1765
  %v1906 = vsel %vm1850, %v1831, %v1767
  %v1907 = vsel %vm1850, %v1833, %v1769
  %v1908 = vsel %vm1850, %v1835, %v1771
  %v1909 = vsel %vm1850, %v1837, %v1773
  %v1910 = vsel %vm1850, %v1839, %v1775
  %v1911 = vsel %vm1850, %v1841, %v1777
  %v1912 = vsel %vm1850, %v1843, %v1779
  %v1913 = vsel %vm1850, %v1845, %v1781
  %v1914 = vsel %vm1850, %v1847, %v1783
  %v1915 = vmax.f32 %v1656, %v1851
  %v1916 = vmax.f32 %v1657, %v1883
  %v1917 = vmax.f32 %v1658, %v1852
  %v1918 = vmax.f32 %v1659, %v1884
  %v1919 = vmax.f32 %v1660, %v1853
  %v1920 = vmax.f32 %v1661, %v1885
  %v1921 = vmax.f32 %v1662, %v1854
  %v1922 = vmax.f32 %v1663, %v1886
  %v1923 = vmax.f32 %v1664, %v1855
  %v1924 = vmax.f32 %v1665, %v1887
  %v1925 = vmax.f32 %v1666, %v1856
  %v1926 = vmax.f32 %v1667, %v1888
  %v1927 = vmax.f32 %v1668, %v1857
  %v1928 = vmax.f32 %v1669, %v1889
  %v1929 = vmax.f32 %v1670, %v1858
  %v1930 = vmax.f32 %v1671, %v1890
  %v1931 = vmax.f32 %v1672, %v1859
  %v1932 = vmax.f32 %v1673, %v1891
  %v1933 = vmax.f32 %v1674, %v1860
  %v1934 = vmax.f32 %v1675, %v1892
  %v1935 = vmax.f32 %v1676, %v1861
  %v1936 = vmax.f32 %v1677, %v1893
  %v1937 = vmax.f32 %v1678, %v1862
  %v1938 = vmax.f32 %v1679, %v1894
  %v1939 = vmax.f32 %v1680, %v1863
  %v1940 = vmax.f32 %v1681, %v1895
  %v1941 = vmax.f32 %v1682, %v1864
  %v1942 = vmax.f32 %v1683, %v1896
  %v1943 = vmax.f32 %v1684, %v1865
  %v1944 = vmax.f32 %v1685, %v1897
  %v1945 = vmax.f32 %v1686, %v1866
  %v1946 = vmax.f32 %v1687, %v1898
  %v1947 = vmax.f32 %v1688, %v1867
  %v1948 = vmax.f32 %v1689, %v1899
  %v1949 = vmax.f32 %v1690, %v1868
  %v1950 = vmax.f32 %v1691, %v1900
  %v1951 = vmax.f32 %v1692, %v1869
  %v1952 = vmax.f32 %v1693, %v1901
  %v1953 = vmax.f32 %v1694, %v1870
  %v1954 = vmax.f32 %v1695, %v1902
  %v1955 = vmax.f32 %v1696, %v1871
  %v1956 = vmax.f32 %v1697, %v1903
  %v1957 = vmax.f32 %v1698, %v1872
  %v1958 = vmax.f32 %v1699, %v1904
  %v1959 = vmax.f32 %v1700, %v1873
  %v1960 = vmax.f32 %v1701, %v1905
  %v1961 = vmax.f32 %v1702, %v1874
  %v1962 = vmax.f32 %v1703, %v1906
  %v1963 = vmax.f32 %v1704, %v1875
  %v1964 = vmax.f32 %v1705, %v1907
  %v1965 = vmax.f32 %v1706, %v1876
  %v1966 = vmax.f32 %v1707, %v1908
  %v1967 = vmax.f32 %v1708, %v1877
  %v1968 = vmax.f32 %v1709, %v1909
  %v1969 = vmax.f32 %v1710, %v1878
  %v1970 = vmax.f32 %v1711, %v1910
  %v1971 = vmax.f32 %v1712, %v1879
  %v1972 = vmax.f32 %v1713, %v1911
  %v1973 = vmax.f32 %v1714, %v1880
  %v1974 = vmax.f32 %v1715, %v1912
  %v1975 = vmax.f32 %v1716, %v1881
  %v1976 = vmax.f32 %v1717, %v1913
  %v1977 = vmax.f32 %v1718, %v1882
  %v1978 = vmax.f32 %v1719, %v1914
  %vm2043 = vcmask 1041408
  %v2044 = vrot.slane %v1915, 6
  %v2045 = vrot.slane %v1916, 6
  %v2046 = vrot.slane %v1917, 6
  %v2047 = vsel %vm2043, %v2044, %v2046
  %v2048 = vrot.slane %v1918, 6
  %v2049 = vsel %vm2043, %v2045, %v2048
  %v2050 = vrot.slane %v1919, 6
  %v2051 = vrot.slane %v1920, 6
  %v2052 = vrot.slane %v1921, 6
  %v2053 = vsel %vm2043, %v2050, %v2052
  %v2054 = vrot.slane %v1922, 6
  %v2055 = vsel %vm2043, %v2051, %v2054
  %v2056 = vrot.slane %v1923, 6
  %v2057 = vrot.slane %v1924, 6
  %v2058 = vrot.slane %v1925, 6
  %v2059 = vsel %vm2043, %v2056, %v2058
  %v2060 = vrot.slane %v1926, 6
  %v2061 = vsel %vm2043, %v2057, %v2060
  %v2062 = vrot.slane %v1927, 6
  %v2063 = vrot.slane %v1928, 6
  %v2064 = vrot.slane %v1929, 6
  %v2065 = vsel %vm2043, %v2062, %v2064
  %v2066 = vrot.slane %v1930, 6
  %v2067 = vsel %vm2043, %v2063, %v2066
  %v2068 = vrot.slane %v1931, 6
  %v2069 = vrot.slane %v1932, 6
  %v2070 = vrot.slane %v1933, 6
  %v2071 = vsel %vm2043, %v2068, %v2070
  %v2072 = vrot.slane %v1934, 6
  %v2073 = vsel %vm2043, %v2069, %v2072
  %v2074 = vrot.slane %v1935, 6
  %v2075 = vrot.slane %v1936, 6
  %v2076 = vrot.slane %v1937, 6
  %v2077 = vsel %vm2043, %v2074, %v2076
  %v2078 = vrot.slane %v1938, 6
  %v2079 = vsel %vm2043, %v2075, %v2078
  %v2080 = vrot.slane %v1939, 6
  %v2081 = vrot.slane %v1940, 6
  %v2082 = vrot.slane %v1941, 6
  %v2083 = vsel %vm2043, %v2080, %v2082
  %v2084 = vrot.slane %v1942, 6
  %v2085 = vsel %vm2043, %v2081, %v2084
  %v2086 = vrot.slane %v1943, 6
  %v2087 = vrot.slane %v1944, 6
  %v2088 = vrot.slane %v1945, 6
  %v2089 = vsel %vm2043, %v2086, %v2088
  %v2090 = vrot.slane %v1946, 6
  %v2091 = vsel %vm2043, %v2087, %v2090
  %v2092 = vrot.slane %v1947, 6
  %v2093 = vrot.slane %v1948, 6
  %v2094 = vrot.slane %v1949, 6
  %v2095 = vsel %vm2043, %v2092, %v2094
  %v2096 = vrot.slane %v1950, 6
  %v2097 = vsel %vm2043, %v2093, %v2096
  %v2098 = vrot.slane %v1951, 6
  %v2099 = vrot.slane %v1952, 6
  %v2100 = vrot.slane %v1953, 6
  %v2101 = vsel %vm2043, %v2098, %v2100
  %v2102 = vrot.slane %v1954, 6
  %v2103 = vsel %vm2043, %v2099, %v2102
  %v2104 = vrot.slane %v1955, 6
  %v2105 = vrot.slane %v1956, 6
  %v2106 = vrot.slane %v1957, 6
  %v2107 = vsel %vm2043, %v2104, %v2106
  %v2108 = vrot.slane %v1958, 6
  %v2109 = vsel %vm2043, %v2105, %v2108
  %v2110 = vrot.slane %v1959, 6
  %v2111 = vrot.slane %v1960, 6
  %v2112 = vrot.slane %v1961, 6
  %v2113 = vsel %vm2043, %v2110, %v2112
  %v2114 = vrot.slane %v1962, 6
  %v2115 = vsel %vm2043, %v2111, %v2114
  %v2116 = vrot.slane %v1963, 6
  %v2117 = vrot.slane %v1964, 6
  %v2118 = vrot.slane %v1965, 6
  %v2119 = vsel %vm2043, %v2116, %v2118
  %v2120 = vrot.slane %v1966, 6
  %v2121 = vsel %vm2043, %v2117, %v2120
  %v2122 = vrot.slane %v1967, 6
  %v2123 = vrot.slane %v1968, 6
  %v2124 = vrot.slane %v1969, 6
  %v2125 = vsel %vm2043, %v2122, %v2124
  %v2126 = vrot.slane %v1970, 6
  %v2127 = vsel %vm2043, %v2123, %v2126
  %v2128 = vrot.slane %v1971, 6
  %v2129 = vrot.slane %v1972, 6
  %v2130 = vrot.slane %v1973, 6
  %v2131 = vsel %vm2043, %v2128, %v2130
  %v2132 = vrot.slane %v1974, 6
  %v2133 = vsel %vm2043, %v2129, %v2132
  %v2134 = vrot.slane %v1975, 6
  %v2135 = vrot.slane %v1976, 6
  %v2136 = vrot.slane %v1977, 6
  %v2137 = vsel %vm2043, %v2134, %v2136
  %v2138 = vrot.slane %v1978, 6
  %v2139 = vsel %vm2043, %v2135, %v2138
  %v2236 = vsel %vm2043, 0.0, %v2044
  %v2237 = vsel %vm2043, 0.0, %v2045
  %v2238 = vsel %vm2043, 0.0, %v2050
  %v2239 = vsel %vm2043, 0.0, %v2051
  %v2240 = vsel %vm2043, 0.0, %v2056
  %v2241 = vsel %vm2043, 0.0, %v2057
  %v2242 = vsel %vm2043, 0.0, %v2062
  %v2243 = vsel %vm2043, 0.0, %v2063
  %v2244 = vsel %vm2043, 0.0, %v2068
  %v2245 = vsel %vm2043, 0.0, %v2069
  %v2246 = vsel %vm2043, 0.0, %v2074
  %v2247 = vsel %vm2043, 0.0, %v2075
  %v2248 = vsel %vm2043, 0.0, %v2080
  %v2249 = vsel %vm2043, 0.0, %v2081
  %v2250 = vsel %vm2043, 0.0, %v2086
  %v2251 = vsel %vm2043, 0.0, %v2087
  %v2252 = vsel %vm2043, 0.0, %v2092
  %v2253 = vsel %vm2043, 0.0, %v2093
  %v2254 = vsel %vm2043, 0.0, %v2098
  %v2255 = vsel %vm2043, 0.0, %v2099
  %v2256 = vsel %vm2043, 0.0, %v2104
  %v2257 = vsel %vm2043, 0.0, %v2105
  %v2258 = vsel %vm2043, 0.0, %v2110
  %v2259 = vsel %vm2043, 0.0, %v2111
  %v2260 = vsel %vm2043, 0.0, %v2116
  %v2261 = vsel %vm2043, 0.0, %v2117
  %v2262 = vsel %vm2043, 0.0, %v2122
  %v2263 = vsel %vm2043, 0.0, %v2123
  %v2264 = vsel %vm2043, 0.0, %v2128
  %v2265 = vsel %vm2043, 0.0, %v2129
  %v2266 = vsel %vm2043, 0.0, %v2134
  %v2267 = vsel %vm2043, 0.0, %v2135
  %v2268 = vsel %vm2043, %v2046, 0.0
  %v2269 = vsel %vm2043, %v2048, 0.0
  %v2270 = vsel %vm2043, %v2052, 0.0
  %v2271 = vsel %vm2043, %v2054, 0.0
  %v2272 = vsel %vm2043, %v2058, 0.0
  %v2273 = vsel %vm2043, %v2060, 0.0
  %v2274 = vsel %vm2043, %v2064, 0.0
  %v2275 = vsel %vm2043, %v2066, 0.0
  %v2276 = vsel %vm2043, %v2070, 0.0
  %v2277 = vsel %vm2043, %v2072, 0.0
  %v2278 = vsel %vm2043, %v2076, 0.0
  %v2279 = vsel %vm2043, %v2078, 0.0
  %v2280 = vsel %vm2043, %v2082, 0.0
  %v2281 = vsel %vm2043, %v2084, 0.0
  %v2282 = vsel %vm2043, %v2088, 0.0
  %v2283 = vsel %vm2043, %v2090, 0.0
  %v2284 = vsel %vm2043, %v2094, 0.0
  %v2285 = vsel %vm2043, %v2096, 0.0
  %v2286 = vsel %vm2043, %v2100, 0.0
  %v2287 = vsel %vm2043, %v2102, 0.0
  %v2288 = vsel %vm2043, %v2106, 0.0
  %v2289 = vsel %vm2043, %v2108, 0.0
  %v2290 = vsel %vm2043, %v2112, 0.0
  %v2291 = vsel %vm2043, %v2114, 0.0
  %v2292 = vsel %vm2043, %v2118, 0.0
  %v2293 = vsel %vm2043, %v2120, 0.0
  %v2294 = vsel %vm2043, %v2124, 0.0
  %v2295 = vsel %vm2043, %v2126, 0.0
  %v2296 = vsel %vm2043, %v2130, 0.0
  %v2297 = vsel %vm2043, %v2132, 0.0
  %v2298 = vsel %vm2043, %v2136, 0.0
  %v2299 = vsel %vm2043, %v2138, 0.0
  %v2300 = vld [vmem:[%s3] sm:$0xff]
  %v2301 = vld [vmem:[%s3 + $0x8] sm:$0xff]
  %v2302 = vld [vmem:[%s3 + $0x10] sm:$0xff]
  %v2303 = vld [vmem:[%s3 + $0x18] sm:$0xff]
  %v2304 = vld [vmem:[%s3 + $0x20] sm:$0xff]
  %v2305 = vld [vmem:[%s3 + $0x28] sm:$0xff]
  %v2306 = vld [vmem:[%s3 + $0x30] sm:$0xff]
  %v2307 = vld [vmem:[%s3 + $0x38] sm:$0xff]
  %v2308 = vld [vmem:[%s3 + $0x40] sm:$0xff]
  %v2309 = vld [vmem:[%s3 + $0x48] sm:$0xff]
  %v2310 = vld [vmem:[%s3 + $0x50] sm:$0xff]
  %v2311 = vld [vmem:[%s3 + $0x58] sm:$0xff]
  %v2312 = vld [vmem:[%s3 + $0x60] sm:$0xff]
  %v2313 = vld [vmem:[%s3 + $0x68] sm:$0xff]
  %v2314 = vld [vmem:[%s3 + $0x70] sm:$0xff]
  %v2315 = vld [vmem:[%s3 + $0x78] sm:$0xff]
  %v2316 = vld [vmem:[%s3 + $0x80] sm:$0xff]
  %v2317 = vld [vmem:[%s3 + $0x88] sm:$0xff]
  %v2318 = vld [vmem:[%s3 + $0x90] sm:$0xff]
  %v2319 = vld [vmem:[%s3 + $0x98] sm:$0xff]
  %v2320 = vld [vmem:[%s3 + $0xa0] sm:$0xff]
  %v2321 = vld [vmem:[%s3 + $0xa8] sm:$0xff]
  %v2322 = vld [vmem:[%s3 + $0xb0] sm:$0xff]
  %v2323 = vld [vmem:[%s3 + $0xb8] sm:$0xff]
  %v2324 = vld [vmem:[%s3 + $0xc0] sm:$0xff]
  %v2325 = vld [vmem:[%s3 + $0xc8] sm:$0xff]
  %v2326 = vld [vmem:[%s3 + $0xd0] sm:$0xff]
  %v2327 = vld [vmem:[%s3 + $0xd8] sm:$0xff]
  %v2328 = vld [vmem:[%s3 + $0xe0] sm:$0xff]
  %v2329 = vld [vmem:[%s3 + $0xe8] sm:$0xff]
  %v2330 = vld [vmem:[%s3 + $0xf0] sm:$0xff]
  %v2331 = vld [vmem:[%s3 + $0xf8] sm:$0xff]
  %v2332 = vld [vmem:[%s3 + $0x100] sm:$0xff]
  %v2333 = vld [vmem:[%s3 + $0x108] sm:$0xff]
  %v2334 = vld [vmem:[%s3 + $0x110] sm:$0xff]
  %v2335 = vld [vmem:[%s3 + $0x118] sm:$0xff]
  %v2336 = vld [vmem:[%s3 + $0x120] sm:$0xff]
  %v2337 = vld [vmem:[%s3 + $0x128] sm:$0xff]
  %v2338 = vld [vmem:[%s3 + $0x130] sm:$0xff]
  %v2339 = vld [vmem:[%s3 + $0x138] sm:$0xff]
  %v2340 = vld [vmem:[%s3 + $0x140] sm:$0xff]
  %v2341 = vld [vmem:[%s3 + $0x148] sm:$0xff]
  %v2342 = vld [vmem:[%s3 + $0x150] sm:$0xff]
  %v2343 = vld [vmem:[%s3 + $0x158] sm:$0xff]
  %v2344 = vld [vmem:[%s3 + $0x160] sm:$0xff]
  %v2345 = vld [vmem:[%s3 + $0x168] sm:$0xff]
  %v2346 = vld [vmem:[%s3 + $0x170] sm:$0xff]
  %v2347 = vld [vmem:[%s3 + $0x178] sm:$0xff]
  %v2348 = vld [vmem:[%s3 + $0x180] sm:$0xff]
  %v2349 = vld [vmem:[%s3 + $0x188] sm:$0xff]
  %v2350 = vld [vmem:[%s3 + $0x190] sm:$0xff]
  %v2351 = vld [vmem:[%s3 + $0x198] sm:$0xff]
  %v2352 = vld [vmem:[%s3 + $0x1a0] sm:$0xff]
  %v2353 = vld [vmem:[%s3 + $0x1a8] sm:$0xff]
  %v2354 = vld [vmem:[%s3 + $0x1b0] sm:$0xff]
  %v2355 = vld [vmem:[%s3 + $0x1b8] sm:$0xff]
  %v2356 = vld [vmem:[%s3 + $0x1c0] sm:$0xff]
  %v2357 = vld [vmem:[%s3 + $0x1c8] sm:$0xff]
  %v2358 = vld [vmem:[%s3 + $0x1d0] sm:$0xff]
  %v2359 = vld [vmem:[%s3 + $0x1d8] sm:$0xff]
  %v2360 = vld [vmem:[%s3 + $0x1e0] sm:$0xff]
  %v2361 = vld [vmem:[%s3 + $0x1e8] sm:$0xff]
  %v2362 = vld [vmem:[%s3 + $0x1f0] sm:$0xff]
  %v2363 = vld [vmem:[%s3 + $0x1f8] sm:$0xff]
  %v2428 = vrot.slane %v2236, 2
  %v2429 = vrot.slane %v2047, 2
  %v2430 = vsel %vm902, %v2428, %v2429
  %v2431 = vrot.slane %v2237, 2
  %v2432 = vrot.slane %v2049, 2
  %v2433 = vsel %vm902, %v2431, %v2432
  %v2434 = vrot.slane %v2268, 2
  %v2435 = vsel %vm902, %v2429, %v2434
  %v2436 = vrot.slane %v2269, 2
  %v2437 = vsel %vm902, %v2432, %v2436
  %v2438 = vrot.slane %v2238, 2
  %v2439 = vrot.slane %v2053, 2
  %v2440 = vsel %vm902, %v2438, %v2439
  %v2441 = vrot.slane %v2239, 2
  %v2442 = vrot.slane %v2055, 2
  %v2443 = vsel %vm902, %v2441, %v2442
  %v2444 = vrot.slane %v2270, 2
  %v2445 = vsel %vm902, %v2439, %v2444
  %v2446 = vrot.slane %v2271, 2
  %v2447 = vsel %vm902, %v2442, %v2446
  %v2448 = vrot.slane %v2240, 2
  %v2449 = vrot.slane %v2059, 2
  %v2450 = vsel %vm902, %v2448, %v2449
  %v2451 = vrot.slane %v2241, 2
  %v2452 = vrot.slane %v2061, 2
  %v2453 = vsel %vm902, %v2451, %v2452
  %v2454 = vrot.slane %v2272, 2
  %v2455 = vsel %vm902, %v2449, %v2454
  %v2456 = vrot.slane %v2273, 2
  %v2457 = vsel %vm902, %v2452, %v2456
  %v2458 = vrot.slane %v2242, 2
  %v2459 = vrot.slane %v2065, 2
  %v2460 = vsel %vm902, %v2458, %v2459
  %v2461 = vrot.slane %v2243, 2
  %v2462 = vrot.slane %v2067, 2
  %v2463 = vsel %vm902, %v2461, %v2462
  %v2464 = vrot.slane %v2274, 2
  %v2465 = vsel %vm902, %v2459, %v2464
  %v2466 = vrot.slane %v2275, 2
  %v2467 = vsel %vm902, %v2462, %v2466
  %v2468 = vrot.slane %v2244, 2
  %v2469 = vrot.slane %v2071, 2
  %v2470 = vsel %vm902, %v2468, %v2469
  %v2471 = vrot.slane %v2245, 2
  %v2472 = vrot.slane %v2073, 2
  %v2473 = vsel %vm902, %v2471, %v2472
  %v2474 = vrot.slane %v2276, 2
  %v2475 = vsel %vm902, %v2469, %v2474
  %v2476 = vrot.slane %v2277, 2
  %v2477 = vsel %vm902, %v2472, %v2476
  %v2478 = vrot.slane %v2246, 2
  %v2479 = vrot.slane %v2077, 2
  %v2480 = vsel %vm902, %v2478, %v2479
  %v2481 = vrot.slane %v2247, 2
  %v2482 = vrot.slane %v2079, 2
  %v2483 = vsel %vm902, %v2481, %v2482
  %v2484 = vrot.slane %v2278, 2
  %v2485 = vsel %vm902, %v2479, %v2484
  %v2486 = vrot.slane %v2279, 2
  %v2487 = vsel %vm902, %v2482, %v2486
  %v2488 = vrot.slane %v2248, 2
  %v2489 = vrot.slane %v2083, 2
  %v2490 = vsel %vm902, %v2488, %v2489
  %v2491 = vrot.slane %v2249, 2
  %v2492 = vrot.slane %v2085, 2
  %v2493 = vsel %vm902, %v2491, %v2492
  %v2494 = vrot.slane %v2280, 2
  %v2495 = vsel %vm902, %v2489, %v2494
  %v2496 = vrot.slane %v2281, 2
  %v2497 = vsel %vm902, %v2492, %v2496
  %v2498 = vrot.slane %v2250, 2
  %v2499 = vrot.slane %v2089, 2
  %v2500 = vsel %vm902, %v2498, %v2499
  %v2501 = vrot.slane %v2251, 2
  %v2502 = vrot.slane %v2091, 2
  %v2503 = vsel %vm902, %v2501, %v2502
  %v2504 = vrot.slane %v2282, 2
  %v2505 = vsel %vm902, %v2499, %v2504
  %v2506 = vrot.slane %v2283, 2
  %v2507 = vsel %vm902, %v2502, %v2506
  %v2508 = vrot.slane %v2252, 2
  %v2509 = vrot.slane %v2095, 2
  %v2510 = vsel %vm902, %v2508, %v2509
  %v2511 = vrot.slane %v2253, 2
  %v2512 = vrot.slane %v2097, 2
  %v2513 = vsel %vm902, %v2511, %v2512
  %v2514 = vrot.slane %v2284, 2
  %v2515 = vsel %vm902, %v2509, %v2514
  %v2516 = vrot.slane %v2285, 2
  %v2517 = vsel %vm902, %v2512, %v2516
  %v2518 = vrot.slane %v2254, 2
  %v2519 = vrot.slane %v2101, 2
  %v2520 = vsel %vm902, %v2518, %v2519
  %v2521 = vrot.slane %v2255, 2
  %v2522 = vrot.slane %v2103, 2
  %v2523 = vsel %vm902, %v2521, %v2522
  %v2524 = vrot.slane %v2286, 2
  %v2525 = vsel %vm902, %v2519, %v2524
  %v2526 = vrot.slane %v2287, 2
  %v2527 = vsel %vm902, %v2522, %v2526
  %v2528 = vrot.slane %v2256, 2
  %v2529 = vrot.slane %v2107, 2
  %v2530 = vsel %vm902, %v2528, %v2529
  %v2531 = vrot.slane %v2257, 2
  %v2532 = vrot.slane %v2109, 2
  %v2533 = vsel %vm902, %v2531, %v2532
  %v2534 = vrot.slane %v2288, 2
  %v2535 = vsel %vm902, %v2529, %v2534
  %v2536 = vrot.slane %v2289, 2
  %v2537 = vsel %vm902, %v2532, %v2536
  %v2538 = vrot.slane %v2258, 2
  %v2539 = vrot.slane %v2113, 2
  %v2540 = vsel %vm902, %v2538, %v2539
  %v2541 = vrot.slane %v2259, 2
  %v2542 = vrot.slane %v2115, 2
  %v2543 = vsel %vm902, %v2541, %v2542
  %v2544 = vrot.slane %v2290, 2
  %v2545 = vsel %vm902, %v2539, %v2544
  %v2546 = vrot.slane %v2291, 2
  %v2547 = vsel %vm902, %v2542, %v2546
  %v2548 = vrot.slane %v2260, 2
  %v2549 = vrot.slane %v2119, 2
  %v2550 = vsel %vm902, %v2548, %v2549
  %v2551 = vrot.slane %v2261, 2
  %v2552 = vrot.slane %v2121, 2
  %v2553 = vsel %vm902, %v2551, %v2552
  %v2554 = vrot.slane %v2292, 2
  %v2555 = vsel %vm902, %v2549, %v2554
  %v2556 = vrot.slane %v2293, 2
  %v2557 = vsel %vm902, %v2552, %v2556
  %v2558 = vrot.slane %v2262, 2
  %v2559 = vrot.slane %v2125, 2
  %v2560 = vsel %vm902, %v2558, %v2559
  %v2561 = vrot.slane %v2263, 2
  %v2562 = vrot.slane %v2127, 2
  %v2563 = vsel %vm902, %v2561, %v2562
  %v2564 = vrot.slane %v2294, 2
  %v2565 = vsel %vm902, %v2559, %v2564
  %v2566 = vrot.slane %v2295, 2
  %v2567 = vsel %vm902, %v2562, %v2566
  %v2568 = vrot.slane %v2264, 2
  %v2569 = vrot.slane %v2131, 2
  %v2570 = vsel %vm902, %v2568, %v2569
  %v2571 = vrot.slane %v2265, 2
  %v2572 = vrot.slane %v2133, 2
  %v2573 = vsel %vm902, %v2571, %v2572
  %v2574 = vrot.slane %v2296, 2
  %v2575 = vsel %vm902, %v2569, %v2574
  %v2576 = vrot.slane %v2297, 2
  %v2577 = vsel %vm902, %v2572, %v2576
  %v2578 = vrot.slane %v2266, 2
  %v2579 = vrot.slane %v2137, 2
  %v2580 = vsel %vm902, %v2578, %v2579
  %v2581 = vrot.slane %v2267, 2
  %v2582 = vrot.slane %v2139, 2
  %v2583 = vsel %vm902, %v2581, %v2582
  %v2584 = vrot.slane %v2298, 2
  %v2585 = vsel %vm902, %v2579, %v2584
  %v2586 = vrot.slane %v2299, 2
  %v2587 = vsel %vm902, %v2582, %v2586
  %s2652 = scalar_lea.vmem %s3, 512
  %v2653 = vld [vmem:[%s2652] sm:$0xff]
  %v2654 = vld [vmem:[%s2652 + $0x8] sm:$0xff]
  %v2655 = vld [vmem:[%s2652 + $0x10] sm:$0xff]
  %v2656 = vld [vmem:[%s2652 + $0x18] sm:$0xff]
  %v2657 = vld [vmem:[%s2652 + $0x20] sm:$0xff]
  %v2658 = vld [vmem:[%s2652 + $0x28] sm:$0xff]
  %v2659 = vld [vmem:[%s2652 + $0x30] sm:$0xff]
  %v2660 = vld [vmem:[%s2652 + $0x38] sm:$0xff]
  %v2661 = vld [vmem:[%s2652 + $0x40] sm:$0xff]
  %v2662 = vld [vmem:[%s2652 + $0x48] sm:$0xff]
  %v2663 = vld [vmem:[%s2652 + $0x50] sm:$0xff]
  %v2664 = vld [vmem:[%s2652 + $0x58] sm:$0xff]
  %v2665 = vld [vmem:[%s2652 + $0x60] sm:$0xff]
  %v2666 = vld [vmem:[%s2652 + $0x68] sm:$0xff]
  %v2667 = vld [vmem:[%s2652 + $0x70] sm:$0xff]
  %v2668 = vld [vmem:[%s2652 + $0x78] sm:$0xff]
  %v2669 = vld [vmem:[%s2652 + $0x80] sm:$0xff]
  %v2670 = vld [vmem:[%s2652 + $0x88] sm:$0xff]
  %v2671 = vld [vmem:[%s2652 + $0x90] sm:$0xff]
  %v2672 = vld [vmem:[%s2652 + $0x98] sm:$0xff]
  %v2673 = vld [vmem:[%s2652 + $0xa0] sm:$0xff]
  %v2674 = vld [vmem:[%s2652 + $0xa8] sm:$0xff]
  %v2675 = vld [vmem:[%s2652 + $0xb0] sm:$0xff]
  %v2676 = vld [vmem:[%s2652 + $0xb8] sm:$0xff]
  %v2677 = vld [vmem:[%s2652 + $0xc0] sm:$0xff]
  %v2678 = vld [vmem:[%s2652 + $0xc8] sm:$0xff]
  %v2679 = vld [vmem:[%s2652 + $0xd0] sm:$0xff]
  %v2680 = vld [vmem:[%s2652 + $0xd8] sm:$0xff]
  %v2681 = vld [vmem:[%s2652 + $0xe0] sm:$0xff]
  %v2682 = vld [vmem:[%s2652 + $0xe8] sm:$0xff]
  %v2683 = vld [vmem:[%s2652 + $0xf0] sm:$0xff]
  %v2684 = vld [vmem:[%s2652 + $0xf8] sm:$0xff]
  %v2685 = vld [vmem:[%s2652 + $0x100] sm:$0xff]
  %v2686 = vld [vmem:[%s2652 + $0x108] sm:$0xff]
  %v2687 = vld [vmem:[%s2652 + $0x110] sm:$0xff]
  %v2688 = vld [vmem:[%s2652 + $0x118] sm:$0xff]
  %v2689 = vld [vmem:[%s2652 + $0x120] sm:$0xff]
  %v2690 = vld [vmem:[%s2652 + $0x128] sm:$0xff]
  %v2691 = vld [vmem:[%s2652 + $0x130] sm:$0xff]
  %v2692 = vld [vmem:[%s2652 + $0x138] sm:$0xff]
  %v2693 = vld [vmem:[%s2652 + $0x140] sm:$0xff]
  %v2694 = vld [vmem:[%s2652 + $0x148] sm:$0xff]
  %v2695 = vld [vmem:[%s2652 + $0x150] sm:$0xff]
  %v2696 = vld [vmem:[%s2652 + $0x158] sm:$0xff]
  %v2697 = vld [vmem:[%s2652 + $0x160] sm:$0xff]
  %v2698 = vld [vmem:[%s2652 + $0x168] sm:$0xff]
  %v2699 = vld [vmem:[%s2652 + $0x170] sm:$0xff]
  %v2700 = vld [vmem:[%s2652 + $0x178] sm:$0xff]
  %v2701 = vld [vmem:[%s2652 + $0x180] sm:$0xff]
  %v2702 = vld [vmem:[%s2652 + $0x188] sm:$0xff]
  %v2703 = vld [vmem:[%s2652 + $0x190] sm:$0xff]
  %v2704 = vld [vmem:[%s2652 + $0x198] sm:$0xff]
  %v2705 = vld [vmem:[%s2652 + $0x1a0] sm:$0xff]
  %v2706 = vld [vmem:[%s2652 + $0x1a8] sm:$0xff]
  %v2707 = vld [vmem:[%s2652 + $0x1b0] sm:$0xff]
  %v2708 = vld [vmem:[%s2652 + $0x1b8] sm:$0xff]
  %v2709 = vld [vmem:[%s2652 + $0x1c0] sm:$0xff]
  %v2710 = vld [vmem:[%s2652 + $0x1c8] sm:$0xff]
  %v2711 = vld [vmem:[%s2652 + $0x1d0] sm:$0xff]
  %v2712 = vld [vmem:[%s2652 + $0x1d8] sm:$0xff]
  %v2713 = vld [vmem:[%s2652 + $0x1e0] sm:$0xff]
  %v2714 = vld [vmem:[%s2652 + $0x1e8] sm:$0xff]
  %v2715 = vld [vmem:[%s2652 + $0x1f0] sm:$0xff]
  %v2716 = vld [vmem:[%s2652 + $0x1f8] sm:$0xff]
  %2717 = vmatprep.subr.mxu0 %v2654
  %2718 = vmatpush1.msra.mxu0 %v2653
  %2719 = vmatprep.subr.mxu0 %v2656
  %2720 = vmatpush1.msra.mxu0 %v2655
  %2721 = vmatprep.subr.mxu0 %v2658
  %2722 = vmatpush1.msra.mxu0 %v2657
  %2723 = vmatprep.subr.mxu0 %v2660
  %2724 = vmatpush1.msra.mxu0 %v2659
  %2725 = vmatprep.subr.mxu0 %v2662
  %2726 = vmatpush1.msra.mxu0 %v2661
  %2727 = vmatprep.subr.mxu0 %v2664
  %2728 = vmatpush1.msra.mxu0 %v2663
  %2729 = vmatprep.subr.mxu0 %v2666
  %2730 = vmatpush1.msra.mxu0 %v2665
  %2731 = vmatprep.subr.mxu0 %v2668
  %2732 = vmatpush1.msra.mxu0 %v2667
  %2733 = vmatprep.subr.mxu0 %v2670
  %2734 = vmatpush1.msra.mxu0 %v2669
  %2735 = vmatprep.subr.mxu0 %v2672
  %2736 = vmatpush1.msra.mxu0 %v2671
  %2737 = vmatprep.subr.mxu0 %v2674
  %2738 = vmatpush1.msra.mxu0 %v2673
  %2739 = vmatprep.subr.mxu0 %v2676
  %2740 = vmatpush1.msra.mxu0 %v2675
  %2741 = vmatprep.subr.mxu0 %v2678
  %2742 = vmatpush1.msra.mxu0 %v2677
  %2743 = vmatprep.subr.mxu0 %v2680
  %2744 = vmatpush1.msra.mxu0 %v2679
  %2745 = vmatprep.subr.mxu0 %v2682
  %2746 = vmatpush1.msra.mxu0 %v2681
  %2747 = vmatprep.subr.mxu0 %v2684
  %2748 = vmatpush1.msra.mxu0 %v2683
  %2749 = vmatprep.subr.mxu0 %v2686
  %2750 = vmatpush1.msra.mxu0 %v2685
  %2751 = vmatprep.subr.mxu0 %v2688
  %2752 = vmatpush1.msra.mxu0 %v2687
  %2753 = vmatprep.subr.mxu0 %v2690
  %2754 = vmatpush1.msra.mxu0 %v2689
  %2755 = vmatprep.subr.mxu0 %v2692
  %2756 = vmatpush1.msra.mxu0 %v2691
  %2757 = vmatprep.subr.mxu0 %v2694
  %2758 = vmatpush1.msra.mxu0 %v2693
  %2759 = vmatprep.subr.mxu0 %v2696
  %2760 = vmatpush1.msra.mxu0 %v2695
  %2761 = vmatprep.subr.mxu0 %v2698
  %2762 = vmatpush1.msra.mxu0 %v2697
  %2763 = vmatprep.subr.mxu0 %v2700
  %2764 = vmatpush1.msra.mxu0 %v2699
  %2765 = vmatprep.subr.mxu0 %v2702
  %2766 = vmatpush1.msra.mxu0 %v2701
  %2767 = vmatprep.subr.mxu0 %v2704
  %2768 = vmatpush1.msra.mxu0 %v2703
  %2769 = vmatprep.subr.mxu0 %v2706
  %2770 = vmatpush1.msra.mxu0 %v2705
  %2771 = vmatprep.subr.mxu0 %v2708
  %2772 = vmatpush1.msra.mxu0 %v2707
  %2773 = vmatprep.subr.mxu0 %v2710
  %2774 = vmatpush1.msra.mxu0 %v2709
  %2775 = vmatprep.subr.mxu0 %v2712
  %2776 = vmatpush1.msra.mxu0 %v2711
  %2777 = vmatprep.subr.mxu0 %v2714
  %2778 = vmatpush1.msra.mxu0 %v2713
  %2779 = vmatprep.subr.mxu0 %v2716
  %2780 = vmatpush1.msra.mxu0 %v2715
  %2781 = vmatprep.mubr.f32.mxu0 %v2433
  %2782 = vmatmul.mubr.f32.gmra.mrb[0].mxu0 %v2430
  %v2783 = vpop.f32.mrb[0].mxu0
  %v2784 = vadd.f32 0.0, %v2783
  %v2785 = vpop.f32.mrb[0].mxu0
  %v2786 = vadd.f32 0.0, %v2785
  %2787 = vmatprep.mubr.f32.mxu0 %v2437
  %2788 = vmatmul.mubr.f32.gmra.mrb[0].mxu0 %v2435
  %v2789 = vpop.f32.mrb[0].mxu0
  %v2790 = vadd.f32 0.0, %v2789
  %v2791 = vpop.f32.mrb[0].mxu0
  %v2792 = vadd.f32 0.0, %v2791
  %2793 = vmatprep.mubr.f32.mxu0 %v2443
  %2794 = vmatmul.mubr.f32.gmra.mrb[0].mxu0 %v2440
  %v2795 = vpop.f32.mrb[0].mxu0
  %v2796 = vadd.f32 0.0, %v2795
  %v2797 = vpop.f32.mrb[0].mxu0
  %v2798 = vadd.f32 0.0, %v2797
  %2799 = vmatprep.mubr.f32.mxu0 %v2447
  %2800 = vmatmul.mubr.f32.gmra.mrb[0].mxu0 %v2445
  %v2801 = vpop.f32.mrb[0].mxu0
  %v2802 = vadd.f32 0.0, %v2801
  %v2803 = vpop.f32.mrb[0].mxu0
  %v2804 = vadd.f32 0.0, %v2803
  %2805 = vmatprep.mubr.f32.mxu0 %v2453
  %2806 = vmatmul.mubr.f32.gmra.mrb[0].mxu0 %v2450
  %v2807 = vpop.f32.mrb[0].mxu0
  %v2808 = vadd.f32 0.0, %v2807
  %v2809 = vpop.f32.mrb[0].mxu0
  %v2810 = vadd.f32 0.0, %v2809
  %2811 = vmatprep.mubr.f32.mxu0 %v2457
  %2812 = vmatmul.mubr.f32.gmra.mrb[0].mxu0 %v2455
  %v2813 = vpop.f32.mrb[0].mxu0
  %v2814 = vadd.f32 0.0, %v2813
  %v2815 = vpop.f32.mrb[0].mxu0
  %v2816 = vadd.f32 0.0, %v2815
  %2817 = vmatprep.mubr.f32.mxu0 %v2463
  %2818 = vmatmul.mubr.f32.gmra.mrb[0].mxu0 %v2460
  %v2819 = vpop.f32.mrb[0].mxu0
  %v2820 = vadd.f32 0.0, %v2819
  %v2821 = vpop.f32.mrb[0].mxu0
  %v2822 = vadd.f32 0.0, %v2821
  %2823 = vmatprep.mubr.f32.mxu0 %v2467
  %2824 = vmatmul.mubr.f32.gmra.mrb[0].mxu0 %v2465
  %v2825 = vpop.f32.mrb[0].mxu0
  %v2826 = vadd.f32 0.0, %v2825
  %v2827 = vpop.f32.mrb[0].mxu0
  %v2828 = vadd.f32 0.0, %v2827
  %2829 = vmatprep.mubr.f32.mxu0 %v2473
  %2830 = vmatmul.mubr.f32.gmra.mrb[0].mxu0 %v2470
  %v2831 = vpop.f32.mrb[0].mxu0
  %v2832 = vadd.f32 0.0, %v2831
  %v2833 = vpop.f32.mrb[0].mxu0
  %v2834 = vadd.f32 0.0, %v2833
  %2835 = vmatprep.mubr.f32.mxu0 %v2477
  %2836 = vmatmul.mubr.f32.gmra.mrb[0].mxu0 %v2475
  %v2837 = vpop.f32.mrb[0].mxu0
  %v2838 = vadd.f32 0.0, %v2837
  %v2839 = vpop.f32.mrb[0].mxu0
  %v2840 = vadd.f32 0.0, %v2839
  %2841 = vmatprep.mubr.f32.mxu0 %v2483
  %2842 = vmatmul.mubr.f32.gmra.mrb[0].mxu0 %v2480
  %v2843 = vpop.f32.mrb[0].mxu0
  %v2844 = vadd.f32 0.0, %v2843
  %v2845 = vpop.f32.mrb[0].mxu0
  %v2846 = vadd.f32 0.0, %v2845
  %2847 = vmatprep.mubr.f32.mxu0 %v2487
  %2848 = vmatmul.mubr.f32.gmra.mrb[0].mxu0 %v2485
  %v2849 = vpop.f32.mrb[0].mxu0
  %v2850 = vadd.f32 0.0, %v2849
  %v2851 = vpop.f32.mrb[0].mxu0
  %v2852 = vadd.f32 0.0, %v2851
  %2853 = vmatprep.mubr.f32.mxu0 %v2493
  %2854 = vmatmul.mubr.f32.gmra.mrb[0].mxu0 %v2490
  %v2855 = vpop.f32.mrb[0].mxu0
  %v2856 = vadd.f32 0.0, %v2855
  %v2857 = vpop.f32.mrb[0].mxu0
  %v2858 = vadd.f32 0.0, %v2857
  %2859 = vmatprep.mubr.f32.mxu0 %v2497
  %2860 = vmatmul.mubr.f32.gmra.mrb[0].mxu0 %v2495
  %v2861 = vpop.f32.mrb[0].mxu0
  %v2862 = vadd.f32 0.0, %v2861
  %v2863 = vpop.f32.mrb[0].mxu0
  %v2864 = vadd.f32 0.0, %v2863
  %2865 = vmatprep.mubr.f32.mxu0 %v2503
  %2866 = vmatmul.mubr.f32.gmra.mrb[0].mxu0 %v2500
  %v2867 = vpop.f32.mrb[0].mxu0
  %v2868 = vadd.f32 0.0, %v2867
  %v2869 = vpop.f32.mrb[0].mxu0
  %v2870 = vadd.f32 0.0, %v2869
  %2871 = vmatprep.mubr.f32.mxu0 %v2507
  %2872 = vmatmul.mubr.f32.gmra.mrb[0].mxu0 %v2505
  %v2873 = vpop.f32.mrb[0].mxu0
  %v2874 = vadd.f32 0.0, %v2873
  %v2875 = vpop.f32.mrb[0].mxu0
  %v2876 = vadd.f32 0.0, %v2875
  %2877 = vmatprep.mubr.f32.mxu0 %v2513
  %2878 = vmatmul.mubr.f32.gmra.mrb[0].mxu0 %v2510
  %v2879 = vpop.f32.mrb[0].mxu0
  %v2880 = vadd.f32 0.0, %v2879
  %v2881 = vpop.f32.mrb[0].mxu0
  %v2882 = vadd.f32 0.0, %v2881
  %2883 = vmatprep.mubr.f32.mxu0 %v2517
  %2884 = vmatmul.mubr.f32.gmra.mrb[0].mxu0 %v2515
  %v2885 = vpop.f32.mrb[0].mxu0
  %v2886 = vadd.f32 0.0, %v2885
  %v2887 = vpop.f32.mrb[0].mxu0
  %v2888 = vadd.f32 0.0, %v2887
  %2889 = vmatprep.mubr.f32.mxu0 %v2523
  %2890 = vmatmul.mubr.f32.gmra.mrb[0].mxu0 %v2520
  %v2891 = vpop.f32.mrb[0].mxu0
  %v2892 = vadd.f32 0.0, %v2891
  %v2893 = vpop.f32.mrb[0].mxu0
  %v2894 = vadd.f32 0.0, %v2893
  %2895 = vmatprep.mubr.f32.mxu0 %v2527
  %2896 = vmatmul.mubr.f32.gmra.mrb[0].mxu0 %v2525
  %v2897 = vpop.f32.mrb[0].mxu0
  %v2898 = vadd.f32 0.0, %v2897
  %v2899 = vpop.f32.mrb[0].mxu0
  %v2900 = vadd.f32 0.0, %v2899
  %2901 = vmatprep.mubr.f32.mxu0 %v2533
  %2902 = vmatmul.mubr.f32.gmra.mrb[0].mxu0 %v2530
  %v2903 = vpop.f32.mrb[0].mxu0
  %v2904 = vadd.f32 0.0, %v2903
  %v2905 = vpop.f32.mrb[0].mxu0
  %v2906 = vadd.f32 0.0, %v2905
  %2907 = vmatprep.mubr.f32.mxu0 %v2537
  %2908 = vmatmul.mubr.f32.gmra.mrb[0].mxu0 %v2535
  %v2909 = vpop.f32.mrb[0].mxu0
  %v2910 = vadd.f32 0.0, %v2909
  %v2911 = vpop.f32.mrb[0].mxu0
  %v2912 = vadd.f32 0.0, %v2911
  %2913 = vmatprep.mubr.f32.mxu0 %v2543
  %2914 = vmatmul.mubr.f32.gmra.mrb[0].mxu0 %v2540
  %v2915 = vpop.f32.mrb[0].mxu0
  %v2916 = vadd.f32 0.0, %v2915
  %v2917 = vpop.f32.mrb[0].mxu0
  %v2918 = vadd.f32 0.0, %v2917
  %2919 = vmatprep.mubr.f32.mxu0 %v2547
  %2920 = vmatmul.mubr.f32.gmra.mrb[0].mxu0 %v2545
  %v2921 = vpop.f32.mrb[0].mxu0
  %v2922 = vadd.f32 0.0, %v2921
  %v2923 = vpop.f32.mrb[0].mxu0
  %v2924 = vadd.f32 0.0, %v2923
  %2925 = vmatprep.mubr.f32.mxu0 %v2553
  %2926 = vmatmul.mubr.f32.gmra.mrb[0].mxu0 %v2550
  %v2927 = vpop.f32.mrb[0].mxu0
  %v2928 = vadd.f32 0.0, %v2927
  %v2929 = vpop.f32.mrb[0].mxu0
  %v2930 = vadd.f32 0.0, %v2929
  %2931 = vmatprep.mubr.f32.mxu0 %v2557
  %2932 = vmatmul.mubr.f32.gmra.mrb[0].mxu0 %v2555
  %v2933 = vpop.f32.mrb[0].mxu0
  %v2934 = vadd.f32 0.0, %v2933
  %v2935 = vpop.f32.mrb[0].mxu0
  %v2936 = vadd.f32 0.0, %v2935
  %2937 = vmatprep.mubr.f32.mxu0 %v2563
  %2938 = vmatmul.mubr.f32.gmra.mrb[0].mxu0 %v2560
  %v2939 = vpop.f32.mrb[0].mxu0
  %v2940 = vadd.f32 0.0, %v2939
  %v2941 = vpop.f32.mrb[0].mxu0
  %v2942 = vadd.f32 0.0, %v2941
  %2943 = vmatprep.mubr.f32.mxu0 %v2567
  %2944 = vmatmul.mubr.f32.gmra.mrb[0].mxu0 %v2565
  %v2945 = vpop.f32.mrb[0].mxu0
  %v2946 = vadd.f32 0.0, %v2945
  %v2947 = vpop.f32.mrb[0].mxu0
  %v2948 = vadd.f32 0.0, %v2947
  %2949 = vmatprep.mubr.f32.mxu0 %v2573
  %2950 = vmatmul.mubr.f32.gmra.mrb[0].mxu0 %v2570
  %v2951 = vpop.f32.mrb[0].mxu0
  %v2952 = vadd.f32 0.0, %v2951
  %v2953 = vpop.f32.mrb[0].mxu0
  %v2954 = vadd.f32 0.0, %v2953
  %2955 = vmatprep.mubr.f32.mxu0 %v2577
  %2956 = vmatmul.mubr.f32.gmra.mrb[0].mxu0 %v2575
  %v2957 = vpop.f32.mrb[0].mxu0
  %v2958 = vadd.f32 0.0, %v2957
  %v2959 = vpop.f32.mrb[0].mxu0
  %v2960 = vadd.f32 0.0, %v2959
  %2961 = vmatprep.mubr.f32.mxu0 %v2583
  %2962 = vmatmul.mubr.f32.gmra.mrb[0].mxu0 %v2580
  %v2963 = vpop.f32.mrb[0].mxu0
  %v2964 = vadd.f32 0.0, %v2963
  %v2965 = vpop.f32.mrb[0].mxu0
  %v2966 = vadd.f32 0.0, %v2965
  %2967 = vmatprep.mubr.f32.mxu0 %v2587
  %2968 = vmatmul.mubr.f32.gmra.mrb[0].mxu0 %v2585
  %v2969 = vpop.f32.mrb[0].mxu0
  %v2970 = vadd.f32 0.0, %v2969
  %v2971 = vpop.f32.mrb[0].mxu0
  %v2972 = vadd.f32 0.0, %v2971
  %2973 = vdwg.mxu0
  %2974 = vmatprep.subr.mxu0 %v2301
  %2975 = vmatpush1.msra.mxu0 %v2300
  %2976 = vmatprep.subr.mxu0 %v2303
  %2977 = vmatpush1.msra.mxu0 %v2302
  %2978 = vmatprep.subr.mxu0 %v2305
  %2979 = vmatpush1.msra.mxu0 %v2304
  %2980 = vmatprep.subr.mxu0 %v2307
  %2981 = vmatpush1.msra.mxu0 %v2306
  %2982 = vmatprep.subr.mxu0 %v2309
  %2983 = vmatpush1.msra.mxu0 %v2308
  %2984 = vmatprep.subr.mxu0 %v2311
  %2985 = vmatpush1.msra.mxu0 %v2310
  %2986 = vmatprep.subr.mxu0 %v2313
  %2987 = vmatpush1.msra.mxu0 %v2312
  %2988 = vmatprep.subr.mxu0 %v2315
  %2989 = vmatpush1.msra.mxu0 %v2314
  %2990 = vmatprep.subr.mxu0 %v2317
  %2991 = vmatpush1.msra.mxu0 %v2316
  %2992 = vmatprep.subr.mxu0 %v2319
  %2993 = vmatpush1.msra.mxu0 %v2318
  %2994 = vmatprep.subr.mxu0 %v2321
  %2995 = vmatpush1.msra.mxu0 %v2320
  %2996 = vmatprep.subr.mxu0 %v2323
  %2997 = vmatpush1.msra.mxu0 %v2322
  %2998 = vmatprep.subr.mxu0 %v2325
  %2999 = vmatpush1.msra.mxu0 %v2324
  %3000 = vmatprep.subr.mxu0 %v2327
  %3001 = vmatpush1.msra.mxu0 %v2326
  %3002 = vmatprep.subr.mxu0 %v2329
  %3003 = vmatpush1.msra.mxu0 %v2328
  %3004 = vmatprep.subr.mxu0 %v2331
  %3005 = vmatpush1.msra.mxu0 %v2330
  %3006 = vmatprep.subr.mxu0 %v2333
  %3007 = vmatpush1.msra.mxu0 %v2332
  %3008 = vmatprep.subr.mxu0 %v2335
  %3009 = vmatpush1.msra.mxu0 %v2334
  %3010 = vmatprep.subr.mxu0 %v2337
  %3011 = vmatpush1.msra.mxu0 %v2336
  %3012 = vmatprep.subr.mxu0 %v2339
  %3013 = vmatpush1.msra.mxu0 %v2338
  %3014 = vmatprep.subr.mxu0 %v2341
  %3015 = vmatpush1.msra.mxu0 %v2340
  %3016 = vmatprep.subr.mxu0 %v2343
  %3017 = vmatpush1.msra.mxu0 %v2342
  %3018 = vmatprep.subr.mxu0 %v2345
  %3019 = vmatpush1.msra.mxu0 %v2344
  %3020 = vmatprep.subr.mxu0 %v2347
  %3021 = vmatpush1.msra.mxu0 %v2346
  %3022 = vmatprep.subr.mxu0 %v2349
  %3023 = vmatpush1.msra.mxu0 %v2348
  %3024 = vmatprep.subr.mxu0 %v2351
  %3025 = vmatpush1.msra.mxu0 %v2350
  %3026 = vmatprep.subr.mxu0 %v2353
  %3027 = vmatpush1.msra.mxu0 %v2352
  %3028 = vmatprep.subr.mxu0 %v2355
  %3029 = vmatpush1.msra.mxu0 %v2354
  %3030 = vmatprep.subr.mxu0 %v2357
  %3031 = vmatpush1.msra.mxu0 %v2356
  %3032 = vmatprep.subr.mxu0 %v2359
  %3033 = vmatpush1.msra.mxu0 %v2358
  %3034 = vmatprep.subr.mxu0 %v2361
  %3035 = vmatpush1.msra.mxu0 %v2360
  %3036 = vmatprep.subr.mxu0 %v2363
  %3037 = vmatpush1.msra.mxu0 %v2362
  %3038 = vmatprep.mubr.f32.mxu0 %v2237
  %3039 = vmatmul.mubr.f32.gmra.mrb[0].mxu0 %v2236
  %v3040 = vpop.f32.mrb[0].mxu0
  %v3041 = vadd.f32 %v2784, %v3040
  %v3042 = vpop.f32.mrb[0].mxu0
  %v3043 = vadd.f32 %v2786, %v3042
  %3044 = vmatprep.mubr.f32.mxu0 %v2049
  %3045 = vmatmul.mubr.f32.gmra.mrb[0].mxu0 %v2047
  %v3046 = vpop.f32.mrb[0].mxu0
  %v3047 = vadd.f32 %v2790, %v3046
  %v3048 = vpop.f32.mrb[0].mxu0
  %v3049 = vadd.f32 %v2792, %v3048
  %3050 = vmatprep.mubr.f32.mxu0 %v2239
  %3051 = vmatmul.mubr.f32.gmra.mrb[0].mxu0 %v2238
  %v3052 = vpop.f32.mrb[0].mxu0
  %v3053 = vadd.f32 %v2796, %v3052
  %v3054 = vpop.f32.mrb[0].mxu0
  %v3055 = vadd.f32 %v2798, %v3054
  %3056 = vmatprep.mubr.f32.mxu0 %v2055
  %3057 = vmatmul.mubr.f32.gmra.mrb[0].mxu0 %v2053
  %v3058 = vpop.f32.mrb[0].mxu0
  %v3059 = vadd.f32 %v2802, %v3058
  %v3060 = vpop.f32.mrb[0].mxu0
  %v3061 = vadd.f32 %v2804, %v3060
  %3062 = vmatprep.mubr.f32.mxu0 %v2241
  %3063 = vmatmul.mubr.f32.gmra.mrb[0].mxu0 %v2240
  %v3064 = vpop.f32.mrb[0].mxu0
  %v3065 = vadd.f32 %v2808, %v3064
  %v3066 = vpop.f32.mrb[0].mxu0
  %v3067 = vadd.f32 %v2810, %v3066
  %3068 = vmatprep.mubr.f32.mxu0 %v2061
  %3069 = vmatmul.mubr.f32.gmra.mrb[0].mxu0 %v2059
  %v3070 = vpop.f32.mrb[0].mxu0
  %v3071 = vadd.f32 %v2814, %v3070
  %v3072 = vpop.f32.mrb[0].mxu0
  %v3073 = vadd.f32 %v2816, %v3072
  %3074 = vmatprep.mubr.f32.mxu0 %v2243
  %3075 = vmatmul.mubr.f32.gmra.mrb[0].mxu0 %v2242
  %v3076 = vpop.f32.mrb[0].mxu0
  %v3077 = vadd.f32 %v2820, %v3076
  %v3078 = vpop.f32.mrb[0].mxu0
  %v3079 = vadd.f32 %v2822, %v3078
  %3080 = vmatprep.mubr.f32.mxu0 %v2067
  %3081 = vmatmul.mubr.f32.gmra.mrb[0].mxu0 %v2065
  %v3082 = vpop.f32.mrb[0].mxu0
  %v3083 = vadd.f32 %v2826, %v3082
  %v3084 = vpop.f32.mrb[0].mxu0
  %v3085 = vadd.f32 %v2828, %v3084
  %3086 = vmatprep.mubr.f32.mxu0 %v2245
  %3087 = vmatmul.mubr.f32.gmra.mrb[0].mxu0 %v2244
  %v3088 = vpop.f32.mrb[0].mxu0
  %v3089 = vadd.f32 %v2832, %v3088
  %v3090 = vpop.f32.mrb[0].mxu0
  %v3091 = vadd.f32 %v2834, %v3090
  %3092 = vmatprep.mubr.f32.mxu0 %v2073
  %3093 = vmatmul.mubr.f32.gmra.mrb[0].mxu0 %v2071
  %v3094 = vpop.f32.mrb[0].mxu0
  %v3095 = vadd.f32 %v2838, %v3094
  %v3096 = vpop.f32.mrb[0].mxu0
  %v3097 = vadd.f32 %v2840, %v3096
  %3098 = vmatprep.mubr.f32.mxu0 %v2247
  %3099 = vmatmul.mubr.f32.gmra.mrb[0].mxu0 %v2246
  %v3100 = vpop.f32.mrb[0].mxu0
  %v3101 = vadd.f32 %v2844, %v3100
  %v3102 = vpop.f32.mrb[0].mxu0
  %v3103 = vadd.f32 %v2846, %v3102
  %3104 = vmatprep.mubr.f32.mxu0 %v2079
  %3105 = vmatmul.mubr.f32.gmra.mrb[0].mxu0 %v2077
  %v3106 = vpop.f32.mrb[0].mxu0
  %v3107 = vadd.f32 %v2850, %v3106
  %v3108 = vpop.f32.mrb[0].mxu0
  %v3109 = vadd.f32 %v2852, %v3108
  %3110 = vmatprep.mubr.f32.mxu0 %v2249
  %3111 = vmatmul.mubr.f32.gmra.mrb[0].mxu0 %v2248
  %v3112 = vpop.f32.mrb[0].mxu0
  %v3113 = vadd.f32 %v2856, %v3112
  %v3114 = vpop.f32.mrb[0].mxu0
  %v3115 = vadd.f32 %v2858, %v3114
  %3116 = vmatprep.mubr.f32.mxu0 %v2085
  %3117 = vmatmul.mubr.f32.gmra.mrb[0].mxu0 %v2083
  %v3118 = vpop.f32.mrb[0].mxu0
  %v3119 = vadd.f32 %v2862, %v3118
  %v3120 = vpop.f32.mrb[0].mxu0
  %v3121 = vadd.f32 %v2864, %v3120
  %3122 = vmatprep.mubr.f32.mxu0 %v2251
  %3123 = vmatmul.mubr.f32.gmra.mrb[0].mxu0 %v2250
  %v3124 = vpop.f32.mrb[0].mxu0
  %v3125 = vadd.f32 %v2868, %v3124
  %v3126 = vpop.f32.mrb[0].mxu0
  %v3127 = vadd.f32 %v2870, %v3126
  %3128 = vmatprep.mubr.f32.mxu0 %v2091
  %3129 = vmatmul.mubr.f32.gmra.mrb[0].mxu0 %v2089
  %v3130 = vpop.f32.mrb[0].mxu0
  %v3131 = vadd.f32 %v2874, %v3130
  %v3132 = vpop.f32.mrb[0].mxu0
  %v3133 = vadd.f32 %v2876, %v3132
  %3134 = vmatprep.mubr.f32.mxu0 %v2253
  %3135 = vmatmul.mubr.f32.gmra.mrb[0].mxu0 %v2252
  %v3136 = vpop.f32.mrb[0].mxu0
  %v3137 = vadd.f32 %v2880, %v3136
  %v3138 = vpop.f32.mrb[0].mxu0
  %v3139 = vadd.f32 %v2882, %v3138
  %3140 = vmatprep.mubr.f32.mxu0 %v2097
  %3141 = vmatmul.mubr.f32.gmra.mrb[0].mxu0 %v2095
  %v3142 = vpop.f32.mrb[0].mxu0
  %v3143 = vadd.f32 %v2886, %v3142
  %v3144 = vpop.f32.mrb[0].mxu0
  %v3145 = vadd.f32 %v2888, %v3144
  %3146 = vmatprep.mubr.f32.mxu0 %v2255
  %3147 = vmatmul.mubr.f32.gmra.mrb[0].mxu0 %v2254
  %v3148 = vpop.f32.mrb[0].mxu0
  %v3149 = vadd.f32 %v2892, %v3148
  %v3150 = vpop.f32.mrb[0].mxu0
  %v3151 = vadd.f32 %v2894, %v3150
  %3152 = vmatprep.mubr.f32.mxu0 %v2103
  %3153 = vmatmul.mubr.f32.gmra.mrb[0].mxu0 %v2101
  %v3154 = vpop.f32.mrb[0].mxu0
  %v3155 = vadd.f32 %v2898, %v3154
  %v3156 = vpop.f32.mrb[0].mxu0
  %v3157 = vadd.f32 %v2900, %v3156
  %3158 = vmatprep.mubr.f32.mxu0 %v2257
  %3159 = vmatmul.mubr.f32.gmra.mrb[0].mxu0 %v2256
  %v3160 = vpop.f32.mrb[0].mxu0
  %v3161 = vadd.f32 %v2904, %v3160
  %v3162 = vpop.f32.mrb[0].mxu0
  %v3163 = vadd.f32 %v2906, %v3162
  %3164 = vmatprep.mubr.f32.mxu0 %v2109
  %3165 = vmatmul.mubr.f32.gmra.mrb[0].mxu0 %v2107
  %v3166 = vpop.f32.mrb[0].mxu0
  %v3167 = vadd.f32 %v2910, %v3166
  %v3168 = vpop.f32.mrb[0].mxu0
  %v3169 = vadd.f32 %v2912, %v3168
  %3170 = vmatprep.mubr.f32.mxu0 %v2259
  %3171 = vmatmul.mubr.f32.gmra.mrb[0].mxu0 %v2258
  %v3172 = vpop.f32.mrb[0].mxu0
  %v3173 = vadd.f32 %v2916, %v3172
  %v3174 = vpop.f32.mrb[0].mxu0
  %v3175 = vadd.f32 %v2918, %v3174
  %3176 = vmatprep.mubr.f32.mxu0 %v2115
  %3177 = vmatmul.mubr.f32.gmra.mrb[0].mxu0 %v2113
  %v3178 = vpop.f32.mrb[0].mxu0
  %v3179 = vadd.f32 %v2922, %v3178
  %v3180 = vpop.f32.mrb[0].mxu0
  %v3181 = vadd.f32 %v2924, %v3180
  %3182 = vmatprep.mubr.f32.mxu0 %v2261
  %3183 = vmatmul.mubr.f32.gmra.mrb[0].mxu0 %v2260
  %v3184 = vpop.f32.mrb[0].mxu0
  %v3185 = vadd.f32 %v2928, %v3184
  %v3186 = vpop.f32.mrb[0].mxu0
  %v3187 = vadd.f32 %v2930, %v3186
  %3188 = vmatprep.mubr.f32.mxu0 %v2121
  %3189 = vmatmul.mubr.f32.gmra.mrb[0].mxu0 %v2119
  %v3190 = vpop.f32.mrb[0].mxu0
  %v3191 = vadd.f32 %v2934, %v3190
  %v3192 = vpop.f32.mrb[0].mxu0
  %v3193 = vadd.f32 %v2936, %v3192
  %3194 = vmatprep.mubr.f32.mxu0 %v2263
  %3195 = vmatmul.mubr.f32.gmra.mrb[0].mxu0 %v2262
  %v3196 = vpop.f32.mrb[0].mxu0
  %v3197 = vadd.f32 %v2940, %v3196
  %v3198 = vpop.f32.mrb[0].mxu0
  %v3199 = vadd.f32 %v2942, %v3198
  %3200 = vmatprep.mubr.f32.mxu0 %v2127
  %3201 = vmatmul.mubr.f32.gmra.mrb[0].mxu0 %v2125
  %v3202 = vpop.f32.mrb[0].mxu0
  %v3203 = vadd.f32 %v2946, %v3202
  %v3204 = vpop.f32.mrb[0].mxu0
  %v3205 = vadd.f32 %v2948, %v3204
  %3206 = vmatprep.mubr.f32.mxu0 %v2265
  %3207 = vmatmul.mubr.f32.gmra.mrb[0].mxu0 %v2264
  %v3208 = vpop.f32.mrb[0].mxu0
  %v3209 = vadd.f32 %v2952, %v3208
  %v3210 = vpop.f32.mrb[0].mxu0
  %v3211 = vadd.f32 %v2954, %v3210
  %3212 = vmatprep.mubr.f32.mxu0 %v2133
  %3213 = vmatmul.mubr.f32.gmra.mrb[0].mxu0 %v2131
  %v3214 = vpop.f32.mrb[0].mxu0
  %v3215 = vadd.f32 %v2958, %v3214
  %v3216 = vpop.f32.mrb[0].mxu0
  %v3217 = vadd.f32 %v2960, %v3216
  %3218 = vmatprep.mubr.f32.mxu0 %v2267
  %3219 = vmatmul.mubr.f32.gmra.mrb[0].mxu0 %v2266
  %v3220 = vpop.f32.mrb[0].mxu0
  %v3221 = vadd.f32 %v2964, %v3220
  %v3222 = vpop.f32.mrb[0].mxu0
  %v3223 = vadd.f32 %v2966, %v3222
  %3224 = vmatprep.mubr.f32.mxu0 %v2139
  %3225 = vmatmul.mubr.f32.gmra.mrb[0].mxu0 %v2137
  %v3226 = vpop.f32.mrb[0].mxu0
  %v3227 = vadd.f32 %v2970, %v3226
  %v3228 = vpop.f32.mrb[0].mxu0
  %v3229 = vadd.f32 %v2972, %v3228
  %3230 = vdwg.mxu0
  %vm3231 = vcmask 1043456
  %v3232 = vrot.slane %v2236, 4
  %v3233 = vrot.slane %v2047, 4
  %v3234 = vsel %vm3231, %v3232, %v3233
  %v3235 = vrot.slane %v2237, 4
  %v3236 = vrot.slane %v2049, 4
  %v3237 = vsel %vm3231, %v3235, %v3236
  %v3238 = vrot.slane %v2268, 4
  %v3239 = vsel %vm3231, %v3233, %v3238
  %v3240 = vrot.slane %v2269, 4
  %v3241 = vsel %vm3231, %v3236, %v3240
  %v3242 = vrot.slane %v2238, 4
  %v3243 = vrot.slane %v2053, 4
  %v3244 = vsel %vm3231, %v3242, %v3243
  %v3245 = vrot.slane %v2239, 4
  %v3246 = vrot.slane %v2055, 4
  %v3247 = vsel %vm3231, %v3245, %v3246
  %v3248 = vrot.slane %v2270, 4
  %v3249 = vsel %vm3231, %v3243, %v3248
  %v3250 = vrot.slane %v2271, 4
  %v3251 = vsel %vm3231, %v3246, %v3250
  %v3252 = vrot.slane %v2240, 4
  %v3253 = vrot.slane %v2059, 4
  %v3254 = vsel %vm3231, %v3252, %v3253
  %v3255 = vrot.slane %v2241, 4
  %v3256 = vrot.slane %v2061, 4
  %v3257 = vsel %vm3231, %v3255, %v3256
  %v3258 = vrot.slane %v2272, 4
  %v3259 = vsel %vm3231, %v3253, %v3258
  %v3260 = vrot.slane %v2273, 4
  %v3261 = vsel %vm3231, %v3256, %v3260
  %v3262 = vrot.slane %v2242, 4
  %v3263 = vrot.slane %v2065, 4
  %v3264 = vsel %vm3231, %v3262, %v3263
  %v3265 = vrot.slane %v2243, 4
  %v3266 = vrot.slane %v2067, 4
  %v3267 = vsel %vm3231, %v3265, %v3266
  %v3268 = vrot.slane %v2274, 4
  %v3269 = vsel %vm3231, %v3263, %v3268
  %v3270 = vrot.slane %v2275, 4
  %v3271 = vsel %vm3231, %v3266, %v3270
  %v3272 = vrot.slane %v2244, 4
  %v3273 = vrot.slane %v2071, 4
  %v3274 = vsel %vm3231, %v3272, %v3273
  %v3275 = vrot.slane %v2245, 4
  %v3276 = vrot.slane %v2073, 4
  %v3277 = vsel %vm3231, %v3275, %v3276
  %v3278 = vrot.slane %v2276, 4
  %v3279 = vsel %vm3231, %v3273, %v3278
  %v3280 = vrot.slane %v2277, 4
  %v3281 = vsel %vm3231, %v3276, %v3280
  %v3282 = vrot.slane %v2246, 4
  %v3283 = vrot.slane %v2077, 4
  %v3284 = vsel %vm3231, %v3282, %v3283
  %v3285 = vrot.slane %v2247, 4
  %v3286 = vrot.slane %v2079, 4
  %v3287 = vsel %vm3231, %v3285, %v3286
  %v3288 = vrot.slane %v2278, 4
  %v3289 = vsel %vm3231, %v3283, %v3288
  %v3290 = vrot.slane %v2279, 4
  %v3291 = vsel %vm3231, %v3286, %v3290
  %v3292 = vrot.slane %v2248, 4
  %v3293 = vrot.slane %v2083, 4
  %v3294 = vsel %vm3231, %v3292, %v3293
  %v3295 = vrot.slane %v2249, 4
  %v3296 = vrot.slane %v2085, 4
  %v3297 = vsel %vm3231, %v3295, %v3296
  %v3298 = vrot.slane %v2280, 4
  %v3299 = vsel %vm3231, %v3293, %v3298
  %v3300 = vrot.slane %v2281, 4
  %v3301 = vsel %vm3231, %v3296, %v3300
  %v3302 = vrot.slane %v2250, 4
  %v3303 = vrot.slane %v2089, 4
  %v3304 = vsel %vm3231, %v3302, %v3303
  %v3305 = vrot.slane %v2251, 4
  %v3306 = vrot.slane %v2091, 4
  %v3307 = vsel %vm3231, %v3305, %v3306
  %v3308 = vrot.slane %v2282, 4
  %v3309 = vsel %vm3231, %v3303, %v3308
  %v3310 = vrot.slane %v2283, 4
  %v3311 = vsel %vm3231, %v3306, %v3310
  %v3312 = vrot.slane %v2252, 4
  %v3313 = vrot.slane %v2095, 4
  %v3314 = vsel %vm3231, %v3312, %v3313
  %v3315 = vrot.slane %v2253, 4
  %v3316 = vrot.slane %v2097, 4
  %v3317 = vsel %vm3231, %v3315, %v3316
  %v3318 = vrot.slane %v2284, 4
  %v3319 = vsel %vm3231, %v3313, %v3318
  %v3320 = vrot.slane %v2285, 4
  %v3321 = vsel %vm3231, %v3316, %v3320
  %v3322 = vrot.slane %v2254, 4
  %v3323 = vrot.slane %v2101, 4
  %v3324 = vsel %vm3231, %v3322, %v3323
  %v3325 = vrot.slane %v2255, 4
  %v3326 = vrot.slane %v2103, 4
  %v3327 = vsel %vm3231, %v3325, %v3326
  %v3328 = vrot.slane %v2286, 4
  %v3329 = vsel %vm3231, %v3323, %v3328
  %v3330 = vrot.slane %v2287, 4
  %v3331 = vsel %vm3231, %v3326, %v3330
  %v3332 = vrot.slane %v2256, 4
  %v3333 = vrot.slane %v2107, 4
  %v3334 = vsel %vm3231, %v3332, %v3333
  %v3335 = vrot.slane %v2257, 4
  %v3336 = vrot.slane %v2109, 4
  %v3337 = vsel %vm3231, %v3335, %v3336
  %v3338 = vrot.slane %v2288, 4
  %v3339 = vsel %vm3231, %v3333, %v3338
  %v3340 = vrot.slane %v2289, 4
  %v3341 = vsel %vm3231, %v3336, %v3340
  %v3342 = vrot.slane %v2258, 4
  %v3343 = vrot.slane %v2113, 4
  %v3344 = vsel %vm3231, %v3342, %v3343
  %v3345 = vrot.slane %v2259, 4
  %v3346 = vrot.slane %v2115, 4
  %v3347 = vsel %vm3231, %v3345, %v3346
  %v3348 = vrot.slane %v2290, 4
  %v3349 = vsel %vm3231, %v3343, %v3348
  %v3350 = vrot.slane %v2291, 4
  %v3351 = vsel %vm3231, %v3346, %v3350
  %v3352 = vrot.slane %v2260, 4
  %v3353 = vrot.slane %v2119, 4
  %v3354 = vsel %vm3231, %v3352, %v3353
  %v3355 = vrot.slane %v2261, 4
  %v3356 = vrot.slane %v2121, 4
  %v3357 = vsel %vm3231, %v3355, %v3356
  %v3358 = vrot.slane %v2292, 4
  %v3359 = vsel %vm3231, %v3353, %v3358
  %v3360 = vrot.slane %v2293, 4
  %v3361 = vsel %vm3231, %v3356, %v3360
  %v3362 = vrot.slane %v2262, 4
  %v3363 = vrot.slane %v2125, 4
  %v3364 = vsel %vm3231, %v3362, %v3363
  %v3365 = vrot.slane %v2263, 4
  %v3366 = vrot.slane %v2127, 4
  %v3367 = vsel %vm3231, %v3365, %v3366
  %v3368 = vrot.slane %v2294, 4
  %v3369 = vsel %vm3231, %v3363, %v3368
  %v3370 = vrot.slane %v2295, 4
  %v3371 = vsel %vm3231, %v3366, %v3370
  %v3372 = vrot.slane %v2264, 4
  %v3373 = vrot.slane %v2131, 4
  %v3374 = vsel %vm3231, %v3372, %v3373
  %v3375 = vrot.slane %v2265, 4
  %v3376 = vrot.slane %v2133, 4
  %v3377 = vsel %vm3231, %v3375, %v3376
  %v3378 = vrot.slane %v2296, 4
  %v3379 = vsel %vm3231, %v3373, %v3378
  %v3380 = vrot.slane %v2297, 4
  %v3381 = vsel %vm3231, %v3376, %v3380
  %v3382 = vrot.slane %v2266, 4
  %v3383 = vrot.slane %v2137, 4
  %v3384 = vsel %vm3231, %v3382, %v3383
  %v3385 = vrot.slane %v2267, 4
  %v3386 = vrot.slane %v2139, 4
  %v3387 = vsel %vm3231, %v3385, %v3386
  %v3388 = vrot.slane %v2298, 4
  %v3389 = vsel %vm3231, %v3383, %v3388
  %v3390 = vrot.slane %v2299, 4
  %v3391 = vsel %vm3231, %v3386, %v3390
  %s3456 = scalar_lea.vmem %s3, 1024
  %v3457 = vld [vmem:[%s3456] sm:$0xff]
  %v3458 = vld [vmem:[%s3456 + $0x8] sm:$0xff]
  %v3459 = vld [vmem:[%s3456 + $0x10] sm:$0xff]
  %v3460 = vld [vmem:[%s3456 + $0x18] sm:$0xff]
  %v3461 = vld [vmem:[%s3456 + $0x20] sm:$0xff]
  %v3462 = vld [vmem:[%s3456 + $0x28] sm:$0xff]
  %v3463 = vld [vmem:[%s3456 + $0x30] sm:$0xff]
  %v3464 = vld [vmem:[%s3456 + $0x38] sm:$0xff]
  %v3465 = vld [vmem:[%s3456 + $0x40] sm:$0xff]
  %v3466 = vld [vmem:[%s3456 + $0x48] sm:$0xff]
  %v3467 = vld [vmem:[%s3456 + $0x50] sm:$0xff]
  %v3468 = vld [vmem:[%s3456 + $0x58] sm:$0xff]
  %v3469 = vld [vmem:[%s3456 + $0x60] sm:$0xff]
  %v3470 = vld [vmem:[%s3456 + $0x68] sm:$0xff]
  %v3471 = vld [vmem:[%s3456 + $0x70] sm:$0xff]
  %v3472 = vld [vmem:[%s3456 + $0x78] sm:$0xff]
  %v3473 = vld [vmem:[%s3456 + $0x80] sm:$0xff]
  %v3474 = vld [vmem:[%s3456 + $0x88] sm:$0xff]
  %v3475 = vld [vmem:[%s3456 + $0x90] sm:$0xff]
  %v3476 = vld [vmem:[%s3456 + $0x98] sm:$0xff]
  %v3477 = vld [vmem:[%s3456 + $0xa0] sm:$0xff]
  %v3478 = vld [vmem:[%s3456 + $0xa8] sm:$0xff]
  %v3479 = vld [vmem:[%s3456 + $0xb0] sm:$0xff]
  %v3480 = vld [vmem:[%s3456 + $0xb8] sm:$0xff]
  %v3481 = vld [vmem:[%s3456 + $0xc0] sm:$0xff]
  %v3482 = vld [vmem:[%s3456 + $0xc8] sm:$0xff]
  %v3483 = vld [vmem:[%s3456 + $0xd0] sm:$0xff]
  %v3484 = vld [vmem:[%s3456 + $0xd8] sm:$0xff]
  %v3485 = vld [vmem:[%s3456 + $0xe0] sm:$0xff]
  %v3486 = vld [vmem:[%s3456 + $0xe8] sm:$0xff]
  %v3487 = vld [vmem:[%s3456 + $0xf0] sm:$0xff]
  %v3488 = vld [vmem:[%s3456 + $0xf8] sm:$0xff]
  %v3489 = vld [vmem:[%s3456 + $0x100] sm:$0xff]
  %v3490 = vld [vmem:[%s3456 + $0x108] sm:$0xff]
  %v3491 = vld [vmem:[%s3456 + $0x110] sm:$0xff]
  %v3492 = vld [vmem:[%s3456 + $0x118] sm:$0xff]
  %v3493 = vld [vmem:[%s3456 + $0x120] sm:$0xff]
  %v3494 = vld [vmem:[%s3456 + $0x128] sm:$0xff]
  %v3495 = vld [vmem:[%s3456 + $0x130] sm:$0xff]
  %v3496 = vld [vmem:[%s3456 + $0x138] sm:$0xff]
  %v3497 = vld [vmem:[%s3456 + $0x140] sm:$0xff]
  %v3498 = vld [vmem:[%s3456 + $0x148] sm:$0xff]
  %v3499 = vld [vmem:[%s3456 + $0x150] sm:$0xff]
  %v3500 = vld [vmem:[%s3456 + $0x158] sm:$0xff]
  %v3501 = vld [vmem:[%s3456 + $0x160] sm:$0xff]
  %v3502 = vld [vmem:[%s3456 + $0x168] sm:$0xff]
  %v3503 = vld [vmem:[%s3456 + $0x170] sm:$0xff]
  %v3504 = vld [vmem:[%s3456 + $0x178] sm:$0xff]
  %v3505 = vld [vmem:[%s3456 + $0x180] sm:$0xff]
  %v3506 = vld [vmem:[%s3456 + $0x188] sm:$0xff]
  %v3507 = vld [vmem:[%s3456 + $0x190] sm:$0xff]
  %v3508 = vld [vmem:[%s3456 + $0x198] sm:$0xff]
  %v3509 = vld [vmem:[%s3456 + $0x1a0] sm:$0xff]
  %v3510 = vld [vmem:[%s3456 + $0x1a8] sm:$0xff]
  %v3511 = vld [vmem:[%s3456 + $0x1b0] sm:$0xff]
  %v3512 = vld [vmem:[%s3456 + $0x1b8] sm:$0xff]
  %v3513 = vld [vmem:[%s3456 + $0x1c0] sm:$0xff]
  %v3514 = vld [vmem:[%s3456 + $0x1c8] sm:$0xff]
  %v3515 = vld [vmem:[%s3456 + $0x1d0] sm:$0xff]
  %v3516 = vld [vmem:[%s3456 + $0x1d8] sm:$0xff]
  %v3517 = vld [vmem:[%s3456 + $0x1e0] sm:$0xff]
  %v3518 = vld [vmem:[%s3456 + $0x1e8] sm:$0xff]
  %v3519 = vld [vmem:[%s3456 + $0x1f0] sm:$0xff]
  %v3520 = vld [vmem:[%s3456 + $0x1f8] sm:$0xff]
  %3521 = vmatprep.subr.mxu0 %v3458
  %3522 = vmatpush1.msra.mxu0 %v3457
  %3523 = vmatprep.subr.mxu0 %v3460
  %3524 = vmatpush1.msra.mxu0 %v3459
  %3525 = vmatprep.subr.mxu0 %v3462
  %3526 = vmatpush1.msra.mxu0 %v3461
  %3527 = vmatprep.subr.mxu0 %v3464
  %3528 = vmatpush1.msra.mxu0 %v3463
  %3529 = vmatprep.subr.mxu0 %v3466
  %3530 = vmatpush1.msra.mxu0 %v3465
  %3531 = vmatprep.subr.mxu0 %v3468
  %3532 = vmatpush1.msra.mxu0 %v3467
  %3533 = vmatprep.subr.mxu0 %v3470
  %3534 = vmatpush1.msra.mxu0 %v3469
  %3535 = vmatprep.subr.mxu0 %v3472
  %3536 = vmatpush1.msra.mxu0 %v3471
  %3537 = vmatprep.subr.mxu0 %v3474
  %3538 = vmatpush1.msra.mxu0 %v3473
  %3539 = vmatprep.subr.mxu0 %v3476
  %3540 = vmatpush1.msra.mxu0 %v3475
  %3541 = vmatprep.subr.mxu0 %v3478
  %3542 = vmatpush1.msra.mxu0 %v3477
  %3543 = vmatprep.subr.mxu0 %v3480
  %3544 = vmatpush1.msra.mxu0 %v3479
  %3545 = vmatprep.subr.mxu0 %v3482
  %3546 = vmatpush1.msra.mxu0 %v3481
  %3547 = vmatprep.subr.mxu0 %v3484
  %3548 = vmatpush1.msra.mxu0 %v3483
  %3549 = vmatprep.subr.mxu0 %v3486
  %3550 = vmatpush1.msra.mxu0 %v3485
  %3551 = vmatprep.subr.mxu0 %v3488
  %3552 = vmatpush1.msra.mxu0 %v3487
  %3553 = vmatprep.subr.mxu0 %v3490
  %3554 = vmatpush1.msra.mxu0 %v3489
  %3555 = vmatprep.subr.mxu0 %v3492
  %3556 = vmatpush1.msra.mxu0 %v3491
  %3557 = vmatprep.subr.mxu0 %v3494
  %3558 = vmatpush1.msra.mxu0 %v3493
  %3559 = vmatprep.subr.mxu0 %v3496
  %3560 = vmatpush1.msra.mxu0 %v3495
  %3561 = vmatprep.subr.mxu0 %v3498
  %3562 = vmatpush1.msra.mxu0 %v3497
  %3563 = vmatprep.subr.mxu0 %v3500
  %3564 = vmatpush1.msra.mxu0 %v3499
  %3565 = vmatprep.subr.mxu0 %v3502
  %3566 = vmatpush1.msra.mxu0 %v3501
  %3567 = vmatprep.subr.mxu0 %v3504
  %3568 = vmatpush1.msra.mxu0 %v3503
  %3569 = vmatprep.subr.mxu0 %v3506
  %3570 = vmatpush1.msra.mxu0 %v3505
  %3571 = vmatprep.subr.mxu0 %v3508
  %3572 = vmatpush1.msra.mxu0 %v3507
  %3573 = vmatprep.subr.mxu0 %v3510
  %3574 = vmatpush1.msra.mxu0 %v3509
  %3575 = vmatprep.subr.mxu0 %v3512
  %3576 = vmatpush1.msra.mxu0 %v3511
  %3577 = vmatprep.subr.mxu0 %v3514
  %3578 = vmatpush1.msra.mxu0 %v3513
  %3579 = vmatprep.subr.mxu0 %v3516
  %3580 = vmatpush1.msra.mxu0 %v3515
  %3581 = vmatprep.subr.mxu0 %v3518
  %3582 = vmatpush1.msra.mxu0 %v3517
  %3583 = vmatprep.subr.mxu0 %v3520
  %3584 = vmatpush1.msra.mxu0 %v3519
  %3585 = vmatprep.mubr.f32.mxu0 %v3237
  %3586 = vmatmul.mubr.f32.gmra.mrb[0].mxu0 %v3234
  %v3587 = vpop.f32.mrb[0].mxu0
  %v3588 = vadd.f32 0.0, %v3587
  %v3589 = vpop.f32.mrb[0].mxu0
  %v3590 = vadd.f32 0.0, %v3589
  %3591 = vmatprep.mubr.f32.mxu0 %v3241
  %3592 = vmatmul.mubr.f32.gmra.mrb[0].mxu0 %v3239
  %v3593 = vpop.f32.mrb[0].mxu0
  %v3594 = vadd.f32 0.0, %v3593
  %v3595 = vpop.f32.mrb[0].mxu0
  %v3596 = vadd.f32 0.0, %v3595
  %3597 = vmatprep.mubr.f32.mxu0 %v3247
  %3598 = vmatmul.mubr.f32.gmra.mrb[0].mxu0 %v3244
  %v3599 = vpop.f32.mrb[0].mxu0
  %v3600 = vadd.f32 0.0, %v3599
  %v3601 = vpop.f32.mrb[0].mxu0
  %v3602 = vadd.f32 0.0, %v3601
  %3603 = vmatprep.mubr.f32.mxu0 %v3251
  %3604 = vmatmul.mubr.f32.gmra.mrb[0].mxu0 %v3249
  %v3605 = vpop.f32.mrb[0].mxu0
  %v3606 = vadd.f32 0.0, %v3605
  %v3607 = vpop.f32.mrb[0].mxu0
  %v3608 = vadd.f32 0.0, %v3607
  %3609 = vmatprep.mubr.f32.mxu0 %v3257
  %3610 = vmatmul.mubr.f32.gmra.mrb[0].mxu0 %v3254
  %v3611 = vpop.f32.mrb[0].mxu0
  %v3612 = vadd.f32 0.0, %v3611
  %v3613 = vpop.f32.mrb[0].mxu0
  %v3614 = vadd.f32 0.0, %v3613
  %3615 = vmatprep.mubr.f32.mxu0 %v3261
  %3616 = vmatmul.mubr.f32.gmra.mrb[0].mxu0 %v3259
  %v3617 = vpop.f32.mrb[0].mxu0
  %v3618 = vadd.f32 0.0, %v3617
  %v3619 = vpop.f32.mrb[0].mxu0
  %v3620 = vadd.f32 0.0, %v3619
  %3621 = vmatprep.mubr.f32.mxu0 %v3267
  %3622 = vmatmul.mubr.f32.gmra.mrb[0].mxu0 %v3264
  %v3623 = vpop.f32.mrb[0].mxu0
  %v3624 = vadd.f32 0.0, %v3623
  %v3625 = vpop.f32.mrb[0].mxu0
  %v3626 = vadd.f32 0.0, %v3625
  %3627 = vmatprep.mubr.f32.mxu0 %v3271
  %3628 = vmatmul.mubr.f32.gmra.mrb[0].mxu0 %v3269
  %v3629 = vpop.f32.mrb[0].mxu0
  %v3630 = vadd.f32 0.0, %v3629
  %v3631 = vpop.f32.mrb[0].mxu0
  %v3632 = vadd.f32 0.0, %v3631
  %3633 = vmatprep.mubr.f32.mxu0 %v3277
  %3634 = vmatmul.mubr.f32.gmra.mrb[0].mxu0 %v3274
  %v3635 = vpop.f32.mrb[0].mxu0
  %v3636 = vadd.f32 0.0, %v3635
  %v3637 = vpop.f32.mrb[0].mxu0
  %v3638 = vadd.f32 0.0, %v3637
  %3639 = vmatprep.mubr.f32.mxu0 %v3281
  %3640 = vmatmul.mubr.f32.gmra.mrb[0].mxu0 %v3279
  %v3641 = vpop.f32.mrb[0].mxu0
  %v3642 = vadd.f32 0.0, %v3641
  %v3643 = vpop.f32.mrb[0].mxu0
  %v3644 = vadd.f32 0.0, %v3643
  %3645 = vmatprep.mubr.f32.mxu0 %v3287
  %3646 = vmatmul.mubr.f32.gmra.mrb[0].mxu0 %v3284
  %v3647 = vpop.f32.mrb[0].mxu0
  %v3648 = vadd.f32 0.0, %v3647
  %v3649 = vpop.f32.mrb[0].mxu0
  %v3650 = vadd.f32 0.0, %v3649
  %3651 = vmatprep.mubr.f32.mxu0 %v3291
  %3652 = vmatmul.mubr.f32.gmra.mrb[0].mxu0 %v3289
  %v3653 = vpop.f32.mrb[0].mxu0
  %v3654 = vadd.f32 0.0, %v3653
  %v3655 = vpop.f32.mrb[0].mxu0
  %v3656 = vadd.f32 0.0, %v3655
  %3657 = vmatprep.mubr.f32.mxu0 %v3297
  %3658 = vmatmul.mubr.f32.gmra.mrb[0].mxu0 %v3294
  %v3659 = vpop.f32.mrb[0].mxu0
  %v3660 = vadd.f32 0.0, %v3659
  %v3661 = vpop.f32.mrb[0].mxu0
  %v3662 = vadd.f32 0.0, %v3661
  %3663 = vmatprep.mubr.f32.mxu0 %v3301
  %3664 = vmatmul.mubr.f32.gmra.mrb[0].mxu0 %v3299
  %v3665 = vpop.f32.mrb[0].mxu0
  %v3666 = vadd.f32 0.0, %v3665
  %v3667 = vpop.f32.mrb[0].mxu0
  %v3668 = vadd.f32 0.0, %v3667
  %3669 = vmatprep.mubr.f32.mxu0 %v3307
  %3670 = vmatmul.mubr.f32.gmra.mrb[0].mxu0 %v3304
  %v3671 = vpop.f32.mrb[0].mxu0
  %v3672 = vadd.f32 0.0, %v3671
  %v3673 = vpop.f32.mrb[0].mxu0
  %v3674 = vadd.f32 0.0, %v3673
  %3675 = vmatprep.mubr.f32.mxu0 %v3311
  %3676 = vmatmul.mubr.f32.gmra.mrb[0].mxu0 %v3309
  %v3677 = vpop.f32.mrb[0].mxu0
  %v3678 = vadd.f32 0.0, %v3677
  %v3679 = vpop.f32.mrb[0].mxu0
  %v3680 = vadd.f32 0.0, %v3679
  %3681 = vmatprep.mubr.f32.mxu0 %v3317
  %3682 = vmatmul.mubr.f32.gmra.mrb[0].mxu0 %v3314
  %v3683 = vpop.f32.mrb[0].mxu0
  %v3684 = vadd.f32 0.0, %v3683
  %v3685 = vpop.f32.mrb[0].mxu0
  %v3686 = vadd.f32 0.0, %v3685
  %3687 = vmatprep.mubr.f32.mxu0 %v3321
  %3688 = vmatmul.mubr.f32.gmra.mrb[0].mxu0 %v3319
  %v3689 = vpop.f32.mrb[0].mxu0
  %v3690 = vadd.f32 0.0, %v3689
  %v3691 = vpop.f32.mrb[0].mxu0
  %v3692 = vadd.f32 0.0, %v3691
  %3693 = vmatprep.mubr.f32.mxu0 %v3327
  %3694 = vmatmul.mubr.f32.gmra.mrb[0].mxu0 %v3324
  %v3695 = vpop.f32.mrb[0].mxu0
  %v3696 = vadd.f32 0.0, %v3695
  %v3697 = vpop.f32.mrb[0].mxu0
  %v3698 = vadd.f32 0.0, %v3697
  %3699 = vmatprep.mubr.f32.mxu0 %v3331
  %3700 = vmatmul.mubr.f32.gmra.mrb[0].mxu0 %v3329
  %v3701 = vpop.f32.mrb[0].mxu0
  %v3702 = vadd.f32 0.0, %v3701
  %v3703 = vpop.f32.mrb[0].mxu0
  %v3704 = vadd.f32 0.0, %v3703
  %3705 = vmatprep.mubr.f32.mxu0 %v3337
  %3706 = vmatmul.mubr.f32.gmra.mrb[0].mxu0 %v3334
  %v3707 = vpop.f32.mrb[0].mxu0
  %v3708 = vadd.f32 0.0, %v3707
  %v3709 = vpop.f32.mrb[0].mxu0
  %v3710 = vadd.f32 0.0, %v3709
  %3711 = vmatprep.mubr.f32.mxu0 %v3341
  %3712 = vmatmul.mubr.f32.gmra.mrb[0].mxu0 %v3339
  %v3713 = vpop.f32.mrb[0].mxu0
  %v3714 = vadd.f32 0.0, %v3713
  %v3715 = vpop.f32.mrb[0].mxu0
  %v3716 = vadd.f32 0.0, %v3715
  %3717 = vmatprep.mubr.f32.mxu0 %v3347
  %3718 = vmatmul.mubr.f32.gmra.mrb[0].mxu0 %v3344
  %v3719 = vpop.f32.mrb[0].mxu0
  %v3720 = vadd.f32 0.0, %v3719
  %v3721 = vpop.f32.mrb[0].mxu0
  %v3722 = vadd.f32 0.0, %v3721
  %3723 = vmatprep.mubr.f32.mxu0 %v3351
  %3724 = vmatmul.mubr.f32.gmra.mrb[0].mxu0 %v3349
  %v3725 = vpop.f32.mrb[0].mxu0
  %v3726 = vadd.f32 0.0, %v3725
  %v3727 = vpop.f32.mrb[0].mxu0
  %v3728 = vadd.f32 0.0, %v3727
  %3729 = vmatprep.mubr.f32.mxu0 %v3357
  %3730 = vmatmul.mubr.f32.gmra.mrb[0].mxu0 %v3354
  %v3731 = vpop.f32.mrb[0].mxu0
  %v3732 = vadd.f32 0.0, %v3731
  %v3733 = vpop.f32.mrb[0].mxu0
  %v3734 = vadd.f32 0.0, %v3733
  %3735 = vmatprep.mubr.f32.mxu0 %v3361
  %3736 = vmatmul.mubr.f32.gmra.mrb[0].mxu0 %v3359
  %v3737 = vpop.f32.mrb[0].mxu0
  %v3738 = vadd.f32 0.0, %v3737
  %v3739 = vpop.f32.mrb[0].mxu0
  %v3740 = vadd.f32 0.0, %v3739
  %3741 = vmatprep.mubr.f32.mxu0 %v3367
  %3742 = vmatmul.mubr.f32.gmra.mrb[0].mxu0 %v3364
  %v3743 = vpop.f32.mrb[0].mxu0
  %v3744 = vadd.f32 0.0, %v3743
  %v3745 = vpop.f32.mrb[0].mxu0
  %v3746 = vadd.f32 0.0, %v3745
  %3747 = vmatprep.mubr.f32.mxu0 %v3371
  %3748 = vmatmul.mubr.f32.gmra.mrb[0].mxu0 %v3369
  %v3749 = vpop.f32.mrb[0].mxu0
  %v3750 = vadd.f32 0.0, %v3749
  %v3751 = vpop.f32.mrb[0].mxu0
  %v3752 = vadd.f32 0.0, %v3751
  %3753 = vmatprep.mubr.f32.mxu0 %v3377
  %3754 = vmatmul.mubr.f32.gmra.mrb[0].mxu0 %v3374
  %v3755 = vpop.f32.mrb[0].mxu0
  %v3756 = vadd.f32 0.0, %v3755
  %v3757 = vpop.f32.mrb[0].mxu0
  %v3758 = vadd.f32 0.0, %v3757
  %3759 = vmatprep.mubr.f32.mxu0 %v3381
  %3760 = vmatmul.mubr.f32.gmra.mrb[0].mxu0 %v3379
  %v3761 = vpop.f32.mrb[0].mxu0
  %v3762 = vadd.f32 0.0, %v3761
  %v3763 = vpop.f32.mrb[0].mxu0
  %v3764 = vadd.f32 0.0, %v3763
  %3765 = vmatprep.mubr.f32.mxu0 %v3387
  %3766 = vmatmul.mubr.f32.gmra.mrb[0].mxu0 %v3384
  %v3767 = vpop.f32.mrb[0].mxu0
  %v3768 = vadd.f32 0.0, %v3767
  %v3769 = vpop.f32.mrb[0].mxu0
  %v3770 = vadd.f32 0.0, %v3769
  %3771 = vmatprep.mubr.f32.mxu0 %v3391
  %3772 = vmatmul.mubr.f32.gmra.mrb[0].mxu0 %v3389
  %v3773 = vpop.f32.mrb[0].mxu0
  %v3774 = vadd.f32 0.0, %v3773
  %v3775 = vpop.f32.mrb[0].mxu0
  %v3776 = vadd.f32 0.0, %v3775
  %3777 = vdwg.mxu0
  %v3778 = vadd.f32 %v3041, %v3588
  %v3779 = vadd.f32 %v3043, %v3590
  %v3780 = vadd.f32 %v3047, %v3594
  %v3781 = vadd.f32 %v3049, %v3596
  %v3782 = vadd.f32 %v3053, %v3600
  %v3783 = vadd.f32 %v3055, %v3602
  %v3784 = vadd.f32 %v3059, %v3606
  %v3785 = vadd.f32 %v3061, %v3608
  %v3786 = vadd.f32 %v3065, %v3612
  %v3787 = vadd.f32 %v3067, %v3614
  %v3788 = vadd.f32 %v3071, %v3618
  %v3789 = vadd.f32 %v3073, %v3620
  %v3790 = vadd.f32 %v3077, %v3624
  %v3791 = vadd.f32 %v3079, %v3626
  %v3792 = vadd.f32 %v3083, %v3630
  %v3793 = vadd.f32 %v3085, %v3632
  %v3794 = vadd.f32 %v3089, %v3636
  %v3795 = vadd.f32 %v3091, %v3638
  %v3796 = vadd.f32 %v3095, %v3642
  %v3797 = vadd.f32 %v3097, %v3644
  %v3798 = vadd.f32 %v3101, %v3648
  %v3799 = vadd.f32 %v3103, %v3650
  %v3800 = vadd.f32 %v3107, %v3654
  %v3801 = vadd.f32 %v3109, %v3656
  %v3802 = vadd.f32 %v3113, %v3660
  %v3803 = vadd.f32 %v3115, %v3662
  %v3804 = vadd.f32 %v3119, %v3666
  %v3805 = vadd.f32 %v3121, %v3668
  %v3806 = vadd.f32 %v3125, %v3672
  %v3807 = vadd.f32 %v3127, %v3674
  %v3808 = vadd.f32 %v3131, %v3678
  %v3809 = vadd.f32 %v3133, %v3680
  %v3810 = vadd.f32 %v3137, %v3684
  %v3811 = vadd.f32 %v3139, %v3686
  %v3812 = vadd.f32 %v3143, %v3690
  %v3813 = vadd.f32 %v3145, %v3692
  %v3814 = vadd.f32 %v3149, %v3696
  %v3815 = vadd.f32 %v3151, %v3698
  %v3816 = vadd.f32 %v3155, %v3702
  %v3817 = vadd.f32 %v3157, %v3704
  %v3818 = vadd.f32 %v3161, %v3708
  %v3819 = vadd.f32 %v3163, %v3710
  %v3820 = vadd.f32 %v3167, %v3714
  %v3821 = vadd.f32 %v3169, %v3716
  %v3822 = vadd.f32 %v3173, %v3720
  %v3823 = vadd.f32 %v3175, %v3722
  %v3824 = vadd.f32 %v3179, %v3726
  %v3825 = vadd.f32 %v3181, %v3728
  %v3826 = vadd.f32 %v3185, %v3732
  %v3827 = vadd.f32 %v3187, %v3734
  %v3828 = vadd.f32 %v3191, %v3738
  %v3829 = vadd.f32 %v3193, %v3740
  %v3830 = vadd.f32 %v3197, %v3744
  %v3831 = vadd.f32 %v3199, %v3746
  %v3832 = vadd.f32 %v3203, %v3750
  %v3833 = vadd.f32 %v3205, %v3752
  %v3834 = vadd.f32 %v3209, %v3756
  %v3835 = vadd.f32 %v3211, %v3758
  %v3836 = vadd.f32 %v3215, %v3762
  %v3837 = vadd.f32 %v3217, %v3764
  %v3838 = vadd.f32 %v3221, %v3768
  %v3839 = vadd.f32 %v3223, %v3770
  %v3840 = vadd.f32 %v3227, %v3774
  %v3841 = vadd.f32 %v3229, %v3776
  %v3842 = vld [vmem:[%s4] sm:$0x3]
  %v3844 = vlaneseq
  %v3845 = vshrl.u32 %v3844, 7
  %v3846 = vsub.s32 0, %v3845
  %v3847 = vrot.slane %v3842, %v3846
  %v3848 = vlaneseq
  %v3849 = vshrl.u32 %v3848, 7
  %v3850 = vsub.s32 1, %v3849
  %v3851 = vrot.slane %v3842, %v3850
  %v3854 = vadd.f32 %v3778, %v3847
  %v3855 = vadd.f32 %v3779, %v3851
  %v3856 = vadd.f32 %v3780, %v3847
  %v3857 = vadd.f32 %v3781, %v3851
  %v3858 = vadd.f32 %v3782, %v3847
  %v3859 = vadd.f32 %v3783, %v3851
  %v3860 = vadd.f32 %v3784, %v3847
  %v3861 = vadd.f32 %v3785, %v3851
  %v3862 = vadd.f32 %v3786, %v3847
  %v3863 = vadd.f32 %v3787, %v3851
  %v3864 = vadd.f32 %v3788, %v3847
  %v3865 = vadd.f32 %v3789, %v3851
  %v3866 = vadd.f32 %v3790, %v3847
  %v3867 = vadd.f32 %v3791, %v3851
  %v3868 = vadd.f32 %v3792, %v3847
  %v3869 = vadd.f32 %v3793, %v3851
  %v3870 = vadd.f32 %v3794, %v3847
  %v3871 = vadd.f32 %v3795, %v3851
  %v3872 = vadd.f32 %v3796, %v3847
  %v3873 = vadd.f32 %v3797, %v3851
  %v3874 = vadd.f32 %v3798, %v3847
  %v3875 = vadd.f32 %v3799, %v3851
  %v3876 = vadd.f32 %v3800, %v3847
  %v3877 = vadd.f32 %v3801, %v3851
  %v3878 = vadd.f32 %v3802, %v3847
  %v3879 = vadd.f32 %v3803, %v3851
  %v3880 = vadd.f32 %v3804, %v3847
  %v3881 = vadd.f32 %v3805, %v3851
  %v3882 = vadd.f32 %v3806, %v3847
  %v3883 = vadd.f32 %v3807, %v3851
  %v3884 = vadd.f32 %v3808, %v3847
  %v3885 = vadd.f32 %v3809, %v3851
  %v3886 = vadd.f32 %v3810, %v3847
  %v3887 = vadd.f32 %v3811, %v3851
  %v3888 = vadd.f32 %v3812, %v3847
  %v3889 = vadd.f32 %v3813, %v3851
  %v3890 = vadd.f32 %v3814, %v3847
  %v3891 = vadd.f32 %v3815, %v3851
  %v3892 = vadd.f32 %v3816, %v3847
  %v3893 = vadd.f32 %v3817, %v3851
  %v3894 = vadd.f32 %v3818, %v3847
  %v3895 = vadd.f32 %v3819, %v3851
  %v3896 = vadd.f32 %v3820, %v3847
  %v3897 = vadd.f32 %v3821, %v3851
  %v3898 = vadd.f32 %v3822, %v3847
  %v3899 = vadd.f32 %v3823, %v3851
  %v3900 = vadd.f32 %v3824, %v3847
  %v3901 = vadd.f32 %v3825, %v3851
  %v3902 = vadd.f32 %v3826, %v3847
  %v3903 = vadd.f32 %v3827, %v3851
  %v3904 = vadd.f32 %v3828, %v3847
  %v3905 = vadd.f32 %v3829, %v3851
  %v3906 = vadd.f32 %v3830, %v3847
  %v3907 = vadd.f32 %v3831, %v3851
  %v3908 = vadd.f32 %v3832, %v3847
  %v3909 = vadd.f32 %v3833, %v3851
  %v3910 = vadd.f32 %v3834, %v3847
  %v3911 = vadd.f32 %v3835, %v3851
  %v3912 = vadd.f32 %v3836, %v3847
  %v3913 = vadd.f32 %v3837, %v3851
  %v3914 = vadd.f32 %v3838, %v3847
  %v3915 = vadd.f32 %v3839, %v3851
  %v3916 = vadd.f32 %v3840, %v3847
  %v3917 = vadd.f32 %v3841, %v3851
  %v3918 = vmax.f32 %v3854, 0.0
  %v3919 = vmax.f32 %v3855, 0.0
  %v3920 = vmax.f32 %v3856, 0.0
  %v3921 = vmax.f32 %v3857, 0.0
  %v3922 = vmax.f32 %v3858, 0.0
  %v3923 = vmax.f32 %v3859, 0.0
  %v3924 = vmax.f32 %v3860, 0.0
  %v3925 = vmax.f32 %v3861, 0.0
  %v3926 = vmax.f32 %v3862, 0.0
  %v3927 = vmax.f32 %v3863, 0.0
  %v3928 = vmax.f32 %v3864, 0.0
  %v3929 = vmax.f32 %v3865, 0.0
  %v3930 = vmax.f32 %v3866, 0.0
  %v3931 = vmax.f32 %v3867, 0.0
  %v3932 = vmax.f32 %v3868, 0.0
  %v3933 = vmax.f32 %v3869, 0.0
  %v3934 = vmax.f32 %v3870, 0.0
  %v3935 = vmax.f32 %v3871, 0.0
  %v3936 = vmax.f32 %v3872, 0.0
  %v3937 = vmax.f32 %v3873, 0.0
  %v3938 = vmax.f32 %v3874, 0.0
  %v3939 = vmax.f32 %v3875, 0.0
  %v3940 = vmax.f32 %v3876, 0.0
  %v3941 = vmax.f32 %v3877, 0.0
  %v3942 = vmax.f32 %v3878, 0.0
  %v3943 = vmax.f32 %v3879, 0.0
  %v3944 = vmax.f32 %v3880, 0.0
  %v3945 = vmax.f32 %v3881, 0.0
  %v3946 = vmax.f32 %v3882, 0.0
  %v3947 = vmax.f32 %v3883, 0.0
  %v3948 = vmax.f32 %v3884, 0.0
  %v3949 = vmax.f32 %v3885, 0.0
  %v3950 = vmax.f32 %v3886, 0.0
  %v3951 = vmax.f32 %v3887, 0.0
  %v3952 = vmax.f32 %v3888, 0.0
  %v3953 = vmax.f32 %v3889, 0.0
  %v3954 = vmax.f32 %v3890, 0.0
  %v3955 = vmax.f32 %v3891, 0.0
  %v3956 = vmax.f32 %v3892, 0.0
  %v3957 = vmax.f32 %v3893, 0.0
  %v3958 = vmax.f32 %v3894, 0.0
  %v3959 = vmax.f32 %v3895, 0.0
  %v3960 = vmax.f32 %v3896, 0.0
  %v3961 = vmax.f32 %v3897, 0.0
  %v3962 = vmax.f32 %v3898, 0.0
  %v3963 = vmax.f32 %v3899, 0.0
  %v3964 = vmax.f32 %v3900, 0.0
  %v3965 = vmax.f32 %v3901, 0.0
  %v3966 = vmax.f32 %v3902, 0.0
  %v3967 = vmax.f32 %v3903, 0.0
  %v3968 = vmax.f32 %v3904, 0.0
  %v3969 = vmax.f32 %v3905, 0.0
  %v3970 = vmax.f32 %v3906, 0.0
  %v3971 = vmax.f32 %v3907, 0.0
  %v3972 = vmax.f32 %v3908, 0.0
  %v3973 = vmax.f32 %v3909, 0.0
  %v3974 = vmax.f32 %v3910, 0.0
  %v3975 = vmax.f32 %v3911, 0.0
  %v3976 = vmax.f32 %v3912, 0.0
  %v3977 = vmax.f32 %v3913, 0.0
  %v3978 = vmax.f32 %v3914, 0.0
  %v3979 = vmax.f32 %v3915, 0.0
  %v3980 = vmax.f32 %v3916, 0.0
  %v3981 = vmax.f32 %v3917, 0.0
  %v3982 = vadd.s32 %v1590, 8
  %vm3983 = vcmp.lt.s32.totalorder %v1590, 0
  %v3984 = vsub.s32 0, %v1590
  %v3985 = vsel %vm3983, %v3984, %v1590
  %v3986 = vshrl.u32 %v3985, 1
  %v3987 = vand.u32 %v3985, 1
  %v3988 = vsub.s32 0, %v3987
  %v3989 = vsel %vm3983, %v3988, %v3987
  %vm3990 = vcmp.lt.s32.totalorder %v3982, 0
  %v3991 = vsub.s32 0, %v3982
  %v3992 = vsel %vm3990, %v3991, %v3982
  %v3993 = vshrl.u32 %v3992, 1
  %v3994 = vand.u32 %v3992, 1
  %v3995 = vsub.s32 0, %v3994
  %v3996 = vsel %vm3990, %v3995, %v3994
  %vm3997 = vcmp.ne.s32.totalorder %v3989, 0
  %vm3998 = vcmp.ne.s32.totalorder %v3996, 0
  %vm3999 = vcmp.lt.s32.totalorder %v3989, 0
  %vm4000 = vcmp.lt.s32.totalorder %v3996, 0
  %vm4001 = vmand %vm3999, %vm3997
  %vm4002 = vmand %vm4000, %vm3998
  %v4003 = vadd.s32 %v3989, 2
  %v4004 = vadd.s32 %v3996, 2
  %v4005 = vsel %vm4001, %v4003, %v3989
  %v4006 = vsel %vm4002, %v4004, %v3996
  %vm4007 = vcmp.eq.s32.totalorder %v4005, 0
  %vm4008 = vcmp.eq.s32.totalorder %v4006, 0
  %v4009 = vsel %vm4007, 1, 0
  %v4010 = vsel %vm4008, 1, 0
  %vm4011 = vcmp.eq.s32.totalorder %v4009, 1
  %vm4012 = vcmp.eq.s32.totalorder %v4010, 1
  %v4013 = vsel %vm4011, %v3918, 0.0
  %v4014 = vsel %vm4011, %v3919, 0.0
  %v4015 = vsel %vm4012, %v3920, 0.0
  %v4016 = vsel %vm4012, %v3921, 0.0
  %v4017 = vsel %vm4011, %v3922, 0.0
  %v4018 = vsel %vm4011, %v3923, 0.0
  %v4019 = vsel %vm4012, %v3924, 0.0
  %v4020 = vsel %vm4012, %v3925, 0.0
  %v4021 = vsel %vm4011, %v3926, 0.0
  %v4022 = vsel %vm4011, %v3927, 0.0
  %v4023 = vsel %vm4012, %v3928, 0.0
  %v4024 = vsel %vm4012, %v3929, 0.0
  %v4025 = vsel %vm4011, %v3930, 0.0
  %v4026 = vsel %vm4011, %v3931, 0.0
  %v4027 = vsel %vm4012, %v3932, 0.0
  %v4028 = vsel %vm4012, %v3933, 0.0
  %v4029 = vsel %vm4011, %v3934, 0.0
  %v4030 = vsel %vm4011, %v3935, 0.0
  %v4031 = vsel %vm4012, %v3936, 0.0
  %v4032 = vsel %vm4012, %v3937, 0.0
  %v4033 = vsel %vm4011, %v3938, 0.0
  %v4034 = vsel %vm4011, %v3939, 0.0
  %v4035 = vsel %vm4012, %v3940, 0.0
  %v4036 = vsel %vm4012, %v3941, 0.0
  %v4037 = vsel %vm4011, %v3942, 0.0
  %v4038 = vsel %vm4011, %v3943, 0.0
  %v4039 = vsel %vm4012, %v3944, 0.0
  %v4040 = vsel %vm4012, %v3945, 0.0
  %v4041 = vsel %vm4011, %v3946, 0.0
  %v4042 = vsel %vm4011, %v3947, 0.0
  %v4043 = vsel %vm4012, %v3948, 0.0
  %v4044 = vsel %vm4012, %v3949, 0.0
  %v4045 = vsel %vm4011, %v3950, 0.0
  %v4046 = vsel %vm4011, %v3951, 0.0
  %v4047 = vsel %vm4012, %v3952, 0.0
  %v4048 = vsel %vm4012, %v3953, 0.0
  %v4049 = vsel %vm4011, %v3954, 0.0
  %v4050 = vsel %vm4011, %v3955, 0.0
  %v4051 = vsel %vm4012, %v3956, 0.0
  %v4052 = vsel %vm4012, %v3957, 0.0
  %v4053 = vsel %vm4011, %v3958, 0.0
  %v4054 = vsel %vm4011, %v3959, 0.0
  %v4055 = vsel %vm4012, %v3960, 0.0
  %v4056 = vsel %vm4012, %v3961, 0.0
  %v4057 = vsel %vm4011, %v3962, 0.0
  %v4058 = vsel %vm4011, %v3963, 0.0
  %v4059 = vsel %vm4012, %v3964, 0.0
  %v4060 = vsel %vm4012, %v3965, 0.0
  %v4061 = vsel %vm4011, %v3966, 0.0
  %v4062 = vsel %vm4011, %v3967, 0.0
  %v4063 = vsel %vm4012, %v3968, 0.0
  %v4064 = vsel %vm4012, %v3969, 0.0
  %v4065 = vsel %vm4011, %v3970, 0.0
  %v4066 = vsel %vm4011, %v3971, 0.0
  %v4067 = vsel %vm4012, %v3972, 0.0
  %v4068 = vsel %vm4012, %v3973, 0.0
  %v4069 = vsel %vm4011, %v3974, 0.0
  %v4070 = vsel %vm4011, %v3975, 0.0
  %v4071 = vsel %vm4012, %v3976, 0.0
  %v4072 = vsel %vm4012, %v3977, 0.0
  %v4073 = vsel %vm4011, %v3978, 0.0
  %v4074 = vsel %vm4011, %v3979, 0.0
  %v4075 = vsel %vm4012, %v3980, 0.0
  %v4076 = vsel %vm4012, %v3981, 0.0
  %v4077 = vadd.f32 %v4013, %v4015
  %v4078 = vrot.slane %v4077, 4
  %v4079 = vadd.f32 %v4077, %v4078
  %v4080 = vrot.slane %v4079, 2
  %v4081 = vadd.f32 %v4079, %v4080
  %v4082 = vrot.slane %v4081, 1
  %v4083 = vadd.f32 %v4081, %v4082
  %v4084 = vadd.f32 %v4014, %v4016
  %v4085 = vrot.slane %v4084, 4
  %v4086 = vadd.f32 %v4084, %v4085
  %v4087 = vrot.slane %v4086, 2
  %v4088 = vadd.f32 %v4086, %v4087
  %v4089 = vrot.slane %v4088, 1
  %v4090 = vadd.f32 %v4088, %v4089
  %v4091 = vadd.f32 %v4017, %v4019
  %v4092 = vrot.slane %v4091, 4
  %v4093 = vadd.f32 %v4091, %v4092
  %v4094 = vrot.slane %v4093, 2
  %v4095 = vadd.f32 %v4093, %v4094
  %v4096 = vrot.slane %v4095, 1
  %v4097 = vadd.f32 %v4095, %v4096
  %v4098 = vadd.f32 %v4018, %v4020
  %v4099 = vrot.slane %v4098, 4
  %v4100 = vadd.f32 %v4098, %v4099
  %v4101 = vrot.slane %v4100, 2
  %v4102 = vadd.f32 %v4100, %v4101
  %v4103 = vrot.slane %v4102, 1
  %v4104 = vadd.f32 %v4102, %v4103
  %v4105 = vadd.f32 %v4021, %v4023
  %v4106 = vrot.slane %v4105, 4
  %v4107 = vadd.f32 %v4105, %v4106
  %v4108 = vrot.slane %v4107, 2
  %v4109 = vadd.f32 %v4107, %v4108
  %v4110 = vrot.slane %v4109, 1
  %v4111 = vadd.f32 %v4109, %v4110
  %v4112 = vadd.f32 %v4022, %v4024
  %v4113 = vrot.slane %v4112, 4
  %v4114 = vadd.f32 %v4112, %v4113
  %v4115 = vrot.slane %v4114, 2
  %v4116 = vadd.f32 %v4114, %v4115
  %v4117 = vrot.slane %v4116, 1
  %v4118 = vadd.f32 %v4116, %v4117
  %v4119 = vadd.f32 %v4025, %v4027
  %v4120 = vrot.slane %v4119, 4
  %v4121 = vadd.f32 %v4119, %v4120
  %v4122 = vrot.slane %v4121, 2
  %v4123 = vadd.f32 %v4121, %v4122
  %v4124 = vrot.slane %v4123, 1
  %v4125 = vadd.f32 %v4123, %v4124
  %v4126 = vadd.f32 %v4026, %v4028
  %v4127 = vrot.slane %v4126, 4
  %v4128 = vadd.f32 %v4126, %v4127
  %v4129 = vrot.slane %v4128, 2
  %v4130 = vadd.f32 %v4128, %v4129
  %v4131 = vrot.slane %v4130, 1
  %v4132 = vadd.f32 %v4130, %v4131
  %v4133 = vadd.f32 %v4029, %v4031
  %v4134 = vrot.slane %v4133, 4
  %v4135 = vadd.f32 %v4133, %v4134
  %v4136 = vrot.slane %v4135, 2
  %v4137 = vadd.f32 %v4135, %v4136
  %v4138 = vrot.slane %v4137, 1
  %v4139 = vadd.f32 %v4137, %v4138
  %v4140 = vadd.f32 %v4030, %v4032
  %v4141 = vrot.slane %v4140, 4
  %v4142 = vadd.f32 %v4140, %v4141
  %v4143 = vrot.slane %v4142, 2
  %v4144 = vadd.f32 %v4142, %v4143
  %v4145 = vrot.slane %v4144, 1
  %v4146 = vadd.f32 %v4144, %v4145
  %v4147 = vadd.f32 %v4033, %v4035
  %v4148 = vrot.slane %v4147, 4
  %v4149 = vadd.f32 %v4147, %v4148
  %v4150 = vrot.slane %v4149, 2
  %v4151 = vadd.f32 %v4149, %v4150
  %v4152 = vrot.slane %v4151, 1
  %v4153 = vadd.f32 %v4151, %v4152
  %v4154 = vadd.f32 %v4034, %v4036
  %v4155 = vrot.slane %v4154, 4
  %v4156 = vadd.f32 %v4154, %v4155
  %v4157 = vrot.slane %v4156, 2
  %v4158 = vadd.f32 %v4156, %v4157
  %v4159 = vrot.slane %v4158, 1
  %v4160 = vadd.f32 %v4158, %v4159
  %v4161 = vadd.f32 %v4037, %v4039
  %v4162 = vrot.slane %v4161, 4
  %v4163 = vadd.f32 %v4161, %v4162
  %v4164 = vrot.slane %v4163, 2
  %v4165 = vadd.f32 %v4163, %v4164
  %v4166 = vrot.slane %v4165, 1
  %v4167 = vadd.f32 %v4165, %v4166
  %v4168 = vadd.f32 %v4038, %v4040
  %v4169 = vrot.slane %v4168, 4
  %v4170 = vadd.f32 %v4168, %v4169
  %v4171 = vrot.slane %v4170, 2
  %v4172 = vadd.f32 %v4170, %v4171
  %v4173 = vrot.slane %v4172, 1
  %v4174 = vadd.f32 %v4172, %v4173
  %v4175 = vadd.f32 %v4041, %v4043
  %v4176 = vrot.slane %v4175, 4
  %v4177 = vadd.f32 %v4175, %v4176
  %v4178 = vrot.slane %v4177, 2
  %v4179 = vadd.f32 %v4177, %v4178
  %v4180 = vrot.slane %v4179, 1
  %v4181 = vadd.f32 %v4179, %v4180
  %v4182 = vadd.f32 %v4042, %v4044
  %v4183 = vrot.slane %v4182, 4
  %v4184 = vadd.f32 %v4182, %v4183
  %v4185 = vrot.slane %v4184, 2
  %v4186 = vadd.f32 %v4184, %v4185
  %v4187 = vrot.slane %v4186, 1
  %v4188 = vadd.f32 %v4186, %v4187
  %v4189 = vadd.f32 %v4045, %v4047
  %v4190 = vrot.slane %v4189, 4
  %v4191 = vadd.f32 %v4189, %v4190
  %v4192 = vrot.slane %v4191, 2
  %v4193 = vadd.f32 %v4191, %v4192
  %v4194 = vrot.slane %v4193, 1
  %v4195 = vadd.f32 %v4193, %v4194
  %v4196 = vadd.f32 %v4046, %v4048
  %v4197 = vrot.slane %v4196, 4
  %v4198 = vadd.f32 %v4196, %v4197
  %v4199 = vrot.slane %v4198, 2
  %v4200 = vadd.f32 %v4198, %v4199
  %v4201 = vrot.slane %v4200, 1
  %v4202 = vadd.f32 %v4200, %v4201
  %v4203 = vadd.f32 %v4049, %v4051
  %v4204 = vrot.slane %v4203, 4
  %v4205 = vadd.f32 %v4203, %v4204
  %v4206 = vrot.slane %v4205, 2
  %v4207 = vadd.f32 %v4205, %v4206
  %v4208 = vrot.slane %v4207, 1
  %v4209 = vadd.f32 %v4207, %v4208
  %v4210 = vadd.f32 %v4050, %v4052
  %v4211 = vrot.slane %v4210, 4
  %v4212 = vadd.f32 %v4210, %v4211
  %v4213 = vrot.slane %v4212, 2
  %v4214 = vadd.f32 %v4212, %v4213
  %v4215 = vrot.slane %v4214, 1
  %v4216 = vadd.f32 %v4214, %v4215
  %v4217 = vadd.f32 %v4053, %v4055
  %v4218 = vrot.slane %v4217, 4
  %v4219 = vadd.f32 %v4217, %v4218
  %v4220 = vrot.slane %v4219, 2
  %v4221 = vadd.f32 %v4219, %v4220
  %v4222 = vrot.slane %v4221, 1
  %v4223 = vadd.f32 %v4221, %v4222
  %v4224 = vadd.f32 %v4054, %v4056
  %v4225 = vrot.slane %v4224, 4
  %v4226 = vadd.f32 %v4224, %v4225
  %v4227 = vrot.slane %v4226, 2
  %v4228 = vadd.f32 %v4226, %v4227
  %v4229 = vrot.slane %v4228, 1
  %v4230 = vadd.f32 %v4228, %v4229
  %v4231 = vadd.f32 %v4057, %v4059
  %v4232 = vrot.slane %v4231, 4
  %v4233 = vadd.f32 %v4231, %v4232
  %v4234 = vrot.slane %v4233, 2
  %v4235 = vadd.f32 %v4233, %v4234
  %v4236 = vrot.slane %v4235, 1
  %v4237 = vadd.f32 %v4235, %v4236
  %v4238 = vadd.f32 %v4058, %v4060
  %v4239 = vrot.slane %v4238, 4
  %v4240 = vadd.f32 %v4238, %v4239
  %v4241 = vrot.slane %v4240, 2
  %v4242 = vadd.f32 %v4240, %v4241
  %v4243 = vrot.slane %v4242, 1
  %v4244 = vadd.f32 %v4242, %v4243
  %v4245 = vadd.f32 %v4061, %v4063
  %v4246 = vrot.slane %v4245, 4
  %v4247 = vadd.f32 %v4245, %v4246
  %v4248 = vrot.slane %v4247, 2
  %v4249 = vadd.f32 %v4247, %v4248
  %v4250 = vrot.slane %v4249, 1
  %v4251 = vadd.f32 %v4249, %v4250
  %v4252 = vadd.f32 %v4062, %v4064
  %v4253 = vrot.slane %v4252, 4
  %v4254 = vadd.f32 %v4252, %v4253
  %v4255 = vrot.slane %v4254, 2
  %v4256 = vadd.f32 %v4254, %v4255
  %v4257 = vrot.slane %v4256, 1
  %v4258 = vadd.f32 %v4256, %v4257
  %v4259 = vadd.f32 %v4065, %v4067
  %v4260 = vrot.slane %v4259, 4
  %v4261 = vadd.f32 %v4259, %v4260
  %v4262 = vrot.slane %v4261, 2
  %v4263 = vadd.f32 %v4261, %v4262
  %v4264 = vrot.slane %v4263, 1
  %v4265 = vadd.f32 %v4263, %v4264
  %v4266 = vadd.f32 %v4066, %v4068
  %v4267 = vrot.slane %v4266, 4
  %v4268 = vadd.f32 %v4266, %v4267
  %v4269 = vrot.slane %v4268, 2
  %v4270 = vadd.f32 %v4268, %v4269
  %v4271 = vrot.slane %v4270, 1
  %v4272 = vadd.f32 %v4270, %v4271
  %v4273 = vadd.f32 %v4069, %v4071
  %v4274 = vrot.slane %v4273, 4
  %v4275 = vadd.f32 %v4273, %v4274
  %v4276 = vrot.slane %v4275, 2
  %v4277 = vadd.f32 %v4275, %v4276
  %v4278 = vrot.slane %v4277, 1
  %v4279 = vadd.f32 %v4277, %v4278
  %v4280 = vadd.f32 %v4070, %v4072
  %v4281 = vrot.slane %v4280, 4
  %v4282 = vadd.f32 %v4280, %v4281
  %v4283 = vrot.slane %v4282, 2
  %v4284 = vadd.f32 %v4282, %v4283
  %v4285 = vrot.slane %v4284, 1
  %v4286 = vadd.f32 %v4284, %v4285
  %v4287 = vadd.f32 %v4073, %v4075
  %v4288 = vrot.slane %v4287, 4
  %v4289 = vadd.f32 %v4287, %v4288
  %v4290 = vrot.slane %v4289, 2
  %v4291 = vadd.f32 %v4289, %v4290
  %v4292 = vrot.slane %v4291, 1
  %v4293 = vadd.f32 %v4291, %v4292
  %v4294 = vadd.f32 %v4074, %v4076
  %v4295 = vrot.slane %v4294, 4
  %v4296 = vadd.f32 %v4294, %v4295
  %v4297 = vrot.slane %v4296, 2
  %v4298 = vadd.f32 %v4296, %v4297
  %v4299 = vrot.slane %v4298, 1
  %v4300 = vadd.f32 %v4298, %v4299
  %v4301 = vld [vmem:[%s5] sm:$0xff]
  %v4302 = vld [vmem:[%s5 + $0x8] sm:$0xff]
  %v4303 = vld [vmem:[%s5 + $0x10] sm:$0xff]
  %v4304 = vld [vmem:[%s5 + $0x18] sm:$0xff]
  %v4305 = vld [vmem:[%s5 + $0x20] sm:$0xff]
  %v4306 = vld [vmem:[%s5 + $0x28] sm:$0xff]
  %v4307 = vld [vmem:[%s5 + $0x30] sm:$0xff]
  %v4308 = vld [vmem:[%s5 + $0x38] sm:$0xff]
  %v4309 = vld [vmem:[%s5 + $0x40] sm:$0xff]
  %v4310 = vld [vmem:[%s5 + $0x48] sm:$0xff]
  %v4311 = vld [vmem:[%s5 + $0x50] sm:$0xff]
  %v4312 = vld [vmem:[%s5 + $0x58] sm:$0xff]
  %v4313 = vld [vmem:[%s5 + $0x60] sm:$0xff]
  %v4314 = vld [vmem:[%s5 + $0x68] sm:$0xff]
  %v4315 = vld [vmem:[%s5 + $0x70] sm:$0xff]
  %v4316 = vld [vmem:[%s5 + $0x78] sm:$0xff]
  %v4317 = vld [vmem:[%s5 + $0x80] sm:$0xff]
  %v4318 = vld [vmem:[%s5 + $0x88] sm:$0xff]
  %v4319 = vld [vmem:[%s5 + $0x90] sm:$0xff]
  %v4320 = vld [vmem:[%s5 + $0x98] sm:$0xff]
  %v4321 = vld [vmem:[%s5 + $0xa0] sm:$0xff]
  %v4322 = vld [vmem:[%s5 + $0xa8] sm:$0xff]
  %v4323 = vld [vmem:[%s5 + $0xb0] sm:$0xff]
  %v4324 = vld [vmem:[%s5 + $0xb8] sm:$0xff]
  %v4325 = vld [vmem:[%s5 + $0xc0] sm:$0xff]
  %v4326 = vld [vmem:[%s5 + $0xc8] sm:$0xff]
  %v4327 = vld [vmem:[%s5 + $0xd0] sm:$0xff]
  %v4328 = vld [vmem:[%s5 + $0xd8] sm:$0xff]
  %v4329 = vld [vmem:[%s5 + $0xe0] sm:$0xff]
  %v4330 = vld [vmem:[%s5 + $0xe8] sm:$0xff]
  %v4331 = vld [vmem:[%s5 + $0xf0] sm:$0xff]
  %v4332 = vld [vmem:[%s5 + $0xf8] sm:$0xff]
  %vm4365 = vcmask 1041409
  %v4366 = vsel %vm4365, %v4097, %v4083
  %vm4367 = vcmask 1042434
  %v4368 = vsel %vm4367, %v4111, %v4366
  %vm4369 = vcmask 1043459
  %v4370 = vsel %vm4369, %v4125, %v4368
  %vm4371 = vcmask 1044484
  %v4372 = vsel %vm4371, %v4139, %v4370
  %vm4373 = vcmask 1045509
  %v4374 = vsel %vm4373, %v4153, %v4372
  %vm4375 = vcmask 1046534
  %v4376 = vsel %vm4375, %v4167, %v4374
  %vm4377 = vcmask 1047559
  %v4378 = vsel %vm4377, %v4181, %v4376
  %v4379 = vsel %vm4365, %v4104, %v4090
  %v4380 = vsel %vm4367, %v4118, %v4379
  %v4381 = vsel %vm4369, %v4132, %v4380
  %v4382 = vsel %vm4371, %v4146, %v4381
  %v4383 = vsel %vm4373, %v4160, %v4382
  %v4384 = vsel %vm4375, %v4174, %v4383
  %v4385 = vsel %vm4377, %v4188, %v4384
  %v4386 = vsel %vm4365, %v4209, %v4195
  %v4387 = vsel %vm4367, %v4223, %v4386
  %v4388 = vsel %vm4369, %v4237, %v4387
  %v4389 = vsel %vm4371, %v4251, %v4388
  %v4390 = vsel %vm4373, %v4265, %v4389
  %v4391 = vsel %vm4375, %v4279, %v4390
  %v4392 = vsel %vm4377, %v4293, %v4391
  %v4393 = vsel %vm4365, %v4216, %v4202
  %v4394 = vsel %vm4367, %v4230, %v4393
  %v4395 = vsel %vm4369, %v4244, %v4394
  %v4396 = vsel %vm4371, %v4258, %v4395
  %v4397 = vsel %vm4373, %v4272, %v4396
  %v4398 = vsel %vm4375, %v4286, %v4397
  %v4399 = vsel %vm4377, %v4300, %v4398
  %4404 = vmatprep.subr.mxu0 0.0
  %4405 = vmatpush1.msra.mxu0 %v4301
  %4406 = vmatprep.subr.mxu0 0.0
  %4407 = vmatpush1.msra.mxu0 %v4302
  %4408 = vmatprep.subr.mxu0 0.0
  %4409 = vmatpush1.msra.mxu0 %v4303
  %4410 = vmatprep.subr.mxu0 0.0
  %4411 = vmatpush1.msra.mxu0 %v4304
  %4412 = vmatprep.subr.mxu0 0.0
  %4413 = vmatpush1.msra.mxu0 %v4305
  %4414 = vmatprep.subr.mxu0 0.0
  %4415 = vmatpush1.msra.mxu0 %v4306
  %4416 = vmatprep.subr.mxu0 0.0
  %4417 = vmatpush1.msra.mxu0 %v4307
  %4418 = vmatprep.subr.mxu0 0.0
  %4419 = vmatpush1.msra.mxu0 %v4308
  %4420 = vmatprep.subr.mxu0 0.0
  %4421 = vmatpush1.msra.mxu0 %v4309
  %4422 = vmatprep.subr.mxu0 0.0
  %4423 = vmatpush1.msra.mxu0 %v4310
  %4424 = vmatprep.subr.mxu0 0.0
  %4425 = vmatpush1.msra.mxu0 %v4311
  %4426 = vmatprep.subr.mxu0 0.0
  %4427 = vmatpush1.msra.mxu0 %v4312
  %4428 = vmatprep.subr.mxu0 0.0
  %4429 = vmatpush1.msra.mxu0 %v4313
  %4430 = vmatprep.subr.mxu0 0.0
  %4431 = vmatpush1.msra.mxu0 %v4314
  %4432 = vmatprep.subr.mxu0 0.0
  %4433 = vmatpush1.msra.mxu0 %v4315
  %4434 = vmatprep.subr.mxu0 0.0
  %4435 = vmatpush1.msra.mxu0 %v4316
  %4436 = vmatprep.subr.mxu0 0.0
  %4437 = vmatpush1.msra.mxu0 %v4317
  %4438 = vmatprep.subr.mxu0 0.0
  %4439 = vmatpush1.msra.mxu0 %v4318
  %4440 = vmatprep.subr.mxu0 0.0
  %4441 = vmatpush1.msra.mxu0 %v4319
  %4442 = vmatprep.subr.mxu0 0.0
  %4443 = vmatpush1.msra.mxu0 %v4320
  %4444 = vmatprep.subr.mxu0 0.0
  %4445 = vmatpush1.msra.mxu0 %v4321
  %4446 = vmatprep.subr.mxu0 0.0
  %4447 = vmatpush1.msra.mxu0 %v4322
  %4448 = vmatprep.subr.mxu0 0.0
  %4449 = vmatpush1.msra.mxu0 %v4323
  %4450 = vmatprep.subr.mxu0 0.0
  %4451 = vmatpush1.msra.mxu0 %v4324
  %4452 = vmatprep.subr.mxu0 0.0
  %4453 = vmatpush1.msra.mxu0 %v4325
  %4454 = vmatprep.subr.mxu0 0.0
  %4455 = vmatpush1.msra.mxu0 %v4326
  %4456 = vmatprep.subr.mxu0 0.0
  %4457 = vmatpush1.msra.mxu0 %v4327
  %4458 = vmatprep.subr.mxu0 0.0
  %4459 = vmatpush1.msra.mxu0 %v4328
  %4460 = vmatprep.subr.mxu0 0.0
  %4461 = vmatpush1.msra.mxu0 %v4329
  %4462 = vmatprep.subr.mxu0 0.0
  %4463 = vmatpush1.msra.mxu0 %v4330
  %4464 = vmatprep.subr.mxu0 0.0
  %4465 = vmatpush1.msra.mxu0 %v4331
  %4466 = vmatprep.subr.mxu0 0.0
  %4467 = vmatpush1.msra.mxu0 %v4332
  %4468 = vmatprep.mubr.f32.mxu0 %v4385
  %4469 = vmatmul.mubr.f32.gmra.mrb[0].mxu0 %v4378
  %v4470 = vpop.f32.mrb[0].mxu0
  %v4471 = vadd.f32 0.0, %v4470
  %v4472 = vpop.f32.mrb[0].mxu0
  %4473 = vmatprep.mubr.f32.mxu0 %v4399
  %4474 = vmatmul.mubr.f32.gmra.mrb[0].mxu0 %v4392
  %v4475 = vpop.f32.mrb[0].mxu0
  %v4476 = vadd.f32 0.0, %v4475
  %v4477 = vpop.f32.mrb[0].mxu0
  %4478 = vdwg.mxu0
  %v4479 = vld [vmem:[%s6] sm:$0xff]
  %v4480 = vld [vmem:[%s6 + $0x8] sm:$0xff]
  %v4481 = vld [vmem:[%s6 + $0x10] sm:$0xff]
  %v4482 = vld [vmem:[%s6 + $0x18] sm:$0xff]
  %v4483 = vld [vmem:[%s6 + $0x20] sm:$0xff]
  %v4484 = vld [vmem:[%s6 + $0x28] sm:$0xff]
  %v4485 = vld [vmem:[%s6 + $0x30] sm:$0xff]
  %v4486 = vld [vmem:[%s6 + $0x38] sm:$0xff]
  %v4487 = vld [vmem:[%s8] sm:$0x3]
  %v4489 = vlaneseq
  %v4490 = vshrl.u32 %v4489, 7
  %v4491 = vsub.s32 0, %v4490
  %v4492 = vrot.slane %v4487, %v4491
  %v4493 = vlaneseq
  %v4494 = vshrl.u32 %v4493, 7
  %v4495 = vsub.s32 1, %v4494
  %v4496 = vrot.slane %v4487, %v4495
  %vm4499 = vcmask 261120
  %v4501 = vsel %vm4499, %v4471, 0
  %v4504 = vsel %vm4499, %v4476, 0
  %4506 = vmatprep.subr.mxu0 %v4480
  %4507 = vmatpush1.msra.mxu0 %v4479
  %4508 = vmatprep.subr.mxu0 %v4482
  %4509 = vmatpush1.msra.mxu0 %v4481
  %4510 = vmatprep.subr.mxu0 %v4484
  %4511 = vmatpush1.msra.mxu0 %v4483
  %4512 = vmatprep.subr.mxu0 %v4486
  %4513 = vmatpush1.msra.mxu0 %v4485
  %4514 = vmatprep.subr.mxu0 0.0
  %4515 = vmatpush1.msra.mxu0 0.0
  %4516 = vmatprep.subr.mxu0 0.0
  %4517 = vmatpush1.msra.mxu0 0.0
  %4518 = vmatprep.subr.mxu0 0.0
  %4519 = vmatpush1.msra.mxu0 0.0
  %4520 = vmatprep.subr.mxu0 0.0
  %4521 = vmatpush1.msra.mxu0 0.0
  %4522 = vmatprep.subr.mxu0 0.0
  %4523 = vmatpush1.msra.mxu0 0.0
  %4524 = vmatprep.subr.mxu0 0.0
  %4525 = vmatpush1.msra.mxu0 0.0
  %4526 = vmatprep.subr.mxu0 0.0
  %4527 = vmatpush1.msra.mxu0 0.0
  %4528 = vmatprep.subr.mxu0 0.0
  %4529 = vmatpush1.msra.mxu0 0.0
  %4530 = vmatprep.subr.mxu0 0.0
  %4531 = vmatpush1.msra.mxu0 0.0
  %4532 = vmatprep.subr.mxu0 0.0
  %4533 = vmatpush1.msra.mxu0 0.0
  %4534 = vmatprep.subr.mxu0 0.0
  %4535 = vmatpush1.msra.mxu0 0.0
  %4536 = vmatprep.subr.mxu0 0.0
  %4537 = vmatpush1.msra.mxu0 0.0
  %4538 = vmatprep.subr.mxu0 0.0
  %4539 = vmatpush1.msra.mxu0 0.0
  %4540 = vmatprep.subr.mxu0 0.0
  %4541 = vmatpush1.msra.mxu0 0.0
  %4542 = vmatprep.subr.mxu0 0.0
  %4543 = vmatpush1.msra.mxu0 0.0
  %4544 = vmatprep.subr.mxu0 0.0
  %4545 = vmatpush1.msra.mxu0 0.0
  %4546 = vmatprep.subr.mxu0 0.0
  %4547 = vmatpush1.msra.mxu0 0.0
  %4548 = vmatprep.subr.mxu0 0.0
  %4549 = vmatpush1.msra.mxu0 0.0
  %4550 = vmatprep.subr.mxu0 0.0
  %4551 = vmatpush1.msra.mxu0 0.0
  %4552 = vmatprep.subr.mxu0 0.0
  %4553 = vmatpush1.msra.mxu0 0.0
  %4554 = vmatprep.subr.mxu0 0.0
  %4555 = vmatpush1.msra.mxu0 0.0
  %4556 = vmatprep.subr.mxu0 0.0
  %4557 = vmatpush1.msra.mxu0 0.0
  %4558 = vmatprep.subr.mxu0 0.0
  %4559 = vmatpush1.msra.mxu0 0.0
  %4560 = vmatprep.subr.mxu0 0.0
  %4561 = vmatpush1.msra.mxu0 0.0
  %4562 = vmatprep.subr.mxu0 0.0
  %4563 = vmatpush1.msra.mxu0 0.0
  %4564 = vmatprep.subr.mxu0 0.0
  %4565 = vmatpush1.msra.mxu0 0.0
  %4566 = vmatprep.subr.mxu0 0.0
  %4567 = vmatpush1.msra.mxu0 0.0
  %4568 = vmatprep.subr.mxu0 0.0
  %4569 = vmatpush1.msra.mxu0 0.0
  %4570 = vmatprep.mubr.f32.mxu0 0.0
  %4571 = vmatmul.mubr.f32.gmra.mrb[0].mxu0 %v4501
  %v4572 = vpop.f32.mrb[0].mxu0
  %v4573 = vadd.f32 %v4492, %v4572
  %v4574 = vpop.f32.mrb[0].mxu0
  %v4575 = vadd.f32 %v4496, %v4574
  %4576 = vmatprep.mubr.f32.mxu0 0.0
  %4577 = vmatmul.mubr.f32.gmra.mrb[0].mxu0 %v4504
  %v4578 = vpop.f32.mrb[0].mxu0
  %v4579 = vadd.f32 %v4492, %v4578
  %v4580 = vpop.f32.mrb[0].mxu0
  %v4581 = vadd.f32 %v4496, %v4580
  %4582 = vdwg.mxu0
  %v4587 = vcombine.low %v4573, %v4575
  %v4588 = vcombine.high %v4573, %v4575
  %v4590 = vunpack.c.l.s4 1983009808
  %v4591 = vunpack.c.0.s8 %v4590
  %v4592 = vlaneseq
  %v4593 = vshrl.u32 %v4592, 7
  %v4594 = vsub.s32 %v4591, %v4593
  %v4595 = vrot.slane %v4587, %v4594
  %v4597 = vunpack.c.l.s4 1983009808
  %v4598 = vunpack.c.0.s8 %v4597
  %v4599 = vlaneseq
  %v4600 = vshrl.u32 %v4599, 7
  %v4601 = vsub.s32 %v4598, %v4600
  %v4602 = vrot.slane %v4588, %v4601
  %v4603 = vcombine.high %v4595, %v4595
  %v4604 = vcombine.high %v4602, %v4602
  %v4605 = vcombine.low %v4579, %v4581
  %v4606 = vcombine.high %v4579, %v4581
  %v4608 = vunpack.c.l.s4 1983009808
  %v4609 = vunpack.c.0.s8 %v4608
  %v4610 = vlaneseq
  %v4611 = vshrl.u32 %v4610, 7
  %v4612 = vsub.s32 %v4609, %v4611
  %v4613 = vrot.slane %v4605, %v4612
  %v4615 = vunpack.c.l.s4 1983009808
  %v4616 = vunpack.c.0.s8 %v4615
  %v4617 = vlaneseq
  %v4618 = vshrl.u32 %v4617, 7
  %v4619 = vsub.s32 %v4616, %v4618
  %v4620 = vrot.slane %v4606, %v4619
  %v4621 = vcombine.high %v4613, %v4613
  %v4622 = vcombine.high %v4620, %v4620
  %v4623 = vld [vmem:[%s9] sm:$0x3]
  %vm4624 = vcmp.gt.f32.partialorder %v4623, 0.5
  %v4625 = vld [vmem:[%s7] sm:$0xff]
  %v4626 = vld [vmem:[%s7 + $0x8] sm:$0xff]
  %v4627 = vld [vmem:[%s7 + $0x10] sm:$0xff]
  %v4628 = vld [vmem:[%s7 + $0x18] sm:$0xff]
  %v4629 = vld [vmem:[%s7 + $0x20] sm:$0xff]
  %v4630 = vld [vmem:[%s7 + $0x28] sm:$0xff]
  %v4631 = vld [vmem:[%s7 + $0x30] sm:$0xff]
  %v4632 = vld [vmem:[%s7 + $0x38] sm:$0xff]
  %v4633 = vld [vmem:[%s7 + $0x40] sm:$0xff]
  %v4634 = vld [vmem:[%s7 + $0x48] sm:$0xff]
  %v4635 = vld [vmem:[%s7 + $0x50] sm:$0xff]
  %v4636 = vld [vmem:[%s7 + $0x58] sm:$0xff]
  %v4637 = vld [vmem:[%s7 + $0x60] sm:$0xff]
  %v4638 = vld [vmem:[%s7 + $0x68] sm:$0xff]
  %v4639 = vld [vmem:[%s7 + $0x70] sm:$0xff]
  %v4640 = vld [vmem:[%s7 + $0x78] sm:$0xff]
  %v4641 = vsel %vm4624, 1, 0
  %v4642 = vlaneseq
  %v4643 = vshrl.u32 %v4642, 7
  %v4644 = vsub.s32 0, %v4643
  %v4645 = vrot.slane %v4641, %v4644
  %v4646 = vlaneseq
  %v4647 = vshrl.u32 %v4646, 7
  %v4648 = vsub.s32 1, %v4647
  %v4649 = vrot.slane %v4641, %v4648
  %vm4650 = vcmp.eq.s32.totalorder %v4645, 1
  %vm4651 = vcmp.eq.s32.totalorder %v4649, 1
  %v4653 = vunpack.c.l.s4 1983009808
  %v4654 = vunpack.c.0.s8 %v4653
  %v4655 = vlaneseq
  %v4656 = vshrl.u32 %v4655, 7
  %v4657 = vsub.s32 %v4654, %v4656
  %v4658 = vrot.slane %v4595, %v4657
  %v4659 = vcombine.high %v4658, %v4658
  %v4663 = vunpack.c.l.s4 1983009808
  %v4664 = vunpack.c.0.s8 %v4663
  %v4665 = vlaneseq
  %v4666 = vshrl.u32 %v4665, 7
  %v4667 = vsub.s32 %v4664, %v4666
  %v4668 = vrot.slane %v4622, %v4667
  %v4669 = vcombine.high %v4668, %v4668
  %v4672 = vsel %vm4650, %v4658, %v4668
  %v4673 = vsel %vm4651, %v4659, %v4669
  %v4675 = vsel %vm259, 0.0, 0
  %4677 = vmatprep.subr.mxu0 %v4626
  %4678 = vmatpush1.msra.mxu0 %v4625
  %4679 = vmatprep.subr.mxu0 %v4628
  %4680 = vmatpush1.msra.mxu0 %v4627
  %4681 = vmatprep.subr.mxu0 %v4630
  %4682 = vmatpush1.msra.mxu0 %v4629
  %4683 = vmatprep.subr.mxu0 %v4632
  %4684 = vmatpush1.msra.mxu0 %v4631
  %4685 = vmatprep.subr.mxu0 %v4634
  %4686 = vmatpush1.msra.mxu0 %v4633
  %4687 = vmatprep.subr.mxu0 %v4636
  %4688 = vmatpush1.msra.mxu0 %v4635
  %4689 = vmatprep.subr.mxu0 %v4638
  %4690 = vmatpush1.msra.mxu0 %v4637
  %4691 = vmatprep.subr.mxu0 %v4640
  %4692 = vmatpush1.msra.mxu0 %v4639
  %4693 = vmatprep.subr.mxu0 0.0
  %4694 = vmatpush1.msra.mxu0 0.0
  %4695 = vmatprep.subr.mxu0 0.0
  %4696 = vmatpush1.msra.mxu0 0.0
  %4697 = vmatprep.subr.mxu0 0.0
  %4698 = vmatpush1.msra.mxu0 0.0
  %4699 = vmatprep.subr.mxu0 0.0
  %4700 = vmatpush1.msra.mxu0 0.0
  %4701 = vmatprep.subr.mxu0 0.0
  %4702 = vmatpush1.msra.mxu0 0.0
  %4703 = vmatprep.subr.mxu0 0.0
  %4704 = vmatpush1.msra.mxu0 0.0
  %4705 = vmatprep.subr.mxu0 0.0
  %4706 = vmatpush1.msra.mxu0 0.0
  %4707 = vmatprep.subr.mxu0 0.0
  %4708 = vmatpush1.msra.mxu0 0.0
  %4709 = vmatprep.subr.mxu0 0.0
  %4710 = vmatpush1.msra.mxu0 0.0
  %4711 = vmatprep.subr.mxu0 0.0
  %4712 = vmatpush1.msra.mxu0 0.0
  %4713 = vmatprep.subr.mxu0 0.0
  %4714 = vmatpush1.msra.mxu0 0.0
  %4715 = vmatprep.subr.mxu0 0.0
  %4716 = vmatpush1.msra.mxu0 0.0
  %4717 = vmatprep.subr.mxu0 0.0
  %4718 = vmatpush1.msra.mxu0 0.0
  %4719 = vmatprep.subr.mxu0 0.0
  %4720 = vmatpush1.msra.mxu0 0.0
  %4721 = vmatprep.subr.mxu0 0.0
  %4722 = vmatpush1.msra.mxu0 0.0
  %4723 = vmatprep.subr.mxu0 0.0
  %4724 = vmatpush1.msra.mxu0 0.0
  %4725 = vmatprep.subr.mxu0 0.0
  %4726 = vmatpush1.msra.mxu0 0.0
  %4727 = vmatprep.subr.mxu0 0.0
  %4728 = vmatpush1.msra.mxu0 0.0
  %4729 = vmatprep.subr.mxu0 0.0
  %4730 = vmatpush1.msra.mxu0 0.0
  %4731 = vmatprep.subr.mxu0 0.0
  %4732 = vmatpush1.msra.mxu0 0.0
  %4733 = vmatprep.subr.mxu0 0.0
  %4734 = vmatpush1.msra.mxu0 0.0
  %4735 = vmatprep.subr.mxu0 0.0
  %4736 = vmatpush1.msra.mxu0 0.0
  %4737 = vmatprep.subr.mxu0 0.0
  %4738 = vmatpush1.msra.mxu0 0.0
  %4739 = vmatprep.subr.mxu0 0.0
  %4740 = vmatpush1.msra.mxu0 0.0
  %4741 = vmatprep.mubr.f32.mxu0 0.0
  %4742 = vmatmul.mubr.f32.gmra.mrb[0].mxu0 %v4675
  %v4743 = vpop.f32.mrb[0].mxu0
  %v4744 = vadd.f32 0.0, %v4743
  %v4745 = vpop.f32.mrb[0].mxu0
  %v4746 = vadd.f32 0.0, %v4745
  %4747 = vdwg.mxu0
  %v4748 = vadd.f32 %v4672, %v4744
  %v4749 = vadd.f32 %v4673, %v4746
  %v4750 = vmul.f32 %v4748, 0.5
  %v4751 = vtanh.pop %v4750
  %v4752 = vadd.f32 %v4751, 1.0
  %v4753 = vmul.f32 %v4752, 0.5
  %v4754 = vtanh.pop %v4749
  %v4755 = vmul.f32 %v4749, 0.5
  %v4756 = vtanh.pop %v4755
  %v4757 = vadd.f32 %v4756, 1.0
  %v4758 = vmul.f32 %v4757, 0.5
  %v4759 = vmul.f32 %v4753, 0.0
  %v4760 = vmul.f32 %v4753, %v4754
  %4762 = vrot.lane.b32.xlu0 %v4760, 64
  %v4763 = vpop.permute.xlu0 %4762
  %v4765 = vadd.f32 %v4759, %v4763
  %v4766 = vtanh.pop %v4765
  %v4767 = vmul.f32 %v4758, %v4766
  %v4769 = vunpack.c.l.s4 1983009808
  %v4770 = vunpack.c.0.s8 %v4769
  %v4771 = vlaneseq
  %v4772 = vshrl.u32 %v4771, 7
  %v4773 = vsub.s32 %v4770, %v4772
  %v4774 = vrot.slane %v4603, %v4773
  %v4775 = vcombine.high %v4774, %v4774
  %v4779 = vunpack.c.l.s4 1983009808
  %v4780 = vunpack.c.0.s8 %v4779
  %v4781 = vlaneseq
  %v4782 = vshrl.u32 %v4781, 7
  %v4783 = vsub.s32 %v4780, %v4782
  %v4784 = vrot.slane %v4620, %v4783
  %v4785 = vcombine.high %v4784, %v4784
  %v4788 = vsel %vm4650, %v4774, %v4784
  %v4789 = vsel %vm4651, %v4775, %v4785
  %4791 = vrot.lane.b32.xlu0 %v4767, 64
  %v4792 = vpop.permute.xlu0 %4791
  %v4793 = vsel %vm259, %v4792, 0
  %4795 = vmatprep.subr.mxu0 %v4626
  %4796 = vmatpush1.msra.mxu0 %v4625
  %4797 = vmatprep.subr.mxu0 %v4628
  %4798 = vmatpush1.msra.mxu0 %v4627
  %4799 = vmatprep.subr.mxu0 %v4630
  %4800 = vmatpush1.msra.mxu0 %v4629
  %4801 = vmatprep.subr.mxu0 %v4632
  %4802 = vmatpush1.msra.mxu0 %v4631
  %4803 = vmatprep.subr.mxu0 %v4634
  %4804 = vmatpush1.msra.mxu0 %v4633
  %4805 = vmatprep.subr.mxu0 %v4636
  %4806 = vmatpush1.msra.mxu0 %v4635
  %4807 = vmatprep.subr.mxu0 %v4638
  %4808 = vmatpush1.msra.mxu0 %v4637
  %4809 = vmatprep.subr.mxu0 %v4640
  %4810 = vmatpush1.msra.mxu0 %v4639
  %4811 = vmatprep.subr.mxu0 0.0
  %4812 = vmatpush1.msra.mxu0 0.0
  %4813 = vmatprep.subr.mxu0 0.0
  %4814 = vmatpush1.msra.mxu0 0.0
  %4815 = vmatprep.subr.mxu0 0.0
  %4816 = vmatpush1.msra.mxu0 0.0
  %4817 = vmatprep.subr.mxu0 0.0
  %4818 = vmatpush1.msra.mxu0 0.0
  %4819 = vmatprep.subr.mxu0 0.0
  %4820 = vmatpush1.msra.mxu0 0.0
  %4821 = vmatprep.subr.mxu0 0.0
  %4822 = vmatpush1.msra.mxu0 0.0
  %4823 = vmatprep.subr.mxu0 0.0
  %4824 = vmatpush1.msra.mxu0 0.0
  %4825 = vmatprep.subr.mxu0 0.0
  %4826 = vmatpush1.msra.mxu0 0.0
  %4827 = vmatprep.subr.mxu0 0.0
  %4828 = vmatpush1.msra.mxu0 0.0
  %4829 = vmatprep.subr.mxu0 0.0
  %4830 = vmatpush1.msra.mxu0 0.0
  %4831 = vmatprep.subr.mxu0 0.0
  %4832 = vmatpush1.msra.mxu0 0.0
  %4833 = vmatprep.subr.mxu0 0.0
  %4834 = vmatpush1.msra.mxu0 0.0
  %4835 = vmatprep.subr.mxu0 0.0
  %4836 = vmatpush1.msra.mxu0 0.0
  %4837 = vmatprep.subr.mxu0 0.0
  %4838 = vmatpush1.msra.mxu0 0.0
  %4839 = vmatprep.subr.mxu0 0.0
  %4840 = vmatpush1.msra.mxu0 0.0
  %4841 = vmatprep.subr.mxu0 0.0
  %4842 = vmatpush1.msra.mxu0 0.0
  %4843 = vmatprep.subr.mxu0 0.0
  %4844 = vmatpush1.msra.mxu0 0.0
  %4845 = vmatprep.subr.mxu0 0.0
  %4846 = vmatpush1.msra.mxu0 0.0
  %4847 = vmatprep.subr.mxu0 0.0
  %4848 = vmatpush1.msra.mxu0 0.0
  %4849 = vmatprep.subr.mxu0 0.0
  %4850 = vmatpush1.msra.mxu0 0.0
  %4851 = vmatprep.subr.mxu0 0.0
  %4852 = vmatpush1.msra.mxu0 0.0
  %4853 = vmatprep.subr.mxu0 0.0
  %4854 = vmatpush1.msra.mxu0 0.0
  %4855 = vmatprep.subr.mxu0 0.0
  %4856 = vmatpush1.msra.mxu0 0.0
  %4857 = vmatprep.subr.mxu0 0.0
  %4858 = vmatpush1.msra.mxu0 0.0
  %4859 = vmatprep.mubr.f32.mxu0 0.0
  %4860 = vmatmul.mubr.f32.gmra.mrb[0].mxu0 %v4793
  %v4861 = vpop.f32.mrb[0].mxu0
  %v4862 = vadd.f32 0.0, %v4861
  %v4863 = vpop.f32.mrb[0].mxu0
  %v4864 = vadd.f32 0.0, %v4863
  %4865 = vdwg.mxu0
  %v4866 = vadd.f32 %v4788, %v4862
  %v4867 = vadd.f32 %v4789, %v4864
  %v4868 = vmul.f32 %v4866, 0.5
  %v4869 = vtanh.pop %v4868
  %v4870 = vadd.f32 %v4869, 1.0
  %v4871 = vmul.f32 %v4870, 0.5
  %v4872 = vtanh.pop %v4867
  %v4873 = vmul.f32 %v4867, 0.5
  %v4874 = vtanh.pop %v4873
  %v4875 = vadd.f32 %v4874, 1.0
  %v4876 = vmul.f32 %v4875, 0.5
  %v4877 = vmul.f32 %v4871, %v4765
  %v4878 = vmul.f32 %v4871, %v4872
  %4880 = vrot.lane.b32.xlu0 %v4878, 64
  %v4881 = vpop.permute.xlu0 %4880
  %v4883 = vadd.f32 %v4877, %v4881
  %v4884 = vtanh.pop %v4883
  %v4885 = vmul.f32 %v4876, %v4884
  %v4887 = vunpack.c.l.s4 1983009808
  %v4888 = vunpack.c.0.s8 %v4887
  %v4889 = vlaneseq
  %v4890 = vshrl.u32 %v4889, 7
  %v4891 = vsub.s32 %v4888, %v4890
  %v4892 = vrot.slane %v4602, %v4891
  %v4893 = vcombine.high %v4892, %v4892
  %v4897 = vunpack.c.l.s4 1983009808
  %v4898 = vunpack.c.0.s8 %v4897
  %v4899 = vlaneseq
  %v4900 = vshrl.u32 %v4899, 7
  %v4901 = vsub.s32 %v4898, %v4900
  %v4902 = vrot.slane %v4621, %v4901
  %v4903 = vcombine.high %v4902, %v4902
  %v4906 = vsel %vm4650, %v4892, %v4902
  %v4907 = vsel %vm4651, %v4893, %v4903
  %4909 = vrot.lane.b32.xlu0 %v4885, 64
  %v4910 = vpop.permute.xlu0 %4909
  %v4911 = vsel %vm259, %v4910, 0
  %4913 = vmatprep.subr.mxu0 %v4626
  %4914 = vmatpush1.msra.mxu0 %v4625
  %4915 = vmatprep.subr.mxu0 %v4628
  %4916 = vmatpush1.msra.mxu0 %v4627
  %4917 = vmatprep.subr.mxu0 %v4630
  %4918 = vmatpush1.msra.mxu0 %v4629
  %4919 = vmatprep.subr.mxu0 %v4632
  %4920 = vmatpush1.msra.mxu0 %v4631
  %4921 = vmatprep.subr.mxu0 %v4634
  %4922 = vmatpush1.msra.mxu0 %v4633
  %4923 = vmatprep.subr.mxu0 %v4636
  %4924 = vmatpush1.msra.mxu0 %v4635
  %4925 = vmatprep.subr.mxu0 %v4638
  %4926 = vmatpush1.msra.mxu0 %v4637
  %4927 = vmatprep.subr.mxu0 %v4640
  %4928 = vmatpush1.msra.mxu0 %v4639
  %4929 = vmatprep.subr.mxu0 0.0
  %4930 = vmatpush1.msra.mxu0 0.0
  %4931 = vmatprep.subr.mxu0 0.0
  %4932 = vmatpush1.msra.mxu0 0.0
  %4933 = vmatprep.subr.mxu0 0.0
  %4934 = vmatpush1.msra.mxu0 0.0
  %4935 = vmatprep.subr.mxu0 0.0
  %4936 = vmatpush1.msra.mxu0 0.0
  %4937 = vmatprep.subr.mxu0 0.0
  %4938 = vmatpush1.msra.mxu0 0.0
  %4939 = vmatprep.subr.mxu0 0.0
  %4940 = vmatpush1.msra.mxu0 0.0
  %4941 = vmatprep.subr.mxu0 0.0
  %4942 = vmatpush1.msra.mxu0 0.0
  %4943 = vmatprep.subr.mxu0 0.0
  %4944 = vmatpush1.msra.mxu0 0.0
  %4945 = vmatprep.subr.mxu0 0.0
  %4946 = vmatpush1.msra.mxu0 0.0
  %4947 = vmatprep.subr.mxu0 0.0
  %4948 = vmatpush1.msra.mxu0 0.0
  %4949 = vmatprep.subr.mxu0 0.0
  %4950 = vmatpush1.msra.mxu0 0.0
  %4951 = vmatprep.subr.mxu0 0.0
  %4952 = vmatpush1.msra.mxu0 0.0
  %4953 = vmatprep.subr.mxu0 0.0
  %4954 = vmatpush1.msra.mxu0 0.0
  %4955 = vmatprep.subr.mxu0 0.0
  %4956 = vmatpush1.msra.mxu0 0.0
  %4957 = vmatprep.subr.mxu0 0.0
  %4958 = vmatpush1.msra.mxu0 0.0
  %4959 = vmatprep.subr.mxu0 0.0
  %4960 = vmatpush1.msra.mxu0 0.0
  %4961 = vmatprep.subr.mxu0 0.0
  %4962 = vmatpush1.msra.mxu0 0.0
  %4963 = vmatprep.subr.mxu0 0.0
  %4964 = vmatpush1.msra.mxu0 0.0
  %4965 = vmatprep.subr.mxu0 0.0
  %4966 = vmatpush1.msra.mxu0 0.0
  %4967 = vmatprep.subr.mxu0 0.0
  %4968 = vmatpush1.msra.mxu0 0.0
  %4969 = vmatprep.subr.mxu0 0.0
  %4970 = vmatpush1.msra.mxu0 0.0
  %4971 = vmatprep.subr.mxu0 0.0
  %4972 = vmatpush1.msra.mxu0 0.0
  %4973 = vmatprep.subr.mxu0 0.0
  %4974 = vmatpush1.msra.mxu0 0.0
  %4975 = vmatprep.subr.mxu0 0.0
  %4976 = vmatpush1.msra.mxu0 0.0
  %4977 = vmatprep.mubr.f32.mxu0 0.0
  %4978 = vmatmul.mubr.f32.gmra.mrb[0].mxu0 %v4911
  %v4979 = vpop.f32.mrb[0].mxu0
  %v4980 = vadd.f32 0.0, %v4979
  %v4981 = vpop.f32.mrb[0].mxu0
  %v4982 = vadd.f32 0.0, %v4981
  %4983 = vdwg.mxu0
  %v4984 = vadd.f32 %v4906, %v4980
  %v4985 = vadd.f32 %v4907, %v4982
  %v4986 = vmul.f32 %v4984, 0.5
  %v4987 = vtanh.pop %v4986
  %v4988 = vadd.f32 %v4987, 1.0
  %v4989 = vmul.f32 %v4988, 0.5
  %v4990 = vtanh.pop %v4985
  %v4991 = vmul.f32 %v4985, 0.5
  %v4992 = vtanh.pop %v4991
  %v4993 = vadd.f32 %v4992, 1.0
  %v4994 = vmul.f32 %v4993, 0.5
  %v4995 = vmul.f32 %v4989, %v4883
  %v4996 = vmul.f32 %v4989, %v4990
  %4998 = vrot.lane.b32.xlu0 %v4996, 64
  %v4999 = vpop.permute.xlu0 %4998
  %v5001 = vadd.f32 %v4995, %v4999
  %v5002 = vtanh.pop %v5001
  %v5003 = vmul.f32 %v4994, %v5002
  %v5005 = vunpack.c.l.s4 1983009808
  %v5006 = vunpack.c.0.s8 %v5005
  %v5007 = vlaneseq
  %v5008 = vshrl.u32 %v5007, 7
  %v5009 = vsub.s32 %v5006, %v5008
  %v5010 = vrot.slane %v4604, %v5009
  %v5011 = vcombine.high %v5010, %v5010
  %v5015 = vunpack.c.l.s4 1983009808
  %v5016 = vunpack.c.0.s8 %v5015
  %v5017 = vlaneseq
  %v5018 = vshrl.u32 %v5017, 7
  %v5019 = vsub.s32 %v5016, %v5018
  %v5020 = vrot.slane %v4613, %v5019
  %v5021 = vcombine.high %v5020, %v5020
  %v5024 = vsel %vm4650, %v5010, %v5020
  %v5025 = vsel %vm4651, %v5011, %v5021
  %5027 = vrot.lane.b32.xlu0 %v5003, 64
  %v5028 = vpop.permute.xlu0 %5027
  %v5029 = vsel %vm259, %v5028, 0
  %5031 = vmatprep.subr.mxu0 %v4626
  %5032 = vmatpush1.msra.mxu0 %v4625
  %5033 = vmatprep.subr.mxu0 %v4628
  %5034 = vmatpush1.msra.mxu0 %v4627
  %5035 = vmatprep.subr.mxu0 %v4630
  %5036 = vmatpush1.msra.mxu0 %v4629
  %5037 = vmatprep.subr.mxu0 %v4632
  %5038 = vmatpush1.msra.mxu0 %v4631
  %5039 = vmatprep.subr.mxu0 %v4634
  %5040 = vmatpush1.msra.mxu0 %v4633
  %5041 = vmatprep.subr.mxu0 %v4636
  %5042 = vmatpush1.msra.mxu0 %v4635
  %5043 = vmatprep.subr.mxu0 %v4638
  %5044 = vmatpush1.msra.mxu0 %v4637
  %5045 = vmatprep.subr.mxu0 %v4640
  %5046 = vmatpush1.msra.mxu0 %v4639
  %5047 = vmatprep.subr.mxu0 0.0
  %5048 = vmatpush1.msra.mxu0 0.0
  %5049 = vmatprep.subr.mxu0 0.0
  %5050 = vmatpush1.msra.mxu0 0.0
  %5051 = vmatprep.subr.mxu0 0.0
  %5052 = vmatpush1.msra.mxu0 0.0
  %5053 = vmatprep.subr.mxu0 0.0
  %5054 = vmatpush1.msra.mxu0 0.0
  %5055 = vmatprep.subr.mxu0 0.0
  %5056 = vmatpush1.msra.mxu0 0.0
  %5057 = vmatprep.subr.mxu0 0.0
  %5058 = vmatpush1.msra.mxu0 0.0
  %5059 = vmatprep.subr.mxu0 0.0
  %5060 = vmatpush1.msra.mxu0 0.0
  %5061 = vmatprep.subr.mxu0 0.0
  %5062 = vmatpush1.msra.mxu0 0.0
  %5063 = vmatprep.subr.mxu0 0.0
  %5064 = vmatpush1.msra.mxu0 0.0
  %5065 = vmatprep.subr.mxu0 0.0
  %5066 = vmatpush1.msra.mxu0 0.0
  %5067 = vmatprep.subr.mxu0 0.0
  %5068 = vmatpush1.msra.mxu0 0.0
  %5069 = vmatprep.subr.mxu0 0.0
  %5070 = vmatpush1.msra.mxu0 0.0
  %5071 = vmatprep.subr.mxu0 0.0
  %5072 = vmatpush1.msra.mxu0 0.0
  %5073 = vmatprep.subr.mxu0 0.0
  %5074 = vmatpush1.msra.mxu0 0.0
  %5075 = vmatprep.subr.mxu0 0.0
  %5076 = vmatpush1.msra.mxu0 0.0
  %5077 = vmatprep.subr.mxu0 0.0
  %5078 = vmatpush1.msra.mxu0 0.0
  %5079 = vmatprep.subr.mxu0 0.0
  %5080 = vmatpush1.msra.mxu0 0.0
  %5081 = vmatprep.subr.mxu0 0.0
  %5082 = vmatpush1.msra.mxu0 0.0
  %5083 = vmatprep.subr.mxu0 0.0
  %5084 = vmatpush1.msra.mxu0 0.0
  %5085 = vmatprep.subr.mxu0 0.0
  %5086 = vmatpush1.msra.mxu0 0.0
  %5087 = vmatprep.subr.mxu0 0.0
  %5088 = vmatpush1.msra.mxu0 0.0
  %5089 = vmatprep.subr.mxu0 0.0
  %5090 = vmatpush1.msra.mxu0 0.0
  %5091 = vmatprep.subr.mxu0 0.0
  %5092 = vmatpush1.msra.mxu0 0.0
  %5093 = vmatprep.subr.mxu0 0.0
  %5094 = vmatpush1.msra.mxu0 0.0
  %5095 = vmatprep.mubr.f32.mxu0 0.0
  %5096 = vmatmul.mubr.f32.gmra.mrb[0].mxu0 %v5029
  %v5097 = vpop.f32.mrb[0].mxu0
  %v5098 = vadd.f32 0.0, %v5097
  %v5099 = vpop.f32.mrb[0].mxu0
  %v5100 = vadd.f32 0.0, %v5099
  %5101 = vdwg.mxu0
  %v5102 = vadd.f32 %v5024, %v5098
  %v5103 = vadd.f32 %v5025, %v5100
  %v5104 = vmul.f32 %v5102, 0.5
  %v5105 = vtanh.pop %v5104
  %v5106 = vadd.f32 %v5105, 1.0
  %v5107 = vmul.f32 %v5106, 0.5
  %v5108 = vtanh.pop %v5103
  %v5109 = vmul.f32 %v5103, 0.5
  %v5110 = vtanh.pop %v5109
  %v5111 = vadd.f32 %v5110, 1.0
  %v5112 = vmul.f32 %v5111, 0.5
  %v5113 = vmul.f32 %v5107, %v5001
  %v5114 = vmul.f32 %v5107, %v5108
  %5116 = vrot.lane.b32.xlu0 %v5114, 64
  %v5117 = vpop.permute.xlu0 %5116
  %v5119 = vadd.f32 %v5113, %v5117
  %v5120 = vtanh.pop %v5119
  %v5121 = vmul.f32 %v5112, %v5120
  %v5122 = vsel %vm4650, %v5020, %v5010
  %v5123 = vsel %vm4651, %v5021, %v5011
  %5125 = vrot.lane.b32.xlu0 %v5121, 64
  %v5126 = vpop.permute.xlu0 %5125
  %v5127 = vsel %vm259, %v5126, 0
  %5129 = vmatprep.subr.mxu0 %v4626
  %5130 = vmatpush1.msra.mxu0 %v4625
  %5131 = vmatprep.subr.mxu0 %v4628
  %5132 = vmatpush1.msra.mxu0 %v4627
  %5133 = vmatprep.subr.mxu0 %v4630
  %5134 = vmatpush1.msra.mxu0 %v4629
  %5135 = vmatprep.subr.mxu0 %v4632
  %5136 = vmatpush1.msra.mxu0 %v4631
  %5137 = vmatprep.subr.mxu0 %v4634
  %5138 = vmatpush1.msra.mxu0 %v4633
  %5139 = vmatprep.subr.mxu0 %v4636
  %5140 = vmatpush1.msra.mxu0 %v4635
  %5141 = vmatprep.subr.mxu0 %v4638
  %5142 = vmatpush1.msra.mxu0 %v4637
  %5143 = vmatprep.subr.mxu0 %v4640
  %5144 = vmatpush1.msra.mxu0 %v4639
  %5145 = vmatprep.subr.mxu0 0.0
  %5146 = vmatpush1.msra.mxu0 0.0
  %5147 = vmatprep.subr.mxu0 0.0
  %5148 = vmatpush1.msra.mxu0 0.0
  %5149 = vmatprep.subr.mxu0 0.0
  %5150 = vmatpush1.msra.mxu0 0.0
  %5151 = vmatprep.subr.mxu0 0.0
  %5152 = vmatpush1.msra.mxu0 0.0
  %5153 = vmatprep.subr.mxu0 0.0
  %5154 = vmatpush1.msra.mxu0 0.0
  %5155 = vmatprep.subr.mxu0 0.0
  %5156 = vmatpush1.msra.mxu0 0.0
  %5157 = vmatprep.subr.mxu0 0.0
  %5158 = vmatpush1.msra.mxu0 0.0
  %5159 = vmatprep.subr.mxu0 0.0
  %5160 = vmatpush1.msra.mxu0 0.0
  %5161 = vmatprep.subr.mxu0 0.0
  %5162 = vmatpush1.msra.mxu0 0.0
  %5163 = vmatprep.subr.mxu0 0.0
  %5164 = vmatpush1.msra.mxu0 0.0
  %5165 = vmatprep.subr.mxu0 0.0
  %5166 = vmatpush1.msra.mxu0 0.0
  %5167 = vmatprep.subr.mxu0 0.0
  %5168 = vmatpush1.msra.mxu0 0.0
  %5169 = vmatprep.subr.mxu0 0.0
  %5170 = vmatpush1.msra.mxu0 0.0
  %5171 = vmatprep.subr.mxu0 0.0
  %5172 = vmatpush1.msra.mxu0 0.0
  %5173 = vmatprep.subr.mxu0 0.0
  %5174 = vmatpush1.msra.mxu0 0.0
  %5175 = vmatprep.subr.mxu0 0.0
  %5176 = vmatpush1.msra.mxu0 0.0
  %5177 = vmatprep.subr.mxu0 0.0
  %5178 = vmatpush1.msra.mxu0 0.0
  %5179 = vmatprep.subr.mxu0 0.0
  %5180 = vmatpush1.msra.mxu0 0.0
  %5181 = vmatprep.subr.mxu0 0.0
  %5182 = vmatpush1.msra.mxu0 0.0
  %5183 = vmatprep.subr.mxu0 0.0
  %5184 = vmatpush1.msra.mxu0 0.0
  %5185 = vmatprep.subr.mxu0 0.0
  %5186 = vmatpush1.msra.mxu0 0.0
  %5187 = vmatprep.subr.mxu0 0.0
  %5188 = vmatpush1.msra.mxu0 0.0
  %5189 = vmatprep.subr.mxu0 0.0
  %5190 = vmatpush1.msra.mxu0 0.0
  %5191 = vmatprep.subr.mxu0 0.0
  %5192 = vmatpush1.msra.mxu0 0.0
  %5193 = vmatprep.mubr.f32.mxu0 0.0
  %5194 = vmatmul.mubr.f32.gmra.mrb[0].mxu0 %v5127
  %v5195 = vpop.f32.mrb[0].mxu0
  %v5196 = vadd.f32 0.0, %v5195
  %v5197 = vpop.f32.mrb[0].mxu0
  %v5198 = vadd.f32 0.0, %v5197
  %5199 = vdwg.mxu0
  %v5200 = vadd.f32 %v5122, %v5196
  %v5201 = vadd.f32 %v5123, %v5198
  %v5202 = vmul.f32 %v5200, 0.5
  %v5203 = vtanh.pop %v5202
  %v5204 = vadd.f32 %v5203, 1.0
  %v5205 = vmul.f32 %v5204, 0.5
  %v5206 = vtanh.pop %v5201
  %v5207 = vmul.f32 %v5201, 0.5
  %v5208 = vtanh.pop %v5207
  %v5209 = vadd.f32 %v5208, 1.0
  %v5210 = vmul.f32 %v5209, 0.5
  %v5211 = vmul.f32 %v5205, %v5119
  %v5212 = vmul.f32 %v5205, %v5206
  %5214 = vrot.lane.b32.xlu0 %v5212, 64
  %v5215 = vpop.permute.xlu0 %5214
  %v5217 = vadd.f32 %v5211, %v5215
  %v5218 = vtanh.pop %v5217
  %v5219 = vmul.f32 %v5210, %v5218
  %v5220 = vsel %vm4650, %v4902, %v4892
  %v5221 = vsel %vm4651, %v4903, %v4893
  %5223 = vrot.lane.b32.xlu0 %v5219, 64
  %v5224 = vpop.permute.xlu0 %5223
  %v5225 = vsel %vm259, %v5224, 0
  %5227 = vmatprep.subr.mxu0 %v4626
  %5228 = vmatpush1.msra.mxu0 %v4625
  %5229 = vmatprep.subr.mxu0 %v4628
  %5230 = vmatpush1.msra.mxu0 %v4627
  %5231 = vmatprep.subr.mxu0 %v4630
  %5232 = vmatpush1.msra.mxu0 %v4629
  %5233 = vmatprep.subr.mxu0 %v4632
  %5234 = vmatpush1.msra.mxu0 %v4631
  %5235 = vmatprep.subr.mxu0 %v4634
  %5236 = vmatpush1.msra.mxu0 %v4633
  %5237 = vmatprep.subr.mxu0 %v4636
  %5238 = vmatpush1.msra.mxu0 %v4635
  %5239 = vmatprep.subr.mxu0 %v4638
  %5240 = vmatpush1.msra.mxu0 %v4637
  %5241 = vmatprep.subr.mxu0 %v4640
  %5242 = vmatpush1.msra.mxu0 %v4639
  %5243 = vmatprep.subr.mxu0 0.0
  %5244 = vmatpush1.msra.mxu0 0.0
  %5245 = vmatprep.subr.mxu0 0.0
  %5246 = vmatpush1.msra.mxu0 0.0
  %5247 = vmatprep.subr.mxu0 0.0
  %5248 = vmatpush1.msra.mxu0 0.0
  %5249 = vmatprep.subr.mxu0 0.0
  %5250 = vmatpush1.msra.mxu0 0.0
  %5251 = vmatprep.subr.mxu0 0.0
  %5252 = vmatpush1.msra.mxu0 0.0
  %5253 = vmatprep.subr.mxu0 0.0
  %5254 = vmatpush1.msra.mxu0 0.0
  %5255 = vmatprep.subr.mxu0 0.0
  %5256 = vmatpush1.msra.mxu0 0.0
  %5257 = vmatprep.subr.mxu0 0.0
  %5258 = vmatpush1.msra.mxu0 0.0
  %5259 = vmatprep.subr.mxu0 0.0
  %5260 = vmatpush1.msra.mxu0 0.0
  %5261 = vmatprep.subr.mxu0 0.0
  %5262 = vmatpush1.msra.mxu0 0.0
  %5263 = vmatprep.subr.mxu0 0.0
  %5264 = vmatpush1.msra.mxu0 0.0
  %5265 = vmatprep.subr.mxu0 0.0
  %5266 = vmatpush1.msra.mxu0 0.0
  %5267 = vmatprep.subr.mxu0 0.0
  %5268 = vmatpush1.msra.mxu0 0.0
  %5269 = vmatprep.subr.mxu0 0.0
  %5270 = vmatpush1.msra.mxu0 0.0
  %5271 = vmatprep.subr.mxu0 0.0
  %5272 = vmatpush1.msra.mxu0 0.0
  %5273 = vmatprep.subr.mxu0 0.0
  %5274 = vmatpush1.msra.mxu0 0.0
  %5275 = vmatprep.subr.mxu0 0.0
  %5276 = vmatpush1.msra.mxu0 0.0
  %5277 = vmatprep.subr.mxu0 0.0
  %5278 = vmatpush1.msra.mxu0 0.0
  %5279 = vmatprep.subr.mxu0 0.0
  %5280 = vmatpush1.msra.mxu0 0.0
  %5281 = vmatprep.subr.mxu0 0.0
  %5282 = vmatpush1.msra.mxu0 0.0
  %5283 = vmatprep.subr.mxu0 0.0
  %5284 = vmatpush1.msra.mxu0 0.0
  %5285 = vmatprep.subr.mxu0 0.0
  %5286 = vmatpush1.msra.mxu0 0.0
  %5287 = vmatprep.subr.mxu0 0.0
  %5288 = vmatpush1.msra.mxu0 0.0
  %5289 = vmatprep.subr.mxu0 0.0
  %5290 = vmatpush1.msra.mxu0 0.0
  %5291 = vmatprep.mubr.f32.mxu0 0.0
  %5292 = vmatmul.mubr.f32.gmra.mrb[0].mxu0 %v5225
  %v5293 = vpop.f32.mrb[0].mxu0
  %v5294 = vadd.f32 0.0, %v5293
  %v5295 = vpop.f32.mrb[0].mxu0
  %v5296 = vadd.f32 0.0, %v5295
  %5297 = vdwg.mxu0
  %v5298 = vadd.f32 %v5220, %v5294
  %v5299 = vadd.f32 %v5221, %v5296
  %v5300 = vmul.f32 %v5298, 0.5
  %v5301 = vtanh.pop %v5300
  %v5302 = vadd.f32 %v5301, 1.0
  %v5303 = vmul.f32 %v5302, 0.5
  %v5304 = vtanh.pop %v5299
  %v5305 = vmul.f32 %v5299, 0.5
  %v5306 = vtanh.pop %v5305
  %v5307 = vadd.f32 %v5306, 1.0
  %v5308 = vmul.f32 %v5307, 0.5
  %v5309 = vmul.f32 %v5303, %v5217
  %v5310 = vmul.f32 %v5303, %v5304
  %5312 = vrot.lane.b32.xlu0 %v5310, 64
  %v5313 = vpop.permute.xlu0 %5312
  %v5315 = vadd.f32 %v5309, %v5313
  %v5316 = vtanh.pop %v5315
  %v5317 = vmul.f32 %v5308, %v5316
  %v5318 = vsel %vm4650, %v4784, %v4774
  %v5319 = vsel %vm4651, %v4785, %v4775
  %5321 = vrot.lane.b32.xlu0 %v5317, 64
  %v5322 = vpop.permute.xlu0 %5321
  %v5323 = vsel %vm259, %v5322, 0
  %5325 = vmatprep.subr.mxu0 %v4626
  %5326 = vmatpush1.msra.mxu0 %v4625
  %5327 = vmatprep.subr.mxu0 %v4628
  %5328 = vmatpush1.msra.mxu0 %v4627
  %5329 = vmatprep.subr.mxu0 %v4630
  %5330 = vmatpush1.msra.mxu0 %v4629
  %5331 = vmatprep.subr.mxu0 %v4632
  %5332 = vmatpush1.msra.mxu0 %v4631
  %5333 = vmatprep.subr.mxu0 %v4634
  %5334 = vmatpush1.msra.mxu0 %v4633
  %5335 = vmatprep.subr.mxu0 %v4636
  %5336 = vmatpush1.msra.mxu0 %v4635
  %5337 = vmatprep.subr.mxu0 %v4638
  %5338 = vmatpush1.msra.mxu0 %v4637
  %5339 = vmatprep.subr.mxu0 %v4640
  %5340 = vmatpush1.msra.mxu0 %v4639
  %5341 = vmatprep.subr.mxu0 0.0
  %5342 = vmatpush1.msra.mxu0 0.0
  %5343 = vmatprep.subr.mxu0 0.0
  %5344 = vmatpush1.msra.mxu0 0.0
  %5345 = vmatprep.subr.mxu0 0.0
  %5346 = vmatpush1.msra.mxu0 0.0
  %5347 = vmatprep.subr.mxu0 0.0
  %5348 = vmatpush1.msra.mxu0 0.0
  %5349 = vmatprep.subr.mxu0 0.0
  %5350 = vmatpush1.msra.mxu0 0.0
  %5351 = vmatprep.subr.mxu0 0.0
  %5352 = vmatpush1.msra.mxu0 0.0
  %5353 = vmatprep.subr.mxu0 0.0
  %5354 = vmatpush1.msra.mxu0 0.0
  %5355 = vmatprep.subr.mxu0 0.0
  %5356 = vmatpush1.msra.mxu0 0.0
  %5357 = vmatprep.subr.mxu0 0.0
  %5358 = vmatpush1.msra.mxu0 0.0
  %5359 = vmatprep.subr.mxu0 0.0
  %5360 = vmatpush1.msra.mxu0 0.0
  %5361 = vmatprep.subr.mxu0 0.0
  %5362 = vmatpush1.msra.mxu0 0.0
  %5363 = vmatprep.subr.mxu0 0.0
  %5364 = vmatpush1.msra.mxu0 0.0
  %5365 = vmatprep.subr.mxu0 0.0
  %5366 = vmatpush1.msra.mxu0 0.0
  %5367 = vmatprep.subr.mxu0 0.0
  %5368 = vmatpush1.msra.mxu0 0.0
  %5369 = vmatprep.subr.mxu0 0.0
  %5370 = vmatpush1.msra.mxu0 0.0
  %5371 = vmatprep.subr.mxu0 0.0
  %5372 = vmatpush1.msra.mxu0 0.0
  %5373 = vmatprep.subr.mxu0 0.0
  %5374 = vmatpush1.msra.mxu0 0.0
  %5375 = vmatprep.subr.mxu0 0.0
  %5376 = vmatpush1.msra.mxu0 0.0
  %5377 = vmatprep.subr.mxu0 0.0
  %5378 = vmatpush1.msra.mxu0 0.0
  %5379 = vmatprep.subr.mxu0 0.0
  %5380 = vmatpush1.msra.mxu0 0.0
  %5381 = vmatprep.subr.mxu0 0.0
  %5382 = vmatpush1.msra.mxu0 0.0
  %5383 = vmatprep.subr.mxu0 0.0
  %5384 = vmatpush1.msra.mxu0 0.0
  %5385 = vmatprep.subr.mxu0 0.0
  %5386 = vmatpush1.msra.mxu0 0.0
  %5387 = vmatprep.subr.mxu0 0.0
  %5388 = vmatpush1.msra.mxu0 0.0
  %5389 = vmatprep.mubr.f32.mxu0 0.0
  %5390 = vmatmul.mubr.f32.gmra.mrb[0].mxu0 %v5323
  %v5391 = vpop.f32.mrb[0].mxu0
  %v5392 = vadd.f32 0.0, %v5391
  %v5393 = vpop.f32.mrb[0].mxu0
  %v5394 = vadd.f32 0.0, %v5393
  %5395 = vdwg.mxu0
  %v5396 = vadd.f32 %v5318, %v5392
  %v5397 = vadd.f32 %v5319, %v5394
  %v5398 = vmul.f32 %v5396, 0.5
  %v5399 = vtanh.pop %v5398
  %v5400 = vadd.f32 %v5399, 1.0
  %v5401 = vmul.f32 %v5400, 0.5
  %v5402 = vtanh.pop %v5397
  %v5403 = vmul.f32 %v5397, 0.5
  %v5404 = vtanh.pop %v5403
  %v5405 = vadd.f32 %v5404, 1.0
  %v5406 = vmul.f32 %v5405, 0.5
  %v5407 = vmul.f32 %v5401, %v5315
  %v5408 = vmul.f32 %v5401, %v5402
  %5410 = vrot.lane.b32.xlu0 %v5408, 64
  %v5411 = vpop.permute.xlu0 %5410
  %v5413 = vadd.f32 %v5407, %v5411
  %v5414 = vtanh.pop %v5413
  %v5415 = vmul.f32 %v5406, %v5414
  %v5416 = vsel %vm4650, %v4668, %v4658
  %v5417 = vsel %vm4651, %v4669, %v4659
  %5419 = vrot.lane.b32.xlu0 %v5415, 64
  %v5420 = vpop.permute.xlu0 %5419
  %v5421 = vsel %vm259, %v5420, 0
  %5423 = vmatprep.subr.mxu0 %v4626
  %5424 = vmatpush1.msra.mxu0 %v4625
  %5425 = vmatprep.subr.mxu0 %v4628
  %5426 = vmatpush1.msra.mxu0 %v4627
  %5427 = vmatprep.subr.mxu0 %v4630
  %5428 = vmatpush1.msra.mxu0 %v4629
  %5429 = vmatprep.subr.mxu0 %v4632
  %5430 = vmatpush1.msra.mxu0 %v4631
  %5431 = vmatprep.subr.mxu0 %v4634
  %5432 = vmatpush1.msra.mxu0 %v4633
  %5433 = vmatprep.subr.mxu0 %v4636
  %5434 = vmatpush1.msra.mxu0 %v4635
  %5435 = vmatprep.subr.mxu0 %v4638
  %5436 = vmatpush1.msra.mxu0 %v4637
  %5437 = vmatprep.subr.mxu0 %v4640
  %5438 = vmatpush1.msra.mxu0 %v4639
  %5439 = vmatprep.subr.mxu0 0.0
  %5440 = vmatpush1.msra.mxu0 0.0
  %5441 = vmatprep.subr.mxu0 0.0
  %5442 = vmatpush1.msra.mxu0 0.0
  %5443 = vmatprep.subr.mxu0 0.0
  %5444 = vmatpush1.msra.mxu0 0.0
  %5445 = vmatprep.subr.mxu0 0.0
  %5446 = vmatpush1.msra.mxu0 0.0
  %5447 = vmatprep.subr.mxu0 0.0
  %5448 = vmatpush1.msra.mxu0 0.0
  %5449 = vmatprep.subr.mxu0 0.0
  %5450 = vmatpush1.msra.mxu0 0.0
  %5451 = vmatprep.subr.mxu0 0.0
  %5452 = vmatpush1.msra.mxu0 0.0
  %5453 = vmatprep.subr.mxu0 0.0
  %5454 = vmatpush1.msra.mxu0 0.0
  %5455 = vmatprep.subr.mxu0 0.0
  %5456 = vmatpush1.msra.mxu0 0.0
  %5457 = vmatprep.subr.mxu0 0.0
  %5458 = vmatpush1.msra.mxu0 0.0
  %5459 = vmatprep.subr.mxu0 0.0
  %5460 = vmatpush1.msra.mxu0 0.0
  %5461 = vmatprep.subr.mxu0 0.0
  %5462 = vmatpush1.msra.mxu0 0.0
  %5463 = vmatprep.subr.mxu0 0.0
  %5464 = vmatpush1.msra.mxu0 0.0
  %5465 = vmatprep.subr.mxu0 0.0
  %5466 = vmatpush1.msra.mxu0 0.0
  %5467 = vmatprep.subr.mxu0 0.0
  %5468 = vmatpush1.msra.mxu0 0.0
  %5469 = vmatprep.subr.mxu0 0.0
  %5470 = vmatpush1.msra.mxu0 0.0
  %5471 = vmatprep.subr.mxu0 0.0
  %5472 = vmatpush1.msra.mxu0 0.0
  %5473 = vmatprep.subr.mxu0 0.0
  %5474 = vmatpush1.msra.mxu0 0.0
  %5475 = vmatprep.subr.mxu0 0.0
  %5476 = vmatpush1.msra.mxu0 0.0
  %5477 = vmatprep.subr.mxu0 0.0
  %5478 = vmatpush1.msra.mxu0 0.0
  %5479 = vmatprep.subr.mxu0 0.0
  %5480 = vmatpush1.msra.mxu0 0.0
  %5481 = vmatprep.subr.mxu0 0.0
  %5482 = vmatpush1.msra.mxu0 0.0
  %5483 = vmatprep.subr.mxu0 0.0
  %5484 = vmatpush1.msra.mxu0 0.0
  %5485 = vmatprep.subr.mxu0 0.0
  %5486 = vmatpush1.msra.mxu0 0.0
  %5487 = vmatprep.mubr.f32.mxu0 0.0
  %5488 = vmatmul.mubr.f32.gmra.mrb[0].mxu0 %v5421
  %v5489 = vpop.f32.mrb[0].mxu0
  %v5490 = vadd.f32 0.0, %v5489
  %v5491 = vpop.f32.mrb[0].mxu0
  %v5492 = vadd.f32 0.0, %v5491
  %5493 = vdwg.mxu0
  %v5494 = vadd.f32 %v5416, %v5490
  %v5495 = vadd.f32 %v5417, %v5492
  %v5496 = vmul.f32 %v5494, 0.5
  %v5497 = vtanh.pop %v5496
  %v5498 = vadd.f32 %v5497, 1.0
  %v5499 = vmul.f32 %v5498, 0.5
  %v5500 = vtanh.pop %v5495
  %v5501 = vmul.f32 %v5495, 0.5
  %v5502 = vtanh.pop %v5501
  %v5503 = vadd.f32 %v5502, 1.0
  %v5504 = vmul.f32 %v5503, 0.5
  %v5505 = vmul.f32 %v5499, %v5413
  %v5506 = vmul.f32 %v5499, %v5500
  %5508 = vrot.lane.b32.xlu0 %v5506, 64
  %v5509 = vpop.permute.xlu0 %5508
  %v5511 = vadd.f32 %v5505, %v5509
  %v5512 = vtanh.pop %v5511
  %v5513 = vmul.f32 %v5504, %v5512
  %v5514 = vld [vmem:[%s10] sm:$0xff]
  %v5515 = vld [vmem:[%s10 + $0x8] sm:$0xff]
  %v5516 = vld [vmem:[%s10 + $0x10] sm:$0xff]
  %v5517 = vld [vmem:[%s10 + $0x18] sm:$0xff]
  %v5518 = vld [vmem:[%s10 + $0x20] sm:$0xff]
  %v5519 = vld [vmem:[%s10 + $0x28] sm:$0xff]
  %v5520 = vld [vmem:[%s10 + $0x30] sm:$0xff]
  %v5521 = vld [vmem:[%s10 + $0x38] sm:$0xff]
  %v5522 = vld [vmem:[%s11] sm:$0x1]
  %v5524 = vlaneseq
  %v5525 = vshrl.u32 %v5524, 7
  %v5526 = vsub.s32 0, %v5525
  %v5527 = vrot.slane %v5522, %v5526
  %5530 = vrot.lane.b32.xlu0 %v5513, 64
  %v5531 = vpop.permute.xlu0 %5530
  %v5532 = vsel %vm259, %v5531, 0
  %5534 = vmatprep.subr.mxu0 0.0
  %5535 = vmatpush1.msra.mxu0 %v5514
  %5536 = vmatprep.subr.mxu0 0.0
  %5537 = vmatpush1.msra.mxu0 %v5515
  %5538 = vmatprep.subr.mxu0 0.0
  %5539 = vmatpush1.msra.mxu0 %v5516
  %5540 = vmatprep.subr.mxu0 0.0
  %5541 = vmatpush1.msra.mxu0 %v5517
  %5542 = vmatprep.subr.mxu0 0.0
  %5543 = vmatpush1.msra.mxu0 %v5518
  %5544 = vmatprep.subr.mxu0 0.0
  %5545 = vmatpush1.msra.mxu0 %v5519
  %5546 = vmatprep.subr.mxu0 0.0
  %5547 = vmatpush1.msra.mxu0 %v5520
  %5548 = vmatprep.subr.mxu0 0.0
  %5549 = vmatpush1.msra.mxu0 %v5521
  %5550 = vmatprep.subr.mxu0 0.0
  %5551 = vmatpush1.msra.mxu0 0.0
  %5552 = vmatprep.subr.mxu0 0.0
  %5553 = vmatpush1.msra.mxu0 0.0
  %5554 = vmatprep.subr.mxu0 0.0
  %5555 = vmatpush1.msra.mxu0 0.0
  %5556 = vmatprep.subr.mxu0 0.0
  %5557 = vmatpush1.msra.mxu0 0.0
  %5558 = vmatprep.subr.mxu0 0.0
  %5559 = vmatpush1.msra.mxu0 0.0
  %5560 = vmatprep.subr.mxu0 0.0
  %5561 = vmatpush1.msra.mxu0 0.0
  %5562 = vmatprep.subr.mxu0 0.0
  %5563 = vmatpush1.msra.mxu0 0.0
  %5564 = vmatprep.subr.mxu0 0.0
  %5565 = vmatpush1.msra.mxu0 0.0
  %5566 = vmatprep.subr.mxu0 0.0
  %5567 = vmatpush1.msra.mxu0 0.0
  %5568 = vmatprep.subr.mxu0 0.0
  %5569 = vmatpush1.msra.mxu0 0.0
  %5570 = vmatprep.subr.mxu0 0.0
  %5571 = vmatpush1.msra.mxu0 0.0
  %5572 = vmatprep.subr.mxu0 0.0
  %5573 = vmatpush1.msra.mxu0 0.0
  %5574 = vmatprep.subr.mxu0 0.0
  %5575 = vmatpush1.msra.mxu0 0.0
  %5576 = vmatprep.subr.mxu0 0.0
  %5577 = vmatpush1.msra.mxu0 0.0
  %5578 = vmatprep.subr.mxu0 0.0
  %5579 = vmatpush1.msra.mxu0 0.0
  %5580 = vmatprep.subr.mxu0 0.0
  %5581 = vmatpush1.msra.mxu0 0.0
  %5582 = vmatprep.subr.mxu0 0.0
  %5583 = vmatpush1.msra.mxu0 0.0
  %5584 = vmatprep.subr.mxu0 0.0
  %5585 = vmatpush1.msra.mxu0 0.0
  %5586 = vmatprep.subr.mxu0 0.0
  %5587 = vmatpush1.msra.mxu0 0.0
  %5588 = vmatprep.subr.mxu0 0.0
  %5589 = vmatpush1.msra.mxu0 0.0
  %5590 = vmatprep.subr.mxu0 0.0
  %5591 = vmatpush1.msra.mxu0 0.0
  %5592 = vmatprep.subr.mxu0 0.0
  %5593 = vmatpush1.msra.mxu0 0.0
  %5594 = vmatprep.subr.mxu0 0.0
  %5595 = vmatpush1.msra.mxu0 0.0
  %5596 = vmatprep.subr.mxu0 0.0
  %5597 = vmatpush1.msra.mxu0 0.0
  %5598 = vmatprep.mubr.f32.mxu0 0.0
  %5599 = vmatmul.mubr.f32.gmra.mrb[0].mxu0 %v5532
  %v5600 = vpop.f32.mrb[0].mxu0
  %v5601 = vadd.f32 %v5527, %v5600
  %v5602 = vpop.f32.mrb[0].mxu0
  %5603 = vdwg.mxu0
  %v5604 = vmax.f32 %v5601, 0.0
  %v5605 = vld [vmem:[%s12] sm:$0xff]
  %v5606 = vld [vmem:[%s12 + $0x8] sm:$0xff]
  %v5607 = vld [vmem:[%s12 + $0x10] sm:$0xff]
  %v5608 = vld [vmem:[%s12 + $0x18] sm:$0xff]
  %v5609 = vld [vmem:[#allocation2] sm:$0x1]
  %v5611 = vlaneseq
  %v5612 = vshrl.u32 %v5611, 7
  %v5613 = vsub.s32 0, %v5612
  %v5614 = vrot.slane %v5609, %v5613
  %v5617 = vsel %vm4499, %v5604, 0
  %5619 = vmatprep.subr.mxu0 0.0
  %5620 = vmatpush1.msra.mxu0 %v5605
  %5621 = vmatprep.subr.mxu0 0.0
  %5622 = vmatpush1.msra.mxu0 %v5606
  %5623 = vmatprep.subr.mxu0 0.0
  %5624 = vmatpush1.msra.mxu0 %v5607
  %5625 = vmatprep.subr.mxu0 0.0
  %5626 = vmatpush1.msra.mxu0 %v5608
  %5627 = vmatprep.subr.mxu0 0.0
  %5628 = vmatpush1.msra.mxu0 0.0
  %5629 = vmatprep.subr.mxu0 0.0
  %5630 = vmatpush1.msra.mxu0 0.0
  %5631 = vmatprep.subr.mxu0 0.0
  %5632 = vmatpush1.msra.mxu0 0.0
  %5633 = vmatprep.subr.mxu0 0.0
  %5634 = vmatpush1.msra.mxu0 0.0
  %5635 = vmatprep.subr.mxu0 0.0
  %5636 = vmatpush1.msra.mxu0 0.0
  %5637 = vmatprep.subr.mxu0 0.0
  %5638 = vmatpush1.msra.mxu0 0.0
  %5639 = vmatprep.subr.mxu0 0.0
  %5640 = vmatpush1.msra.mxu0 0.0
  %5641 = vmatprep.subr.mxu0 0.0
  %5642 = vmatpush1.msra.mxu0 0.0
  %5643 = vmatprep.subr.mxu0 0.0
  %5644 = vmatpush1.msra.mxu0 0.0
  %5645 = vmatprep.subr.mxu0 0.0
  %5646 = vmatpush1.msra.mxu0 0.0
  %5647 = vmatprep.subr.mxu0 0.0
  %5648 = vmatpush1.msra.mxu0 0.0
  %5649 = vmatprep.subr.mxu0 0.0
  %5650 = vmatpush1.msra.mxu0 0.0
  %5651 = vmatprep.subr.mxu0 0.0
  %5652 = vmatpush1.msra.mxu0 0.0
  %5653 = vmatprep.subr.mxu0 0.0
  %5654 = vmatpush1.msra.mxu0 0.0
  %5655 = vmatprep.subr.mxu0 0.0
  %5656 = vmatpush1.msra.mxu0 0.0
  %5657 = vmatprep.subr.mxu0 0.0
  %5658 = vmatpush1.msra.mxu0 0.0
  %5659 = vmatprep.subr.mxu0 0.0
  %5660 = vmatpush1.msra.mxu0 0.0
  %5661 = vmatprep.subr.mxu0 0.0
  %5662 = vmatpush1.msra.mxu0 0.0
  %5663 = vmatprep.subr.mxu0 0.0
  %5664 = vmatpush1.msra.mxu0 0.0
  %5665 = vmatprep.subr.mxu0 0.0
  %5666 = vmatpush1.msra.mxu0 0.0
  %5667 = vmatprep.subr.mxu0 0.0
  %5668 = vmatpush1.msra.mxu0 0.0
  %5669 = vmatprep.subr.mxu0 0.0
  %5670 = vmatpush1.msra.mxu0 0.0
  %5671 = vmatprep.subr.mxu0 0.0
  %5672 = vmatpush1.msra.mxu0 0.0
  %5673 = vmatprep.subr.mxu0 0.0
  %5674 = vmatpush1.msra.mxu0 0.0
  %5675 = vmatprep.subr.mxu0 0.0
  %5676 = vmatpush1.msra.mxu0 0.0
  %5677 = vmatprep.subr.mxu0 0.0
  %5678 = vmatpush1.msra.mxu0 0.0
  %5679 = vmatprep.subr.mxu0 0.0
  %5680 = vmatpush1.msra.mxu0 0.0
  %5681 = vmatprep.subr.mxu0 0.0
  %5682 = vmatpush1.msra.mxu0 0.0
  %5683 = vmatprep.mubr.f32.mxu0 0.0
  %5684 = vmatmul.mubr.f32.gmra.mrb[0].mxu0 %v5617
  %v5685 = vpop.f32.mrb[0].mxu0
  %v5686 = vadd.f32 %v5614, %v5685
  %v5687 = vpop.f32.mrb[0].mxu0
  %5688 = vdwg.mxu0
  %vm5689 = vcmask 1024
  %5690 = vst.msk [vmem:[%s14] sm:$0x3] %vm5689, %v5686
  // Predicated region
  $region58: #{cnn_lstm_forward.1} parent=0 // pred_check
    _
  $region59: #{cnn_lstm_forward.1} parent=0 // pred_check_branch
    %5692 = sbr.rel (0) target = $region61
  $region60: #{cnn_lstm_forward.1} parent=0 // pred_region
    _
  $region61: #{cnn_lstm_forward.1} parent=0 // pred_fallthru
    _
  // Predicated region
  $region62: #{cnn_lstm_forward.1} parent=0 // pred_check
    _
  $region63: #{cnn_lstm_forward.1} parent=0 // pred_check_branch
    %5694 = sbr.rel (0) target = $region65
  $region64: #{cnn_lstm_forward.1} parent=0 // pred_region
    _
  $region65: #{cnn_lstm_forward.1} parent=0 // pred_fallthru
    _

</llo_original>
